<compile_context>
chip_gen: v7x
topology: tpu7x:2x2x1
jax: 0.10.0
libtpu: 0.0.40
codegen_flags: <defaults>
</compile_context>

<pallas_src>
import functools

import jax
import jax.numpy as jnp
from jax.experimental import pallas as pl
from jax.experimental.pallas import tpu as pltpu


def _bottleneck_pool_kernel(x_ref, w1_ref, b1_ref, w2_ref, b2_ref,
                            w3_ref, b3_ref, o_ref, pool_ref, pad_ref,
                            *, H, W, C, MID):
    # x_ref: (H, W, C) f32 for one image (batch dim squeezed by the BlockSpec).
    x2d = x_ref[...].reshape(H * W, C)

    # --- conv1: 1x1 (BN folded) + ReLU ------------------------------------
    h1 = jnp.dot(x2d.astype(jnp.bfloat16), w1_ref[...],
                 preferred_element_type=jnp.float32) + b1_ref[...]
    h1 = jnp.maximum(h1, 0.0)

    # --- conv2: 3x3, stride 1, pad 1 (BN folded) + ReLU --------------------
    # Zero-padded frame in VMEM; each of the 9 taps is an MXU matmul of a
    # shifted (H*W, MID) window with its (MID, MID) weight slice.
    pad_ref[...] = jnp.zeros_like(pad_ref)
    pad_ref[1:H + 1, 1:W + 1, :] = h1.reshape(H, W, MID)
    acc = jnp.zeros((H * W, MID), jnp.float32)
    for ky in range(3):
        for kx in range(3):
            window = pad_ref[ky:ky + H, kx:kx + W, :].reshape(H * W, MID)
            acc = acc + jnp.dot(window.astype(jnp.bfloat16),
                                w2_ref[ky * 3 + kx],
                                preferred_element_type=jnp.float32)
    h2 = jnp.maximum(acc + b2_ref[...], 0.0)

    # --- conv3: 1x1 (BN folded) + residual + ReLU ---------------------------
    y = jnp.dot(h2.astype(jnp.bfloat16), w3_ref[...],
                preferred_element_type=jnp.float32) + b3_ref[...]
    y = jnp.maximum(y + x2d, 0.0)

    o_ref[...] = y.reshape(H, W, C).astype(o_ref.dtype)
    # Global average pool over the spatial axis (global_pool='avg').
    pool_ref[...] = jnp.mean(y, axis=0, keepdims=True).astype(pool_ref.dtype)


def bottleneck_block_pool(x, folded, *, out_dtype=None):
    """x: (B, H, W, C) f32 NHWC. Returns (block_out (B,H,W,C), pooled (B,C))."""
    B, H, W, C = x.shape
    MID = folded["w1"].shape[1]
    out_dtype = x.dtype if out_dtype is None else out_dtype

    # bf16 MXU operands (halves weight DMA / VMEM); biases stay f32.
    w1 = folded["w1"].astype(jnp.bfloat16)                       # (C, MID)
    w2 = folded["w2"].reshape(9, MID, MID).astype(jnp.bfloat16)  # 9 taps
    w3 = folded["w3"].astype(jnp.bfloat16)                       # (MID, C)
    b1, b2, b3 = folded["b1"], folded["b2"], folded["b3"]

    kernel = functools.partial(_bottleneck_pool_kernel, H=H, W=W, C=C, MID=MID)

    y, pooled = pl.pallas_call(
        kernel,
        out_shape=(jax.ShapeDtypeStruct((B, H, W, C), out_dtype),
                   jax.ShapeDtypeStruct((B, 1, C), jnp.float32)),
        grid=(B,),
        in_specs=[
            pl.BlockSpec((None, H, W, C), lambda b: (b, 0, 0, 0)),  # x (one image)
            pl.BlockSpec((C, MID), lambda b: (0, 0)),               # conv1 weight
            pl.BlockSpec((1, MID), lambda b: (0, 0)),               # conv1+BN bias
            pl.BlockSpec((9, MID, MID), lambda b: (0, 0, 0)),       # conv2 weight (9 taps)
            pl.BlockSpec((1, MID), lambda b: (0, 0)),               # conv2+BN bias
            pl.BlockSpec((MID, C), lambda b: (0, 0)),               # conv3 weight
            pl.BlockSpec((1, C), lambda b: (0, 0)),                 # conv3+BN bias
        ],
        out_specs=(
            pl.BlockSpec((None, H, W, C), lambda b: (b, 0, 0, 0)),  # block output
            pl.BlockSpec((None, 1, C), lambda b: (b, 0, 0)),        # pooled features
        ),
        scratch_shapes=[pltpu.VMEM((H + 2, W + 2, MID), jnp.float32)],  # padded frame
        compiler_params=pltpu.CompilerParams(
            dimension_semantics=("parallel",)),
    )(x, w1, b1, w2, b2, w3, b3)

    return y, pooled[:, 0, :]


def _fold_bn(w, gamma, beta, mean, var, eps=1e-5):
    """Fold eval-mode BatchNorm into the preceding bias-free conv.
    `w` has the output channel as its last axis."""
    scale = gamma * jax.lax.rsqrt(var + eps)
    return w * scale, (beta - mean * scale)[None, :]


def init_params(key, c, mid):
    """Synthetic raw conv weights (no conv bias, as in ResNet) + BN params."""
    k = jax.random.split(key, 6)

    def u(kk, shape, s):
        return jax.random.uniform(kk, shape, jnp.float32, -s, s)

    def bn(kk, dim):
        a, b, m, v = jax.random.split(kk, 4)
        return dict(gamma=jax.random.uniform(a, (dim,), jnp.float32, 0.5, 1.5),
                    beta=jax.random.uniform(b, (dim,), jnp.float32, -0.1, 0.1),
                    mean=jax.random.uniform(m, (dim,), jnp.float32, -0.1, 0.1),
                    var=jax.random.uniform(v, (dim,), jnp.float32, 0.5, 1.5))

    return {
        "w1": u(k[0], (c, mid), c ** -0.5),
        "w2": u(k[1], (3, 3, mid, mid), (9 * mid) ** -0.5),   # HWIO
        "w3": u(k[2], (mid, c), mid ** -0.5),
        "bn1": bn(k[3], mid), "bn2": bn(k[4], mid), "bn3": bn(k[5], c),
    }


def fold_params(raw):
    w1, b1 = _fold_bn(raw["w1"], **raw["bn1"])
    w2, b2 = _fold_bn(raw["w2"], **raw["bn2"])
    w3, b3 = _fold_bn(raw["w3"], **raw["bn3"])
    return dict(w1=w1, b1=b1, w2=w2, b2=b2, w3=w3, b3=b3)


def _reference(x, folded):
    """Pure-JAX f32 ground truth for the fused block + global average pool."""
    h1 = jax.nn.relu(jnp.einsum("bhwc,cm->bhwm", x, folded["w1"])
                     + folded["b1"].reshape(1, 1, 1, -1))
    h2 = jax.lax.conv_general_dilated(
        h1, folded["w2"], window_strides=(1, 1), padding="SAME",
        dimension_numbers=("NHWC", "HWIO", "NHWC"))
    h2 = jax.nn.relu(h2 + folded["b2"].reshape(1, 1, 1, -1))
    y = (jnp.einsum("bhwm,mc->bhwc", h2, folded["w3"])
         + folded["b3"].reshape(1, 1, 1, -1) + x)
    y = jax.nn.relu(y)
    return y, jnp.mean(y, axis=(1, 2))


if __name__ == "__main__":
    # Small but lane-dense bottleneck: in/out channels 256, mid channels 128,
    # 16x16 spatial, batch 4 (4 "parallel" grid steps).
    B, H, W, C, MID = 4, 16, 16, 256, 128

    key = jax.random.PRNGKey(0)
    kx, kp = jax.random.split(key)
    x = jax.random.normal(kx, (B, H, W, C), jnp.float32) * 0.5
    folded = fold_params(init_params(kp, C, MID))

    y, pooled = bottleneck_block_pool(x, folded)
    y = jax.block_until_ready(y)
    pooled = jax.block_until_ready(pooled)

    y_ref, pooled_ref = _reference(x, folded)
    assert y.shape == (B, H, W, C) and pooled.shape == (B, C)
    # bf16 MXU operands with f32 accumulation -> relaxed tolerance vs f32 reference.
    assert jnp.allclose(y, y_ref, atol=5e-2, rtol=5e-2), (
        float(jnp.max(jnp.abs(y - y_ref))))
    assert jnp.allclose(pooled, pooled_ref, atol=5e-2, rtol=5e-2), (
        float(jnp.max(jnp.abs(pooled - pooled_ref))))

    print("KERNEL_OK")
</pallas_src>

<mosaic_0001>
module attributes {stable_mosaic.version = 11 : i64} {
  func.func @_bottleneck_pool_kernel(%arg0: i32, %arg1: memref<1x16x16x256xf32, #tpu.memory_space<vmem>>, %arg2: memref<256x128xbf16, #tpu.memory_space<vmem>>, %arg3: memref<1x128xf32, #tpu.memory_space<vmem>>, %arg4: memref<9x128x128xbf16, #tpu.memory_space<vmem>>, %arg5: memref<1x128xf32, #tpu.memory_space<vmem>>, %arg6: memref<128x256xbf16, #tpu.memory_space<vmem>>, %arg7: memref<1x256xf32, #tpu.memory_space<vmem>>, %arg8: memref<1x16x16x256xf32, #tpu.memory_space<vmem>>, %arg9: memref<1x1x256xf32, #tpu.memory_space<vmem>>, %arg10: memref<18x18x128xf32, #tpu.memory_space<vmem>>) attributes {dimension_semantics = [#tpu.dimension_semantics<parallel>], iteration_bounds = array<i64: 4>, scalar_prefetch = 0 : i64, scratch_operands = 1 : i64, tpu.core_type = #tpu.core_type<tc>, window_params = [{transform_indices = @transform_0, window_bounds = array<i64: 1, 16, 16, 256>}, {pipeline_mode = #tpu.pipeline_mode<synchronous>, transform_indices = @transform_1, window_bounds = array<i64: 256, 128>}, {pipeline_mode = #tpu.pipeline_mode<synchronous>, transform_indices = @transform_2, window_bounds = array<i64: 1, 128>}, {pipeline_mode = #tpu.pipeline_mode<synchronous>, transform_indices = @transform_3, window_bounds = array<i64: 9, 128, 128>}, {pipeline_mode = #tpu.pipeline_mode<synchronous>, transform_indices = @transform_4, window_bounds = array<i64: 1, 128>}, {pipeline_mode = #tpu.pipeline_mode<synchronous>, transform_indices = @transform_5, window_bounds = array<i64: 128, 256>}, {pipeline_mode = #tpu.pipeline_mode<synchronous>, transform_indices = @transform_6, window_bounds = array<i64: 1, 256>}, {transform_indices = @transform_7, window_bounds = array<i64: 1, 16, 16, 256>}, {transform_indices = @transform_8, window_bounds = array<i64: 1, 1, 256>}]} {
    %c0 = arith.constant 0 : index
    %c0_0 = arith.constant 0 : index
    %c0_1 = arith.constant 0 : index
    %c0_2 = arith.constant 0 : index
    %0 = vector.load %arg1[%c0, %c0_0, %c0_1, %c0_2] : memref<1x16x16x256xf32, #tpu.memory_space<vmem>>, vector<1x16x16x256xf32>
    %1 = vector.shape_cast %0 : vector<1x16x16x256xf32> to vector<16x16x256xf32>
    %2 = vector.shape_cast %1 : vector<16x16x256xf32> to vector<256x256xf32>
    %3 = arith.truncf %2 : vector<256x256xf32> to vector<256x256xbf16>
    %c0_3 = arith.constant 0 : index
    %c0_4 = arith.constant 0 : index
    %4 = vector.load %arg2[%c0_3, %c0_4] : memref<256x128xbf16, #tpu.memory_space<vmem>>, vector<256x128xbf16>
    %cst = arith.constant dense<0.000000e+00> : vector<256x128xf32>
    %5 = tpu.matmul %3, %4, %cst {dimension_numbers = #tpu.dot_dimension_numbers<[1], [0], [0], [1], [0, 0, 1, 1], [], []>} : vector<256x256xbf16>, vector<256x128xbf16>, vector<256x128xf32> -> vector<256x128xf32>
    %c0_5 = arith.constant 0 : index
    %c0_6 = arith.constant 0 : index
    %6 = vector.load %arg3[%c0_5, %c0_6] : memref<1x128xf32, #tpu.memory_space<vmem>>, vector<1x128xf32>
    %7 = vector.broadcast %6 : vector<1x128xf32> to vector<256x128xf32>
    %8 = arith.addf %5, %7 : vector<256x128xf32>
    %cst_7 = arith.constant 0.000000e+00 : f32
    %9 = vector.broadcast %cst_7 : f32 to vector<256x128xf32>
    %10 = arith.maximumf %8, %9 : vector<256x128xf32>
    %cst_8 = arith.constant 0.000000e+00 : f32
    %11 = vector.broadcast %cst_8 : f32 to vector<18x18x128xf32>
    %c0_9 = arith.constant 0 : index
    %c0_10 = arith.constant 0 : index
    %c0_11 = arith.constant 0 : index
    %12 = vector.load %arg10[%c0_9, %c0_10, %c0_11] : memref<18x18x128xf32, #tpu.memory_space<vmem>>, vector<18x18x128xf32>
    tpu.vector_store %arg10[%c0_9, %c0_10, %c0_11], %11 {strides = array<i32>} : memref<18x18x128xf32, #tpu.memory_space<vmem>>, vector<18x18x128xf32>,
    %13 = vector.shape_cast %10 : vector<256x128xf32> to vector<16x16x128xf32>
    %c1 = arith.constant 1 : index
    %c1_12 = arith.constant 1 : index
    %c0_13 = arith.constant 0 : index
    %14 = vector.load %arg10[%c1, %c1_12, %c0_13] : memref<18x18x128xf32, #tpu.memory_space<vmem>>, vector<16x16x128xf32>
    tpu.vector_store %arg10[%c1, %c1_12, %c0_13], %13 {strides = array<i32>} : memref<18x18x128xf32, #tpu.memory_space<vmem>>, vector<16x16x128xf32>,
    %cst_14 = arith.constant 0.000000e+00 : f32
    %15 = vector.broadcast %cst_14 : f32 to vector<256x128xf32>
    %c0_15 = arith.constant 0 : index
    %c0_16 = arith.constant 0 : index
    %c0_17 = arith.constant 0 : index
    %16 = vector.load %arg10[%c0_15, %c0_16, %c0_17] : memref<18x18x128xf32, #tpu.memory_space<vmem>>, vector<16x16x128xf32>
    %17 = vector.shape_cast %16 : vector<16x16x128xf32> to vector<256x128xf32>
    %18 = arith.truncf %17 : vector<256x128xf32> to vector<256x128xbf16>
    %c0_18 = arith.constant 0 : index
    %c0_19 = arith.constant 0 : index
    %c0_20 = arith.constant 0 : index
    %19 = vector.load %arg4[%c0_18, %c0_19, %c0_20] : memref<9x128x128xbf16, #tpu.memory_space<vmem>>, vector<1x128x128xbf16>
    %20 = vector.shape_cast %19 : vector<1x128x128xbf16> to vector<128x128xbf16>
    %cst_21 = arith.constant dense<0.000000e+00> : vector<256x128xf32>
    %21 = tpu.matmul %18, %20, %cst_21 {dimension_numbers = #tpu.dot_dimension_numbers<[1], [0], [0], [1], [0, 0, 1, 1], [], []>} : vector<256x128xbf16>, vector<128x128xbf16>, vector<256x128xf32> -> vector<256x128xf32>
    %22 = arith.addf %15, %21 : vector<256x128xf32>
    %c0_22 = arith.constant 0 : index
    %c1_23 = arith.constant 1 : index
    %c0_24 = arith.constant 0 : index
    %23 = vector.load %arg10[%c0_22, %c1_23, %c0_24] : memref<18x18x128xf32, #tpu.memory_space<vmem>>, vector<16x16x128xf32>
    %24 = vector.shape_cast %23 : vector<16x16x128xf32> to vector<256x128xf32>
    %25 = arith.truncf %24 : vector<256x128xf32> to vector<256x128xbf16>
    %c1_25 = arith.constant 1 : index
    %c0_26 = arith.constant 0 : index
    %c0_27 = arith.constant 0 : index
    %26 = vector.load %arg4[%c1_25, %c0_26, %c0_27] : memref<9x128x128xbf16, #tpu.memory_space<vmem>>, vector<1x128x128xbf16>
    %27 = vector.shape_cast %26 : vector<1x128x128xbf16> to vector<128x128xbf16>
    %cst_28 = arith.constant dense<0.000000e+00> : vector<256x128xf32>
    %28 = tpu.matmul %25, %27, %cst_28 {dimension_numbers = #tpu.dot_dimension_numbers<[1], [0], [0], [1], [0, 0, 1, 1], [], []>} : vector<256x128xbf16>, vector<128x128xbf16>, vector<256x128xf32> -> vector<256x128xf32>
    %29 = arith.addf %22, %28 : vector<256x128xf32>
    %c0_29 = arith.constant 0 : index
    %c2 = arith.constant 2 : index
    %c0_30 = arith.constant 0 : index
    %30 = vector.load %arg10[%c0_29, %c2, %c0_30] : memref<18x18x128xf32, #tpu.memory_space<vmem>>, vector<16x16x128xf32>
    %31 = vector.shape_cast %30 : vector<16x16x128xf32> to vector<256x128xf32>
    %32 = arith.truncf %31 : vector<256x128xf32> to vector<256x128xbf16>
    %c2_31 = arith.constant 2 : index
    %c0_32 = arith.constant 0 : index
    %c0_33 = arith.constant 0 : index
    %33 = vector.load %arg4[%c2_31, %c0_32, %c0_33] : memref<9x128x128xbf16, #tpu.memory_space<vmem>>, vector<1x128x128xbf16>
    %34 = vector.shape_cast %33 : vector<1x128x128xbf16> to vector<128x128xbf16>
    %cst_34 = arith.constant dense<0.000000e+00> : vector<256x128xf32>
    %35 = tpu.matmul %32, %34, %cst_34 {dimension_numbers = #tpu.dot_dimension_numbers<[1], [0], [0], [1], [0, 0, 1, 1], [], []>} : vector<256x128xbf16>, vector<128x128xbf16>, vector<256x128xf32> -> vector<256x128xf32>
    %36 = arith.addf %29, %35 : vector<256x128xf32>
    %c1_35 = arith.constant 1 : index
    %c0_36 = arith.constant 0 : index
    %c0_37 = arith.constant 0 : index
    %37 = vector.load %arg10[%c1_35, %c0_36, %c0_37] : memref<18x18x128xf32, #tpu.memory_space<vmem>>, vector<16x16x128xf32>
    %38 = vector.shape_cast %37 : vector<16x16x128xf32> to vector<256x128xf32>
    %39 = arith.truncf %38 : vector<256x128xf32> to vector<256x128xbf16>
    %c3 = arith.constant 3 : index
    %c0_38 = arith.constant 0 : index
    %c0_39 = arith.constant 0 : index
    %40 = vector.load %arg4[%c3, %c0_38, %c0_39] : memref<9x128x128xbf16, #tpu.memory_space<vmem>>, vector<1x128x128xbf16>
    %41 = vector.shape_cast %40 : vector<1x128x128xbf16> to vector<128x128xbf16>
    %cst_40 = arith.constant dense<0.000000e+00> : vector<256x128xf32>
    %42 = tpu.matmul %39, %41, %cst_40 {dimension_numbers = #tpu.dot_dimension_numbers<[1], [0], [0], [1], [0, 0, 1, 1], [], []>} : vector<256x128xbf16>, vector<128x128xbf16>, vector<256x128xf32> -> vector<256x128xf32>
    %43 = arith.addf %36, %42 : vector<256x128xf32>
    %c1_41 = arith.constant 1 : index
    %c1_42 = arith.constant 1 : index
    %c0_43 = arith.constant 0 : index
    %44 = vector.load %arg10[%c1_41, %c1_42, %c0_43] : memref<18x18x128xf32, #tpu.memory_space<vmem>>, vector<16x16x128xf32>
    %45 = vector.shape_cast %44 : vector<16x16x128xf32> to vector<256x128xf32>
    %46 = arith.truncf %45 : vector<256x128xf32> to vector<256x128xbf16>
    %c4 = arith.constant 4 : index
    %c0_44 = arith.constant 0 : index
    %c0_45 = arith.constant 0 : index
    %47 = vector.load %arg4[%c4, %c0_44, %c0_45] : memref<9x128x128xbf16, #tpu.memory_space<vmem>>, vector<1x128x128xbf16>
    %48 = vector.shape_cast %47 : vector<1x128x128xbf16> to vector<128x128xbf16>
    %cst_46 = arith.constant dense<0.000000e+00> : vector<256x128xf32>
    %49 = tpu.matmul %46, %48, %cst_46 {dimension_numbers = #tpu.dot_dimension_numbers<[1], [0], [0], [1], [0, 0, 1, 1], [], []>} : vector<256x128xbf16>, vector<128x128xbf16>, vector<256x128xf32> -> vector<256x128xf32>
    %50 = arith.addf %43, %49 : vector<256x128xf32>
    %c1_47 = arith.constant 1 : index
    %c2_48 = arith.constant 2 : index
    %c0_49 = arith.constant 0 : index
    %51 = vector.load %arg10[%c1_47, %c2_48, %c0_49] : memref<18x18x128xf32, #tpu.memory_space<vmem>>, vector<16x16x128xf32>
    %52 = vector.shape_cast %51 : vector<16x16x128xf32> to vector<256x128xf32>
    %53 = arith.truncf %52 : vector<256x128xf32> to vector<256x128xbf16>
    %c5 = arith.constant 5 : index
    %c0_50 = arith.constant 0 : index
    %c0_51 = arith.constant 0 : index
    %54 = vector.load %arg4[%c5, %c0_50, %c0_51] : memref<9x128x128xbf16, #tpu.memory_space<vmem>>, vector<1x128x128xbf16>
    %55 = vector.shape_cast %54 : vector<1x128x128xbf16> to vector<128x128xbf16>
    %cst_52 = arith.constant dense<0.000000e+00> : vector<256x128xf32>
    %56 = tpu.matmul %53, %55, %cst_52 {dimension_numbers = #tpu.dot_dimension_numbers<[1], [0], [0], [1], [0, 0, 1, 1], [], []>} : vector<256x128xbf16>, vector<128x128xbf16>, vector<256x128xf32> -> vector<256x128xf32>
    %57 = arith.addf %50, %56 : vector<256x128xf32>
    %c2_53 = arith.constant 2 : index
    %c0_54 = arith.constant 0 : index
    %c0_55 = arith.constant 0 : index
    %58 = vector.load %arg10[%c2_53, %c0_54, %c0_55] : memref<18x18x128xf32, #tpu.memory_space<vmem>>, vector<16x16x128xf32>
    %59 = vector.shape_cast %58 : vector<16x16x128xf32> to vector<256x128xf32>
    %60 = arith.truncf %59 : vector<256x128xf32> to vector<256x128xbf16>
    %c6 = arith.constant 6 : index
    %c0_56 = arith.constant 0 : index
    %c0_57 = arith.constant 0 : index
    %61 = vector.load %arg4[%c6, %c0_56, %c0_57] : memref<9x128x128xbf16, #tpu.memory_space<vmem>>, vector<1x128x128xbf16>
    %62 = vector.shape_cast %61 : vector<1x128x128xbf16> to vector<128x128xbf16>
    %cst_58 = arith.constant dense<0.000000e+00> : vector<256x128xf32>
    %63 = tpu.matmul %60, %62, %cst_58 {dimension_numbers = #tpu.dot_dimension_numbers<[1], [0], [0], [1], [0, 0, 1, 1], [], []>} : vector<256x128xbf16>, vector<128x128xbf16>, vector<256x128xf32> -> vector<256x128xf32>
    %64 = arith.addf %57, %63 : vector<256x128xf32>
    %c2_59 = arith.constant 2 : index
    %c1_60 = arith.constant 1 : index
    %c0_61 = arith.constant 0 : index
    %65 = vector.load %arg10[%c2_59, %c1_60, %c0_61] : memref<18x18x128xf32, #tpu.memory_space<vmem>>, vector<16x16x128xf32>
    %66 = vector.shape_cast %65 : vector<16x16x128xf32> to vector<256x128xf32>
    %67 = arith.truncf %66 : vector<256x128xf32> to vector<256x128xbf16>
    %c7 = arith.constant 7 : index
    %c0_62 = arith.constant 0 : index
    %c0_63 = arith.constant 0 : index
    %68 = vector.load %arg4[%c7, %c0_62, %c0_63] : memref<9x128x128xbf16, #tpu.memory_space<vmem>>, vector<1x128x128xbf16>
    %69 = vector.shape_cast %68 : vector<1x128x128xbf16> to vector<128x128xbf16>
    %cst_64 = arith.constant dense<0.000000e+00> : vector<256x128xf32>
    %70 = tpu.matmul %67, %69, %cst_64 {dimension_numbers = #tpu.dot_dimension_numbers<[1], [0], [0], [1], [0, 0, 1, 1], [], []>} : vector<256x128xbf16>, vector<128x128xbf16>, vector<256x128xf32> -> vector<256x128xf32>
    %71 = arith.addf %64, %70 : vector<256x128xf32>
    %c2_65 = arith.constant 2 : index
    %c2_66 = arith.constant 2 : index
    %c0_67 = arith.constant 0 : index
    %72 = vector.load %arg10[%c2_65, %c2_66, %c0_67] : memref<18x18x128xf32, #tpu.memory_space<vmem>>, vector<16x16x128xf32>
    %73 = vector.shape_cast %72 : vector<16x16x128xf32> to vector<256x128xf32>
    %74 = arith.truncf %73 : vector<256x128xf32> to vector<256x128xbf16>
    %c8 = arith.constant 8 : index
    %c0_68 = arith.constant 0 : index
    %c0_69 = arith.constant 0 : index
    %75 = vector.load %arg4[%c8, %c0_68, %c0_69] : memref<9x128x128xbf16, #tpu.memory_space<vmem>>, vector<1x128x128xbf16>
    %76 = vector.shape_cast %75 : vector<1x128x128xbf16> to vector<128x128xbf16>
    %cst_70 = arith.constant dense<0.000000e+00> : vector<256x128xf32>
    %77 = tpu.matmul %74, %76, %cst_70 {dimension_numbers = #tpu.dot_dimension_numbers<[1], [0], [0], [1], [0, 0, 1, 1], [], []>} : vector<256x128xbf16>, vector<128x128xbf16>, vector<256x128xf32> -> vector<256x128xf32>
    %78 = arith.addf %71, %77 : vector<256x128xf32>
    %c0_71 = arith.constant 0 : index
    %c0_72 = arith.constant 0 : index
    %79 = vector.load %arg5[%c0_71, %c0_72] : memref<1x128xf32, #tpu.memory_space<vmem>>, vector<1x128xf32>
    %80 = vector.broadcast %79 : vector<1x128xf32> to vector<256x128xf32>
    %81 = arith.addf %78, %80 : vector<256x128xf32>
    %cst_73 = arith.constant 0.000000e+00 : f32
    %82 = vector.broadcast %cst_73 : f32 to vector<256x128xf32>
    %83 = arith.maximumf %81, %82 : vector<256x128xf32>
    %84 = arith.truncf %83 : vector<256x128xf32> to vector<256x128xbf16>
    %c0_74 = arith.constant 0 : index
    %c0_75 = arith.constant 0 : index
    %85 = vector.load %arg6[%c0_74, %c0_75] : memref<128x256xbf16, #tpu.memory_space<vmem>>, vector<128x256xbf16>
    %cst_76 = arith.constant dense<0.000000e+00> : vector<256x256xf32>
    %86 = tpu.matmul %84, %85, %cst_76 {dimension_numbers = #tpu.dot_dimension_numbers<[1], [0], [0], [1], [0, 0, 1, 1], [], []>} : vector<256x128xbf16>, vector<128x256xbf16>, vector<256x256xf32> -> vector<256x256xf32>
    %c0_77 = arith.constant 0 : index
    %c0_78 = arith.constant 0 : index
    %87 = vector.load %arg7[%c0_77, %c0_78] : memref<1x256xf32, #tpu.memory_space<vmem>>, vector<1x256xf32>
    %88 = vector.broadcast %87 : vector<1x256xf32> to vector<256x256xf32>
    %89 = arith.addf %86, %88 : vector<256x256xf32>
    %90 = arith.addf %89, %2 : vector<256x256xf32>
    %cst_79 = arith.constant 0.000000e+00 : f32
    %91 = vector.broadcast %cst_79 : f32 to vector<256x256xf32>
    %92 = arith.maximumf %90, %91 : vector<256x256xf32>
    %93 = vector.shape_cast %92 : vector<256x256xf32> to vector<16x16x256xf32>
    %c0_80 = arith.constant 0 : index
    %c0_81 = arith.constant 0 : index
    %c0_82 = arith.constant 0 : index
    %c0_83 = arith.constant 0 : index
    %94 = vector.load %arg8[%c0_80, %c0_81, %c0_82, %c0_83] : memref<1x16x16x256xf32, #tpu.memory_space<vmem>>, vector<1x16x16x256xf32>
    %95 = vector.shape_cast %94 : vector<1x16x16x256xf32> to vector<16x16x256xf32>
    %96 = vector.shape_cast %93 : vector<16x16x256xf32> to vector<1x16x16x256xf32>
    tpu.vector_store %arg8[%c0_80, %c0_81, %c0_82, %c0_83], %96 {strides = array<i32>} : memref<1x16x16x256xf32, #tpu.memory_space<vmem>>, vector<1x16x16x256xf32>,
    %cst_84 = arith.constant dense<0.000000e+00> : vector<256xf32>
    %97 = vector.multi_reduction <add>, %92, %cst_84 [0] : vector<256x256xf32> to vector<256xf32>
    %98 = vector.shape_cast %97 : vector<256xf32> to vector<1x256xf32>
    %cst_85 = arith.constant 2.560000e+02 : f32
    %99 = vector.broadcast %cst_85 : f32 to vector<1x256xf32>
    %100 = arith.divf %98, %99 : vector<1x256xf32>
    %c0_86 = arith.constant 0 : index
    %c0_87 = arith.constant 0 : index
    %c0_88 = arith.constant 0 : index
    %101 = vector.load %arg9[%c0_86, %c0_87, %c0_88] : memref<1x1x256xf32, #tpu.memory_space<vmem>>, vector<1x1x256xf32>
    %102 = vector.shape_cast %101 : vector<1x1x256xf32> to vector<1x256xf32>
    %103 = vector.shape_cast %100 : vector<1x256xf32> to vector<1x1x256xf32>
    tpu.vector_store %arg9[%c0_86, %c0_87, %c0_88], %103 {strides = array<i32>} : memref<1x1x256xf32, #tpu.memory_space<vmem>>, vector<1x1x256xf32>,
    return
  }
  func.func @transform_0(%arg0: i32) -> (i32, i32, i32, i32) {
    %c0_i32 = arith.constant 0 : i32
    %c0_i32_0 = arith.constant 0 : i32
    %c0_i32_1 = arith.constant 0 : i32
    %c0_i32_2 = arith.constant 0 : i32
    return %arg0, %c0_i32, %c0_i32_0, %c0_i32_1 : i32, i32, i32, i32
  }
  func.func @transform_1(%arg0: i32) -> (i32, i32) {
    %c0_i32 = arith.constant 0 : i32
    %c0_i32_0 = arith.constant 0 : i32
    %c0_i32_1 = arith.constant 0 : i32
    return %c0_i32, %c0_i32_0 : i32, i32
  }
  func.func @transform_2(%arg0: i32) -> (i32, i32) {
    %c0_i32 = arith.constant 0 : i32
    %c0_i32_0 = arith.constant 0 : i32
    %c0_i32_1 = arith.constant 0 : i32
    return %c0_i32, %c0_i32_0 : i32, i32
  }
  func.func @transform_3(%arg0: i32) -> (i32, i32, i32) {
    %c0_i32 = arith.constant 0 : i32
    %c0_i32_0 = arith.constant 0 : i32
    %c0_i32_1 = arith.constant 0 : i32
    %c0_i32_2 = arith.constant 0 : i32
    return %c0_i32, %c0_i32_0, %c0_i32_1 : i32, i32, i32
  }
  func.func @transform_4(%arg0: i32) -> (i32, i32) {
    %c0_i32 = arith.constant 0 : i32
    %c0_i32_0 = arith.constant 0 : i32
    %c0_i32_1 = arith.constant 0 : i32
    return %c0_i32, %c0_i32_0 : i32, i32
  }
  func.func @transform_5(%arg0: i32) -> (i32, i32) {
    %c0_i32 = arith.constant 0 : i32
    %c0_i32_0 = arith.constant 0 : i32
    %c0_i32_1 = arith.constant 0 : i32
    return %c0_i32, %c0_i32_0 : i32, i32
  }
  func.func @transform_6(%arg0: i32) -> (i32, i32) {
    %c0_i32 = arith.constant 0 : i32
    %c0_i32_0 = arith.constant 0 : i32
    %c0_i32_1 = arith.constant 0 : i32
    return %c0_i32, %c0_i32_0 : i32, i32
  }
  func.func @transform_7(%arg0: i32) -> (i32, i32, i32, i32) {
    %c0_i32 = arith.constant 0 : i32
    %c0_i32_0 = arith.constant 0 : i32
    %c0_i32_1 = arith.constant 0 : i32
    %c0_i32_2 = arith.constant 0 : i32
    return %arg0, %c0_i32, %c0_i32_0, %c0_i32_1 : i32, i32, i32, i32
  }
  func.func @transform_8(%arg0: i32) -> (i32, i32, i32) {
    %c0_i32 = arith.constant 0 : i32
    %c0_i32_0 = arith.constant 0 : i32
    %c0_i32_1 = arith.constant 0 : i32
    return %arg0, %c0_i32, %c0_i32_0 : i32, i32, i32
  }
}

</mosaic_0001>

<llo_original>
// kernel: tpu_custom_call.1
$region0: #{tpu_custom_call.1}
  #allocation0 [shape = 'u32[]', space=smem, size = 0x4, offset = 0x4, fixed_abs, tag = 'smem constant byte address 0x4 - core index']
  #allocation1 [shape = 'u32[144,128]{1,0:T(1,128)}', space=vmem, size = 0x12000, scoped, tag = 'internal scratch']
  #allocation2 [shape = 'f32[18,18,128]{2,1,0:T(8,128)}', space=vmem, size = 0x36000, scoped, tag = 'scratch operand']
  %s0 = inlined_call_operand.hbm [shape: f32[4,16,16,256], index: 0, kind: input, shape index: {}]
  %s1 = inlined_call_operand.hbm [shape: bf16[256,128], index: 1, kind: input, shape index: {}]
  %s2 = inlined_call_operand.vmem [shape: f32[1,128], index: 2, kind: input, shape index: {}]
  %s3 = inlined_call_operand.hbm [shape: bf16[9,128,128], index: 3, kind: input, shape index: {}]
  %s4 = inlined_call_operand.vmem [shape: f32[1,128], index: 4, kind: input, shape index: {}]
  %s5 = inlined_call_operand.hbm [shape: bf16[128,256], index: 5, kind: input, shape index: {}]
  %s6 = inlined_call_operand.vmem [shape: f32[1,256], index: 6, kind: input, shape index: {}]
  %s7 = inlined_call_operand.hbm [shape: f32[4,16,16,256], index: 7, kind: output, shape index: {0}]
  %s8 = inlined_call_operand.hbm [shape: f32[4,1,256], index: 8, kind: output, shape index: {1}]
  %9 = xla_tuple %s7, %s8
  %s10 = sld [smem:[#allocation0]]
  $region85: #{tpu_custom_call.1} parent=0
    _
  %s12 = ssub.s32 1, %s10
  %s13 = scalar_select 0, %s12, %s10
  $region1: #{tpu_custom_call.1} parent=0
    #allocation3 [shape = 'u8[524288]{0}', space=vmem, size = 0x80000, scoped, tag = 'input window, operand 0']
    #allocation4 [shape = 's32[2]{0}', space=sflag, size = 0x8, scoped, tag = 'scoped memory for tpu_custom_call.1']
    #allocation5 [shape = 's32[2]{0}', space=sflag, size = 0x8, scoped, tag = 'scoped memory for tpu_custom_call.1']
    #allocation6 [shape = 'u8[65536]{0}', space=vmem, size = 0x10000, scoped, tag = 'input window, operand 1, single buffered']
    #allocation7 [shape = 's32[1]{0}', space=sflag, size = 0x4, scoped, tag = 'scoped memory for tpu_custom_call.1']
    #allocation8 [shape = 'u8[294912]{0}', space=vmem, size = 0x48000, scoped, tag = 'input window, operand 3, single buffered']
    #allocation9 [shape = 'u8[65536]{0}', space=vmem, size = 0x10000, scoped, tag = 'input window, operand 5, single buffered']
    #allocation10 [shape = 's32[1]{0}', space=sflag, size = 0x4, scoped, tag = 'scoped memory for tpu_custom_call.1']
    #allocation11 [shape = 'u8[524288]{0}', space=vmem, size = 0x80000, scoped, tag = 'output window, operand 0']
    #allocation12 [shape = 'u8[2048]{0}', space=vmem, size = 0x800, scoped, tag = 'output window, operand 1']
    #allocation13 [shape = 's32[2]{0}', space=sflag, size = 0x8, scoped, tag = 'scoped memory for tpu_custom_call.1']
    %14 = vsyncpa [#allocation4], 0
    %s15 = scalar_lea.sflag [#allocation4], 1
    %16 = vsyncpa %s15, 0
    %17 = vsyncpa [#allocation7], 0
    %18 = vsyncpa [#allocation10], 0
    %19 = vsyncpa [#allocation5], 0
    %s20 = scalar_lea.sflag [#allocation5], 1
    %21 = vsyncpa %s20, 0
    %22 = vsyncpa [#allocation13], 0
    %s23 = scalar_lea.sflag [#allocation13], 1
    %24 = vsyncpa %s23, 0
    loop: start=0, step=1, limit=6
    $region2: #{tpu_custom_call.1} parent=1 // loop_pre_header
      _
    $region3: #{tpu_custom_call.1} parent=1 // loop_header
      %s26 = sphi 0, %s30
      %p27 = scmp.ge.s32.totalorder %s26, 6
      %s36 = sphi 0, %s38
      %s39 = sphi 0, %s36
      %s40 = sphi 0, %s39
      %s56 = sphi 0, %s40
      %s60 = sphi 0, %s60
      %s62 = sphi 0, %s60
      %s63 = sphi 0, %s62
      %s77 = sphi 0, %s63
      %s81 = sphi 0, %s81
      %s83 = sphi 0, %s81
      %s84 = sphi 0, %s83
      %s98 = sphi 0, %s84
      %s102 = sphi 0, %s102
      %s104 = sphi 0, %s102
      %s105 = sphi 0, %s104
      %s119 = sphi 0, %s105
      %s123 = sphi 0, %s123
      %s125 = sphi 0, %s123
      %s126 = sphi 0, %s125
      %s140 = sphi 0, %s126
      %s144 = sphi 0, %s144
      %s146 = sphi 0, %s144
      %s147 = sphi 0, %s146
      %s161 = sphi 0, %s147
      %s165 = sphi 0, %s165
      %s167 = sphi 0, %s165
      %s168 = sphi 0, %s167
      %s182 = sphi 0, %s168
      %s188 = sphi 0, %s190
      %s191 = sphi 0, %s188
      %s192 = sphi 0, %s191
      %s208 = sphi 0, %s192
      %s214 = sphi 0, %s216
      %s217 = sphi 0, %s214
      %s218 = sphi 0, %s217
      %s234 = sphi 0, %s218
    $region4: #{tpu_custom_call.1} parent=1 // loop_header_branch
      %29 = sbr.rel (%p27) target = $region8
    $region5: #{tpu_custom_call.1} parent=1 // loop_body
      %s31 = ssub.s32 %s26, 1
      %s32 = ssub.s32 %s26, 2
      %s33 = sadd.s32 %s26, 1
      %s34 = ssub.s32 %s26, %s33
      %p35 = scmp.eq.s32.totalorder %s34, 0
      %s37 = sadd.s32 %s36, 1
      %s38 = scalar_select %p35, %s36, %s37
      %p41 = pneg %p35
      %p42 = scmp.eq.s32.totalorder %s26, 3
      %p43 = por %p41, %p42
      %p44 = scmp.ne.s32.totalorder %s36, %s39
      %p45 = scmp.eq.s32.totalorder %s26, 0
      %p46 = por %p44, %p45
      %p47 = scmp.ne.s32.totalorder %s36, %s39
      %p48 = scmp.eq.s32.totalorder %s31, 3
      %p49 = por %p47, %p48
      %p50 = scmp.ne.s32.totalorder %s39, %s40
      %p51 = scmp.eq.s32.totalorder %s31, 0
      %p52 = por %p50, %p51
      %p53 = scmp.ne.s32.totalorder %s39, %s40
      %p54 = scmp.eq.s32.totalorder %s32, 3
      %p55 = por %p53, %p54
      %p57 = scmp.ne.s32.totalorder %s40, %s56
      %p58 = scmp.eq.s32.totalorder %s32, 0
      %p59 = por %p57, %p58
      %s61 = sadd.s32 %s60, 1
      %p64 = scmp.eq.s32.totalorder %s26, 3
      %p65 = scmp.ne.s32.totalorder %s60, %s62
      %p66 = scmp.eq.s32.totalorder %s26, 0
      %p67 = por %p65, %p66
      %p68 = scmp.ne.s32.totalorder %s60, %s62
      %p69 = scmp.eq.s32.totalorder %s31, 3
      %p70 = por %p68, %p69
      %p71 = scmp.ne.s32.totalorder %s62, %s63
      %p72 = scmp.eq.s32.totalorder %s31, 0
      %p73 = por %p71, %p72
      %p74 = scmp.ne.s32.totalorder %s62, %s63
      %p75 = scmp.eq.s32.totalorder %s32, 3
      %p76 = por %p74, %p75
      %p78 = scmp.ne.s32.totalorder %s63, %s77
      %p79 = scmp.eq.s32.totalorder %s32, 0
      %p80 = por %p78, %p79
      %s82 = sadd.s32 %s81, 1
      %p85 = scmp.eq.s32.totalorder %s26, 3
      %p86 = scmp.ne.s32.totalorder %s81, %s83
      %p87 = scmp.eq.s32.totalorder %s26, 0
      %p88 = por %p86, %p87
      %p89 = scmp.ne.s32.totalorder %s81, %s83
      %p90 = scmp.eq.s32.totalorder %s31, 3
      %p91 = por %p89, %p90
      %p92 = scmp.ne.s32.totalorder %s83, %s84
      %p93 = scmp.eq.s32.totalorder %s31, 0
      %p94 = por %p92, %p93
      %p95 = scmp.ne.s32.totalorder %s83, %s84
      %p96 = scmp.eq.s32.totalorder %s32, 3
      %p97 = por %p95, %p96
      %p99 = scmp.ne.s32.totalorder %s84, %s98
      %p100 = scmp.eq.s32.totalorder %s32, 0
      %p101 = por %p99, %p100
      %s103 = sadd.s32 %s102, 1
      %p106 = scmp.eq.s32.totalorder %s26, 3
      %p107 = scmp.ne.s32.totalorder %s102, %s104
      %p108 = scmp.eq.s32.totalorder %s26, 0
      %p109 = por %p107, %p108
      %p110 = scmp.ne.s32.totalorder %s102, %s104
      %p111 = scmp.eq.s32.totalorder %s31, 3
      %p112 = por %p110, %p111
      %p113 = scmp.ne.s32.totalorder %s104, %s105
      %p114 = scmp.eq.s32.totalorder %s31, 0
      %p115 = por %p113, %p114
      %p116 = scmp.ne.s32.totalorder %s104, %s105
      %p117 = scmp.eq.s32.totalorder %s32, 3
      %p118 = por %p116, %p117
      %p120 = scmp.ne.s32.totalorder %s105, %s119
      %p121 = scmp.eq.s32.totalorder %s32, 0
      %p122 = por %p120, %p121
      %s124 = sadd.s32 %s123, 1
      %p127 = scmp.eq.s32.totalorder %s26, 3
      %p128 = scmp.ne.s32.totalorder %s123, %s125
      %p129 = scmp.eq.s32.totalorder %s26, 0
      %p130 = por %p128, %p129
      %p131 = scmp.ne.s32.totalorder %s123, %s125
      %p132 = scmp.eq.s32.totalorder %s31, 3
      %p133 = por %p131, %p132
      %p134 = scmp.ne.s32.totalorder %s125, %s126
      %p135 = scmp.eq.s32.totalorder %s31, 0
      %p136 = por %p134, %p135
      %p137 = scmp.ne.s32.totalorder %s125, %s126
      %p138 = scmp.eq.s32.totalorder %s32, 3
      %p139 = por %p137, %p138
      %p141 = scmp.ne.s32.totalorder %s126, %s140
      %p142 = scmp.eq.s32.totalorder %s32, 0
      %p143 = por %p141, %p142
      %s145 = sadd.s32 %s144, 1
      %p148 = scmp.eq.s32.totalorder %s26, 3
      %p149 = scmp.ne.s32.totalorder %s144, %s146
      %p150 = scmp.eq.s32.totalorder %s26, 0
      %p151 = por %p149, %p150
      %p152 = scmp.ne.s32.totalorder %s144, %s146
      %p153 = scmp.eq.s32.totalorder %s31, 3
      %p154 = por %p152, %p153
      %p155 = scmp.ne.s32.totalorder %s146, %s147
      %p156 = scmp.eq.s32.totalorder %s31, 0
      %p157 = por %p155, %p156
      %p158 = scmp.ne.s32.totalorder %s146, %s147
      %p159 = scmp.eq.s32.totalorder %s32, 3
      %p160 = por %p158, %p159
      %p162 = scmp.ne.s32.totalorder %s147, %s161
      %p163 = scmp.eq.s32.totalorder %s32, 0
      %p164 = por %p162, %p163
      %s166 = sadd.s32 %s165, 1
      %p169 = scmp.eq.s32.totalorder %s26, 3
      %p170 = scmp.ne.s32.totalorder %s165, %s167
      %p171 = scmp.eq.s32.totalorder %s26, 0
      %p172 = por %p170, %p171
      %p173 = scmp.ne.s32.totalorder %s165, %s167
      %p174 = scmp.eq.s32.totalorder %s31, 3
      %p175 = por %p173, %p174
      %p176 = scmp.ne.s32.totalorder %s167, %s168
      %p177 = scmp.eq.s32.totalorder %s31, 0
      %p178 = por %p176, %p177
      %p179 = scmp.ne.s32.totalorder %s167, %s168
      %p180 = scmp.eq.s32.totalorder %s32, 3
      %p181 = por %p179, %p180
      %p183 = scmp.ne.s32.totalorder %s168, %s182
      %p184 = scmp.eq.s32.totalorder %s32, 0
      %p185 = por %p183, %p184
      %s186 = ssub.s32 %s26, %s33
      %p187 = scmp.eq.s32.totalorder %s186, 0
      %s189 = sadd.s32 %s188, 1
      %s190 = scalar_select %p187, %s188, %s189
      %p193 = pneg %p187
      %p194 = scmp.eq.s32.totalorder %s26, 3
      %p195 = por %p193, %p194
      %p196 = scmp.ne.s32.totalorder %s188, %s191
      %p197 = scmp.eq.s32.totalorder %s26, 0
      %p198 = por %p196, %p197
      %p199 = scmp.ne.s32.totalorder %s188, %s191
      %p200 = scmp.eq.s32.totalorder %s31, 3
      %p201 = por %p199, %p200
      %p202 = scmp.ne.s32.totalorder %s191, %s192
      %p203 = scmp.eq.s32.totalorder %s31, 0
      %p204 = por %p202, %p203
      %p205 = scmp.ne.s32.totalorder %s191, %s192
      %p206 = scmp.eq.s32.totalorder %s32, 3
      %p207 = por %p205, %p206
      %p209 = scmp.ne.s32.totalorder %s192, %s208
      %p210 = scmp.eq.s32.totalorder %s32, 0
      %p211 = por %p209, %p210
      %s212 = ssub.s32 %s26, %s33
      %p213 = scmp.eq.s32.totalorder %s212, 0
      %s215 = sadd.s32 %s214, 1
      %s216 = scalar_select %p213, %s214, %s215
      %p219 = pneg %p213
      %p220 = scmp.eq.s32.totalorder %s26, 3
      %p221 = por %p219, %p220
      %p222 = scmp.ne.s32.totalorder %s214, %s217
      %p223 = scmp.eq.s32.totalorder %s26, 0
      %p224 = por %p222, %p223
      %p225 = scmp.ne.s32.totalorder %s214, %s217
      %p226 = scmp.eq.s32.totalorder %s31, 3
      %p227 = por %p225, %p226
      %p228 = scmp.ne.s32.totalorder %s217, %s218
      %p229 = scmp.eq.s32.totalorder %s31, 0
      %p230 = por %p228, %p229
      %p231 = scmp.ne.s32.totalorder %s217, %s218
      %p232 = scmp.eq.s32.totalorder %s32, 3
      %p233 = por %p231, %p232
      %p235 = scmp.ne.s32.totalorder %s218, %s234
      %p236 = scmp.eq.s32.totalorder %s32, 0
      %p237 = por %p235, %p236
      %p238 = scmp.le.s32.totalorder 1, %s26
      %p239 = scmp.lt.s32.totalorder %s26, 5
      %p240 = pnand %p238, %p239
      %p241 = pneg %p240
      // Predicated region
      $region9: #{tpu_custom_call.1} parent=5 // pred_check
        _
      $region10: #{tpu_custom_call.1} parent=5 // pred_check_branch
        %243 = sbr.rel (%p240) target = $region12
      $region11: #{tpu_custom_call.1} parent=5 // pred_region
        %s244 = ssub.s32 %s26, 1
        // Predicated region
        $region13: #{tpu_custom_call.1} parent=11 // pred_check
          %p245 = pneg %p73
        $region14: #{tpu_custom_call.1} parent=11 // pred_check_branch
          %247 = sbr.rel (%p245) target = $region16
        $region15: #{tpu_custom_call.1} parent=11 // pred_region
          %s249 = ssub.s32 2048, 2048
          %250 = vsyncadd [#allocation7], %s249
          %s251 = sshll.u32 [#allocation6], 4
          %s252 = int_to_ptr.vmem [resolvable:$true] %s251
          %257 = dma.hbm_to_vmem [thread:$0]  %s1, 2048, %s252, [#allocation7], 64, 64, 4
        $region16: #{tpu_custom_call.1} parent=11 // pred_fallthru
          _
        // Predicated region
        $region17: #{tpu_custom_call.1} parent=11 // pred_check
          %p258 = pneg %p94
        $region18: #{tpu_custom_call.1} parent=11 // pred_check_branch
          %260 = sbr.rel (%p258) target = $region20
        $region19: #{tpu_custom_call.1} parent=11 // pred_region
          _
        $region20: #{tpu_custom_call.1} parent=11 // pred_fallthru
          _
        // Predicated region
        $region21: #{tpu_custom_call.1} parent=11 // pred_check
          %p261 = pneg %p115
        $region22: #{tpu_custom_call.1} parent=11 // pred_check_branch
          %263 = sbr.rel (%p261) target = $region24
        $region23: #{tpu_custom_call.1} parent=11 // pred_region
          %s265 = ssub.s32 9216, 9216
          %266 = vsyncadd [#allocation7], %s265
          %s267 = sshll.u32 [#allocation8], 4
          %s268 = int_to_ptr.vmem [resolvable:$true] %s267
          %273 = dma.hbm_to_vmem [thread:$0]  %s3, 9216, %s268, [#allocation7], 64, 64, 4
        $region24: #{tpu_custom_call.1} parent=11 // pred_fallthru
          _
        // Predicated region
        $region25: #{tpu_custom_call.1} parent=11 // pred_check
          %p274 = pneg %p136
        $region26: #{tpu_custom_call.1} parent=11 // pred_check_branch
          %276 = sbr.rel (%p274) target = $region28
        $region27: #{tpu_custom_call.1} parent=11 // pred_region
          _
        $region28: #{tpu_custom_call.1} parent=11 // pred_fallthru
          _
        // Predicated region
        $region29: #{tpu_custom_call.1} parent=11 // pred_check
          %p277 = pneg %p157
        $region30: #{tpu_custom_call.1} parent=11 // pred_check_branch
          %279 = sbr.rel (%p277) target = $region32
        $region31: #{tpu_custom_call.1} parent=11 // pred_region
          %s281 = ssub.s32 2048, 2048
          %282 = vsyncadd [#allocation10], %s281
          %s283 = sshll.u32 [#allocation9], 4
          %s284 = int_to_ptr.vmem [resolvable:$true] %s283
          %289 = dma.hbm_to_vmem [thread:$0]  %s5, 2048, %s284, [#allocation10], 128, 128, 8
        $region32: #{tpu_custom_call.1} parent=11 // pred_fallthru
          _
        // Predicated region
        $region33: #{tpu_custom_call.1} parent=11 // pred_check
          %p290 = pneg %p178
        $region34: #{tpu_custom_call.1} parent=11 // pred_check_branch
          %292 = sbr.rel (%p290) target = $region36
        $region35: #{tpu_custom_call.1} parent=11 // pred_region
          _
        $region36: #{tpu_custom_call.1} parent=11 // pred_fallthru
          _
      $region12: #{tpu_custom_call.1} parent=5 // pred_fallthru
        _
      %p293 = scmp.lt.s32.totalorder %s26, 4
      // Predicated region
      $region37: #{tpu_custom_call.1} parent=5 // pred_check
        %p294 = pneg %p293
      $region38: #{tpu_custom_call.1} parent=5 // pred_check_branch
        %296 = sbr.rel (%p294) target = $region40
      $region39: #{tpu_custom_call.1} parent=5 // pred_region
        // Predicated region
        $region41: #{tpu_custom_call.1} parent=39 // pred_check
          %p297 = pneg %p46
        $region42: #{tpu_custom_call.1} parent=39 // pred_check_branch
          %299 = sbr.rel (%p297) target = $region44
        $region43: #{tpu_custom_call.1} parent=39 // pred_region
          %s300 = sand.u32 %s36, 1
          %s301 = scalar_lea.sflag [#allocation4], %s300
          %s302 = sand.u32 %s36, 1
          %s303 = smul.addr %s302, 512
          %s304 = scalar_lea.vmem [#allocation3], %s303
          %s306 = ssub.s32 8192, 8192
          %307 = vsyncadd %s301, %s306
          %s308 = smul.addr %s26, 64
          %s309 = smul.addr %s308, 128
          %s310 = scalar_lea.hbm %s0, %s309
          %s311 = sshll.u32 %s304, 4
          %s312 = int_to_ptr.vmem [resolvable:$true] %s311
          %317 = dma.hbm_to_vmem [thread:$0]  %s310, 8192, %s312, %s301, 256, 256, 16
        $region44: #{tpu_custom_call.1} parent=39 // pred_fallthru
          _
      $region40: #{tpu_custom_call.1} parent=5 // pred_fallthru
        _
      %p318 = scmp.le.s32.totalorder 1, %s26
      %p319 = scmp.lt.s32.totalorder %s26, 5
      %p320 = pnand %p318, %p319
      %p321 = pneg %p320
      // Predicated region
      $region45: #{tpu_custom_call.1} parent=5 // pred_check
        _
      $region46: #{tpu_custom_call.1} parent=5 // pred_check_branch
        %323 = sbr.rel (%p320) target = $region48
      $region47: #{tpu_custom_call.1} parent=5 // pred_region
        %s324 = ssub.s32 %s26, 1
        %s325 = sand.u32 %s39, 1
        %s326 = scalar_lea.sflag [#allocation4], %s325
        %s327 = sand.u32 %s39, 1
        %s328 = smul.addr %s327, 512
        %s329 = scalar_lea.vmem [#allocation3], %s328
        // Predicated region
        $region49: #{tpu_custom_call.1} parent=47 // pred_check
          %p330 = pneg %p52
        $region50: #{tpu_custom_call.1} parent=47 // pred_check_branch
          %332 = sbr.rel (%p330) target = $region52
        $region51: #{tpu_custom_call.1} parent=47 // pred_region
          %333 = dma.done %s326, 8192
        $region52: #{tpu_custom_call.1} parent=47 // pred_fallthru
          _
        // Predicated region
        $region53: #{tpu_custom_call.1} parent=47 // pred_check
          %p334 = pneg %p73
        $region54: #{tpu_custom_call.1} parent=47 // pred_check_branch
          %336 = sbr.rel (%p334) target = $region56
        $region55: #{tpu_custom_call.1} parent=47 // pred_region
          %337 = dma.done [#allocation7], 2048
        $region56: #{tpu_custom_call.1} parent=47 // pred_fallthru
          _
        // Predicated region
        $region57: #{tpu_custom_call.1} parent=47 // pred_check
          %p338 = pneg %p115
        $region58: #{tpu_custom_call.1} parent=47 // pred_check_branch
          %340 = sbr.rel (%p338) target = $region60
        $region59: #{tpu_custom_call.1} parent=47 // pred_region
          %341 = dma.done [#allocation7], 9216
        $region60: #{tpu_custom_call.1} parent=47 // pred_fallthru
          _
        // Predicated region
        $region61: #{tpu_custom_call.1} parent=47 // pred_check
          %p342 = pneg %p157
        $region62: #{tpu_custom_call.1} parent=47 // pred_check_branch
          %344 = sbr.rel (%p342) target = $region64
        $region63: #{tpu_custom_call.1} parent=47 // pred_region
          %345 = dma.done [#allocation10], 2048
        $region64: #{tpu_custom_call.1} parent=47 // pred_fallthru
          _
        %s346 = sand.u32 %s39, 1
        %s347 = scalar_lea.sflag [#allocation4], %s346
        %s348 = sand.u32 %s39, 1
        %s349 = smul.addr %s348, 512
        %s350 = scalar_lea.vmem [#allocation3], %s349
        %p351 = pneg %p52
        %p352 = pneg %p49
        %p353 = pneg %p73
        %p354 = pneg %p70
        %p355 = pneg %p94
        %p356 = pneg %p91
        %p357 = pneg %p115
        %p358 = pneg %p112
        %p359 = pneg %p136
        %p360 = pneg %p133
        %p361 = pneg %p157
        %p362 = pneg %p154
        %p363 = pneg %p178
        %p364 = pneg %p175
        %p365 = pneg %p204
        %p366 = pneg %p201
        %s367 = sand.u32 %s191, 1
        %s368 = scalar_lea.sflag [#allocation5], %s367
        %s369 = sand.u32 %s191, 1
        %s370 = smul.addr %s369, 512
        %s371 = scalar_lea.vmem [#allocation11], %s370
        %p372 = pneg %p230
        %p373 = pneg %p227
        %s374 = sand.u32 %s217, 1
        %s375 = scalar_lea.sflag [#allocation13], %s374
        %s376 = sand.u32 %s217, 1
        %s377 = smul.addr %s376, 2
        %s378 = scalar_lea.vmem [#allocation12], %s377
        %v380 = vld [vmem:[%s329] sm:$0xff]
        %v381 = vld [vmem:[%s329 + $0x8] sm:$0xff]
        %v382 = vld [vmem:[%s329 + $0x10] sm:$0xff]
        %v383 = vld [vmem:[%s329 + $0x18] sm:$0xff]
        %v384 = vld [vmem:[%s329 + $0x20] sm:$0xff]
        %v385 = vld [vmem:[%s329 + $0x28] sm:$0xff]
        %v386 = vld [vmem:[%s329 + $0x30] sm:$0xff]
        %v387 = vld [vmem:[%s329 + $0x38] sm:$0xff]
        %v388 = vld [vmem:[%s329 + $0x40] sm:$0xff]
        %v389 = vld [vmem:[%s329 + $0x48] sm:$0xff]
        %v390 = vld [vmem:[%s329 + $0x50] sm:$0xff]
        %v391 = vld [vmem:[%s329 + $0x58] sm:$0xff]
        %v392 = vld [vmem:[%s329 + $0x60] sm:$0xff]
        %v393 = vld [vmem:[%s329 + $0x68] sm:$0xff]
        %v394 = vld [vmem:[%s329 + $0x70] sm:$0xff]
        %v395 = vld [vmem:[%s329 + $0x78] sm:$0xff]
        %v396 = vld [vmem:[%s329 + $0x80] sm:$0xff]
        %v397 = vld [vmem:[%s329 + $0x88] sm:$0xff]
        %v398 = vld [vmem:[%s329 + $0x90] sm:$0xff]
        %v399 = vld [vmem:[%s329 + $0x98] sm:$0xff]
        %v400 = vld [vmem:[%s329 + $0xa0] sm:$0xff]
        %v401 = vld [vmem:[%s329 + $0xa8] sm:$0xff]
        %v402 = vld [vmem:[%s329 + $0xb0] sm:$0xff]
        %v403 = vld [vmem:[%s329 + $0xb8] sm:$0xff]
        %v404 = vld [vmem:[%s329 + $0xc0] sm:$0xff]
        %v405 = vld [vmem:[%s329 + $0xc8] sm:$0xff]
        %v406 = vld [vmem:[%s329 + $0xd0] sm:$0xff]
        %v407 = vld [vmem:[%s329 + $0xd8] sm:$0xff]
        %v408 = vld [vmem:[%s329 + $0xe0] sm:$0xff]
        %v409 = vld [vmem:[%s329 + $0xe8] sm:$0xff]
        %v410 = vld [vmem:[%s329 + $0xf0] sm:$0xff]
        %v411 = vld [vmem:[%s329 + $0xf8] sm:$0xff]
        %v412 = vld [vmem:[%s329 + $0x100] sm:$0xff]
        %v413 = vld [vmem:[%s329 + $0x108] sm:$0xff]
        %v414 = vld [vmem:[%s329 + $0x110] sm:$0xff]
        %v415 = vld [vmem:[%s329 + $0x118] sm:$0xff]
        %v416 = vld [vmem:[%s329 + $0x120] sm:$0xff]
        %v417 = vld [vmem:[%s329 + $0x128] sm:$0xff]
        %v418 = vld [vmem:[%s329 + $0x130] sm:$0xff]
        %v419 = vld [vmem:[%s329 + $0x138] sm:$0xff]
        %v420 = vld [vmem:[%s329 + $0x140] sm:$0xff]
        %v421 = vld [vmem:[%s329 + $0x148] sm:$0xff]
        %v422 = vld [vmem:[%s329 + $0x150] sm:$0xff]
        %v423 = vld [vmem:[%s329 + $0x158] sm:$0xff]
        %v424 = vld [vmem:[%s329 + $0x160] sm:$0xff]
        %v425 = vld [vmem:[%s329 + $0x168] sm:$0xff]
        %v426 = vld [vmem:[%s329 + $0x170] sm:$0xff]
        %v427 = vld [vmem:[%s329 + $0x178] sm:$0xff]
        %v428 = vld [vmem:[%s329 + $0x180] sm:$0xff]
        %v429 = vld [vmem:[%s329 + $0x188] sm:$0xff]
        %v430 = vld [vmem:[%s329 + $0x190] sm:$0xff]
        %v431 = vld [vmem:[%s329 + $0x198] sm:$0xff]
        %v432 = vld [vmem:[%s329 + $0x1a0] sm:$0xff]
        %v433 = vld [vmem:[%s329 + $0x1a8] sm:$0xff]
        %v434 = vld [vmem:[%s329 + $0x1b0] sm:$0xff]
        %v435 = vld [vmem:[%s329 + $0x1b8] sm:$0xff]
        %v436 = vld [vmem:[%s329 + $0x1c0] sm:$0xff]
        %v437 = vld [vmem:[%s329 + $0x1c8] sm:$0xff]
        %v438 = vld [vmem:[%s329 + $0x1d0] sm:$0xff]
        %v439 = vld [vmem:[%s329 + $0x1d8] sm:$0xff]
        %v440 = vld [vmem:[%s329 + $0x1e0] sm:$0xff]
        %v441 = vld [vmem:[%s329 + $0x1e8] sm:$0xff]
        %v442 = vld [vmem:[%s329 + $0x1f0] sm:$0xff]
        %v443 = vld [vmem:[%s329 + $0x1f8] sm:$0xff]
        %v444 = vpack.c.bf16 %v382, %v380
        %v445 = vpack.c.bf16 %v383, %v381
        %v446 = vpack.c.bf16 %v386, %v384
        %v447 = vpack.c.bf16 %v387, %v385
        %v448 = vpack.c.bf16 %v390, %v388
        %v449 = vpack.c.bf16 %v391, %v389
        %v450 = vpack.c.bf16 %v394, %v392
        %v451 = vpack.c.bf16 %v395, %v393
        %v452 = vpack.c.bf16 %v398, %v396
        %v453 = vpack.c.bf16 %v399, %v397
        %v454 = vpack.c.bf16 %v402, %v400
        %v455 = vpack.c.bf16 %v403, %v401
        %v456 = vpack.c.bf16 %v406, %v404
        %v457 = vpack.c.bf16 %v407, %v405
        %v458 = vpack.c.bf16 %v410, %v408
        %v459 = vpack.c.bf16 %v411, %v409
        %v460 = vpack.c.bf16 %v414, %v412
        %v461 = vpack.c.bf16 %v415, %v413
        %v462 = vpack.c.bf16 %v418, %v416
        %v463 = vpack.c.bf16 %v419, %v417
        %v464 = vpack.c.bf16 %v422, %v420
        %v465 = vpack.c.bf16 %v423, %v421
        %v466 = vpack.c.bf16 %v426, %v424
        %v467 = vpack.c.bf16 %v427, %v425
        %v468 = vpack.c.bf16 %v430, %v428
        %v469 = vpack.c.bf16 %v431, %v429
        %v470 = vpack.c.bf16 %v434, %v432
        %v471 = vpack.c.bf16 %v435, %v433
        %v472 = vpack.c.bf16 %v438, %v436
        %v473 = vpack.c.bf16 %v439, %v437
        %v474 = vpack.c.bf16 %v442, %v440
        %v475 = vpack.c.bf16 %v443, %v441
        %v476 = vld [vmem:[#allocation6] sm:$0xf]
        %v477 = vld [vmem:[#allocation6 + $0x4] sm:$0xf]
        %v478 = vld [vmem:[#allocation6 + $0x8] sm:$0xf]
        %v479 = vld [vmem:[#allocation6 + $0xc] sm:$0xf]
        %v480 = vld [vmem:[#allocation6 + $0x10] sm:$0xf]
        %v481 = vld [vmem:[#allocation6 + $0x14] sm:$0xf]
        %v482 = vld [vmem:[#allocation6 + $0x18] sm:$0xf]
        %v483 = vld [vmem:[#allocation6 + $0x1c] sm:$0xf]
        %v484 = vld [vmem:[#allocation6 + $0x20] sm:$0xf]
        %v485 = vld [vmem:[#allocation6 + $0x24] sm:$0xf]
        %v486 = vld [vmem:[#allocation6 + $0x28] sm:$0xf]
        %v487 = vld [vmem:[#allocation6 + $0x2c] sm:$0xf]
        %v488 = vld [vmem:[#allocation6 + $0x30] sm:$0xf]
        %v489 = vld [vmem:[#allocation6 + $0x34] sm:$0xf]
        %v490 = vld [vmem:[#allocation6 + $0x38] sm:$0xf]
        %v491 = vld [vmem:[#allocation6 + $0x3c] sm:$0xf]
        %v492 = vld [vmem:[#allocation6 + $0x40] sm:$0xf]
        %v493 = vld [vmem:[#allocation6 + $0x44] sm:$0xf]
        %v494 = vld [vmem:[#allocation6 + $0x48] sm:$0xf]
        %v495 = vld [vmem:[#allocation6 + $0x4c] sm:$0xf]
        %v496 = vld [vmem:[#allocation6 + $0x50] sm:$0xf]
        %v497 = vld [vmem:[#allocation6 + $0x54] sm:$0xf]
        %v498 = vld [vmem:[#allocation6 + $0x58] sm:$0xf]
        %v499 = vld [vmem:[#allocation6 + $0x5c] sm:$0xf]
        %v500 = vld [vmem:[#allocation6 + $0x60] sm:$0xf]
        %v501 = vld [vmem:[#allocation6 + $0x64] sm:$0xf]
        %v502 = vld [vmem:[#allocation6 + $0x68] sm:$0xf]
        %v503 = vld [vmem:[#allocation6 + $0x6c] sm:$0xf]
        %v504 = vld [vmem:[#allocation6 + $0x70] sm:$0xf]
        %v505 = vld [vmem:[#allocation6 + $0x74] sm:$0xf]
        %v506 = vld [vmem:[#allocation6 + $0x78] sm:$0xf]
        %v507 = vld [vmem:[#allocation6 + $0x7c] sm:$0xf]
        %v508 = vld [vmem:[%s2] sm:$0x1]
        %v510 = vlaneseq
        %v511 = vshrl.u32 %v510, 7
        %v512 = vsub.s32 0, %v511
        %v513 = vrot.slane %v508, %v512
        %v547 = vunpack.c.l.b16 %v476
        %v548 = vunpack.c.l.b16 %v477
        %v549 = vunpack.c.l.b16 %v478
        %v550 = vunpack.c.l.b16 %v479
        %v551 = vunpack.c.l.b16 %v480
        %v552 = vunpack.c.l.b16 %v481
        %v553 = vunpack.c.l.b16 %v482
        %v554 = vunpack.c.l.b16 %v483
        %v555 = vunpack.c.l.b16 %v484
        %v556 = vunpack.c.l.b16 %v485
        %v557 = vunpack.c.l.b16 %v486
        %v558 = vunpack.c.l.b16 %v487
        %v559 = vunpack.c.l.b16 %v488
        %v560 = vunpack.c.l.b16 %v489
        %v561 = vunpack.c.l.b16 %v490
        %v562 = vunpack.c.l.b16 %v491
        %v563 = vunpack.c.l.b16 %v492
        %v564 = vunpack.c.l.b16 %v493
        %v565 = vunpack.c.l.b16 %v494
        %v566 = vunpack.c.l.b16 %v495
        %v567 = vunpack.c.l.b16 %v496
        %v568 = vunpack.c.l.b16 %v497
        %v569 = vunpack.c.l.b16 %v498
        %v570 = vunpack.c.l.b16 %v499
        %v571 = vunpack.c.l.b16 %v500
        %v572 = vunpack.c.l.b16 %v501
        %v573 = vunpack.c.l.b16 %v502
        %v574 = vunpack.c.l.b16 %v503
        %v575 = vunpack.c.l.b16 %v504
        %v576 = vunpack.c.l.b16 %v505
        %v577 = vunpack.c.l.b16 %v506
        %v578 = vunpack.c.l.b16 %v507
        %v579 = vpack.c.b16 %v548, %v547
        %v580 = vpack.c.b16 %v550, %v549
        %v581 = vpack.c.b16 %v552, %v551
        %v582 = vpack.c.b16 %v554, %v553
        %v583 = vpack.c.b16 %v556, %v555
        %v584 = vpack.c.b16 %v558, %v557
        %v585 = vpack.c.b16 %v560, %v559
        %v586 = vpack.c.b16 %v562, %v561
        %v587 = vpack.c.b16 %v564, %v563
        %v588 = vpack.c.b16 %v566, %v565
        %v589 = vpack.c.b16 %v568, %v567
        %v590 = vpack.c.b16 %v570, %v569
        %v591 = vpack.c.b16 %v572, %v571
        %v592 = vpack.c.b16 %v574, %v573
        %v593 = vpack.c.b16 %v576, %v575
        %v594 = vpack.c.b16 %v578, %v577
        %611 = vmatprep.subr.bf16.mxu0 0
        %612 = vmatpush1.bf16.msra.mxu0 %v579
        %613 = vmatprep.subr.bf16.mxu0 0
        %614 = vmatpush1.bf16.msra.mxu0 %v580
        %615 = vmatprep.subr.bf16.mxu0 0
        %616 = vmatpush1.bf16.msra.mxu0 %v581
        %617 = vmatprep.subr.bf16.mxu0 0
        %618 = vmatpush1.bf16.msra.mxu0 %v582
        %619 = vmatprep.subr.bf16.mxu0 0
        %620 = vmatpush1.bf16.msra.mxu0 %v583
        %621 = vmatprep.subr.bf16.mxu0 0
        %622 = vmatpush1.bf16.msra.mxu0 %v584
        %623 = vmatprep.subr.bf16.mxu0 0
        %624 = vmatpush1.bf16.msra.mxu0 %v585
        %625 = vmatprep.subr.bf16.mxu0 0
        %626 = vmatpush1.bf16.msra.mxu0 %v586
        %627 = vmatprep.subr.bf16.mxu0 0
        %628 = vmatpush1.bf16.msra.mxu0 %v587
        %629 = vmatprep.subr.bf16.mxu0 0
        %630 = vmatpush1.bf16.msra.mxu0 %v588
        %631 = vmatprep.subr.bf16.mxu0 0
        %632 = vmatpush1.bf16.msra.mxu0 %v589
        %633 = vmatprep.subr.bf16.mxu0 0
        %634 = vmatpush1.bf16.msra.mxu0 %v590
        %635 = vmatprep.subr.bf16.mxu0 0
        %636 = vmatpush1.bf16.msra.mxu0 %v591
        %637 = vmatprep.subr.bf16.mxu0 0
        %638 = vmatpush1.bf16.msra.mxu0 %v592
        %639 = vmatprep.subr.bf16.mxu0 0
        %640 = vmatpush1.bf16.msra.mxu0 %v593
        %641 = vmatprep.subr.bf16.mxu0 0
        %642 = vmatpush1.bf16.msra.mxu0 %v594
        %643 = vmatprep.mubr.bf16.mxu0 %v445
        %644 = vmatmul.mubr.bf16.gmra.mrb[0].mxu0 %v444
        %v645 = vpop.f32.mrb[0].mxu0
        %v646 = vadd.f32 %v513, %v645
        %v647 = vpop.f32.mrb[0].mxu0
        %v648 = vpop.f32.mrb[0].mxu0
        %v649 = vadd.f32 %v513, %v648
        %v650 = vpop.f32.mrb[0].mxu0
        %651 = vmatprep.mubr.bf16.mxu0 %v447
        %652 = vmatmul.mubr.bf16.gmra.mrb[0].mxu0 %v446
        %v653 = vpop.f32.mrb[0].mxu0
        %v654 = vadd.f32 %v513, %v653
        %v655 = vpop.f32.mrb[0].mxu0
        %v656 = vpop.f32.mrb[0].mxu0
        %v657 = vadd.f32 %v513, %v656
        %v658 = vpop.f32.mrb[0].mxu0
        %659 = vmatprep.mubr.bf16.mxu0 %v449
        %660 = vmatmul.mubr.bf16.gmra.mrb[0].mxu0 %v448
        %v661 = vpop.f32.mrb[0].mxu0
        %v662 = vadd.f32 %v513, %v661
        %v663 = vpop.f32.mrb[0].mxu0
        %v664 = vpop.f32.mrb[0].mxu0
        %v665 = vadd.f32 %v513, %v664
        %v666 = vpop.f32.mrb[0].mxu0
        %667 = vmatprep.mubr.bf16.mxu0 %v451
        %668 = vmatmul.mubr.bf16.gmra.mrb[0].mxu0 %v450
        %v669 = vpop.f32.mrb[0].mxu0
        %v670 = vadd.f32 %v513, %v669
        %v671 = vpop.f32.mrb[0].mxu0
        %v672 = vpop.f32.mrb[0].mxu0
        %v673 = vadd.f32 %v513, %v672
        %v674 = vpop.f32.mrb[0].mxu0
        %675 = vmatprep.mubr.bf16.mxu0 %v453
        %676 = vmatmul.mubr.bf16.gmra.mrb[0].mxu0 %v452
        %v677 = vpop.f32.mrb[0].mxu0
        %v678 = vadd.f32 %v513, %v677
        %v679 = vpop.f32.mrb[0].mxu0
        %v680 = vpop.f32.mrb[0].mxu0
        %v681 = vadd.f32 %v513, %v680
        %v682 = vpop.f32.mrb[0].mxu0
        %683 = vmatprep.mubr.bf16.mxu0 %v455
        %684 = vmatmul.mubr.bf16.gmra.mrb[0].mxu0 %v454
        %v685 = vpop.f32.mrb[0].mxu0
        %v686 = vadd.f32 %v513, %v685
        %v687 = vpop.f32.mrb[0].mxu0
        %v688 = vpop.f32.mrb[0].mxu0
        %v689 = vadd.f32 %v513, %v688
        %v690 = vpop.f32.mrb[0].mxu0
        %691 = vmatprep.mubr.bf16.mxu0 %v457
        %692 = vmatmul.mubr.bf16.gmra.mrb[0].mxu0 %v456
        %v693 = vpop.f32.mrb[0].mxu0
        %v694 = vadd.f32 %v513, %v693
        %v695 = vpop.f32.mrb[0].mxu0
        %v696 = vpop.f32.mrb[0].mxu0
        %v697 = vadd.f32 %v513, %v696
        %v698 = vpop.f32.mrb[0].mxu0
        %699 = vmatprep.mubr.bf16.mxu0 %v459
        %700 = vmatmul.mubr.bf16.gmra.mrb[0].mxu0 %v458
        %v701 = vpop.f32.mrb[0].mxu0
        %v702 = vadd.f32 %v513, %v701
        %v703 = vpop.f32.mrb[0].mxu0
        %v704 = vpop.f32.mrb[0].mxu0
        %v705 = vadd.f32 %v513, %v704
        %v706 = vpop.f32.mrb[0].mxu0
        %707 = vmatprep.mubr.bf16.mxu0 %v461
        %708 = vmatmul.mubr.bf16.gmra.mrb[0].mxu0 %v460
        %v709 = vpop.f32.mrb[0].mxu0
        %v710 = vadd.f32 %v513, %v709
        %v711 = vpop.f32.mrb[0].mxu0
        %v712 = vpop.f32.mrb[0].mxu0
        %v713 = vadd.f32 %v513, %v712
        %v714 = vpop.f32.mrb[0].mxu0
        %715 = vmatprep.mubr.bf16.mxu0 %v463
        %716 = vmatmul.mubr.bf16.gmra.mrb[0].mxu0 %v462
        %v717 = vpop.f32.mrb[0].mxu0
        %v718 = vadd.f32 %v513, %v717
        %v719 = vpop.f32.mrb[0].mxu0
        %v720 = vpop.f32.mrb[0].mxu0
        %v721 = vadd.f32 %v513, %v720
        %v722 = vpop.f32.mrb[0].mxu0
        %723 = vmatprep.mubr.bf16.mxu0 %v465
        %724 = vmatmul.mubr.bf16.gmra.mrb[0].mxu0 %v464
        %v725 = vpop.f32.mrb[0].mxu0
        %v726 = vadd.f32 %v513, %v725
        %v727 = vpop.f32.mrb[0].mxu0
        %v728 = vpop.f32.mrb[0].mxu0
        %v729 = vadd.f32 %v513, %v728
        %v730 = vpop.f32.mrb[0].mxu0
        %731 = vmatprep.mubr.bf16.mxu0 %v467
        %732 = vmatmul.mubr.bf16.gmra.mrb[0].mxu0 %v466
        %v733 = vpop.f32.mrb[0].mxu0
        %v734 = vadd.f32 %v513, %v733
        %v735 = vpop.f32.mrb[0].mxu0
        %v736 = vpop.f32.mrb[0].mxu0
        %v737 = vadd.f32 %v513, %v736
        %v738 = vpop.f32.mrb[0].mxu0
        %739 = vmatprep.mubr.bf16.mxu0 %v469
        %740 = vmatmul.mubr.bf16.gmra.mrb[0].mxu0 %v468
        %v741 = vpop.f32.mrb[0].mxu0
        %v742 = vadd.f32 %v513, %v741
        %v743 = vpop.f32.mrb[0].mxu0
        %v744 = vpop.f32.mrb[0].mxu0
        %v745 = vadd.f32 %v513, %v744
        %v746 = vpop.f32.mrb[0].mxu0
        %747 = vmatprep.mubr.bf16.mxu0 %v471
        %748 = vmatmul.mubr.bf16.gmra.mrb[0].mxu0 %v470
        %v749 = vpop.f32.mrb[0].mxu0
        %v750 = vadd.f32 %v513, %v749
        %v751 = vpop.f32.mrb[0].mxu0
        %v752 = vpop.f32.mrb[0].mxu0
        %v753 = vadd.f32 %v513, %v752
        %v754 = vpop.f32.mrb[0].mxu0
        %755 = vmatprep.mubr.bf16.mxu0 %v473
        %756 = vmatmul.mubr.bf16.gmra.mrb[0].mxu0 %v472
        %v757 = vpop.f32.mrb[0].mxu0
        %v758 = vadd.f32 %v513, %v757
        %v759 = vpop.f32.mrb[0].mxu0
        %v760 = vpop.f32.mrb[0].mxu0
        %v761 = vadd.f32 %v513, %v760
        %v762 = vpop.f32.mrb[0].mxu0
        %763 = vmatprep.mubr.bf16.mxu0 %v475
        %764 = vmatmul.mubr.bf16.gmra.mrb[0].mxu0 %v474
        %v765 = vpop.f32.mrb[0].mxu0
        %v766 = vadd.f32 %v513, %v765
        %v767 = vpop.f32.mrb[0].mxu0
        %v768 = vpop.f32.mrb[0].mxu0
        %v769 = vadd.f32 %v513, %v768
        %v770 = vpop.f32.mrb[0].mxu0
        %771 = vdwg.mxu0
        %v772 = vmax.f32 %v646, 0.0
        %v773 = vmax.f32 %v649, 0.0
        %v774 = vmax.f32 %v654, 0.0
        %v775 = vmax.f32 %v657, 0.0
        %v776 = vmax.f32 %v662, 0.0
        %v777 = vmax.f32 %v665, 0.0
        %v778 = vmax.f32 %v670, 0.0
        %v779 = vmax.f32 %v673, 0.0
        %v780 = vmax.f32 %v678, 0.0
        %v781 = vmax.f32 %v681, 0.0
        %v782 = vmax.f32 %v686, 0.0
        %v783 = vmax.f32 %v689, 0.0
        %v784 = vmax.f32 %v694, 0.0
        %v785 = vmax.f32 %v697, 0.0
        %v786 = vmax.f32 %v702, 0.0
        %v787 = vmax.f32 %v705, 0.0
        %v788 = vmax.f32 %v710, 0.0
        %v789 = vmax.f32 %v713, 0.0
        %v790 = vmax.f32 %v718, 0.0
        %v791 = vmax.f32 %v721, 0.0
        %v792 = vmax.f32 %v726, 0.0
        %v793 = vmax.f32 %v729, 0.0
        %v794 = vmax.f32 %v734, 0.0
        %v795 = vmax.f32 %v737, 0.0
        %v796 = vmax.f32 %v742, 0.0
        %v797 = vmax.f32 %v745, 0.0
        %v798 = vmax.f32 %v750, 0.0
        %v799 = vmax.f32 %v753, 0.0
        %v800 = vmax.f32 %v758, 0.0
        %v801 = vmax.f32 %v761, 0.0
        %v802 = vmax.f32 %v766, 0.0
        %v803 = vmax.f32 %v769, 0.0
        %804 = vst [vmem:[#allocation2] sm:$0xff] 0.0
        %805 = vst [vmem:[#allocation2 + $0x8] sm:$0xff] 0.0
        %806 = vst [vmem:[#allocation2 + $0x10] sm:$0x3] 0.0
        %807 = vst [vmem:[#allocation2 + $0x18] sm:$0xff] 0.0
        %808 = vst [vmem:[#allocation2 + $0x20] sm:$0xff] 0.0
        %809 = vst [vmem:[#allocation2 + $0x28] sm:$0x3] 0.0
        %810 = vst [vmem:[#allocation2 + $0x30] sm:$0xff] 0.0
        %811 = vst [vmem:[#allocation2 + $0x38] sm:$0xff] 0.0
        %812 = vst [vmem:[#allocation2 + $0x40] sm:$0x3] 0.0
        %813 = vst [vmem:[#allocation2 + $0x48] sm:$0xff] 0.0
        %814 = vst [vmem:[#allocation2 + $0x50] sm:$0xff] 0.0
        %815 = vst [vmem:[#allocation2 + $0x58] sm:$0x3] 0.0
        %816 = vst [vmem:[#allocation2 + $0x60] sm:$0xff] 0.0
        %817 = vst [vmem:[#allocation2 + $0x68] sm:$0xff] 0.0
        %818 = vst [vmem:[#allocation2 + $0x70] sm:$0x3] 0.0
        %819 = vst [vmem:[#allocation2 + $0x78] sm:$0xff] 0.0
        %820 = vst [vmem:[#allocation2 + $0x80] sm:$0xff] 0.0
        %821 = vst [vmem:[#allocation2 + $0x88] sm:$0x3] 0.0
        %822 = vst [vmem:[#allocation2 + $0x90] sm:$0xff] 0.0
        %823 = vst [vmem:[#allocation2 + $0x98] sm:$0xff] 0.0
        %824 = vst [vmem:[#allocation2 + $0xa0] sm:$0x3] 0.0
        %825 = vst [vmem:[#allocation2 + $0xa8] sm:$0xff] 0.0
        %826 = vst [vmem:[#allocation2 + $0xb0] sm:$0xff] 0.0
        %827 = vst [vmem:[#allocation2 + $0xb8] sm:$0x3] 0.0
        %828 = vst [vmem:[#allocation2 + $0xc0] sm:$0xff] 0.0
        %829 = vst [vmem:[#allocation2 + $0xc8] sm:$0xff] 0.0
        %830 = vst [vmem:[#allocation2 + $0xd0] sm:$0x3] 0.0
        %831 = vst [vmem:[#allocation2 + $0xd8] sm:$0xff] 0.0
        %832 = vst [vmem:[#allocation2 + $0xe0] sm:$0xff] 0.0
        %833 = vst [vmem:[#allocation2 + $0xe8] sm:$0x3] 0.0
        %834 = vst [vmem:[#allocation2 + $0xf0] sm:$0xff] 0.0
        %835 = vst [vmem:[#allocation2 + $0xf8] sm:$0xff] 0.0
        %836 = vst [vmem:[#allocation2 + $0x100] sm:$0x3] 0.0
        %837 = vst [vmem:[#allocation2 + $0x108] sm:$0xff] 0.0
        %838 = vst [vmem:[#allocation2 + $0x110] sm:$0xff] 0.0
        %839 = vst [vmem:[#allocation2 + $0x118] sm:$0x3] 0.0
        %840 = vst [vmem:[#allocation2 + $0x120] sm:$0xff] 0.0
        %841 = vst [vmem:[#allocation2 + $0x128] sm:$0xff] 0.0
        %842 = vst [vmem:[#allocation2 + $0x130] sm:$0x3] 0.0
        %843 = vst [vmem:[#allocation2 + $0x138] sm:$0xff] 0.0
        %844 = vst [vmem:[#allocation2 + $0x140] sm:$0xff] 0.0
        %845 = vst [vmem:[#allocation2 + $0x148] sm:$0x3] 0.0
        %846 = vst [vmem:[#allocation2 + $0x150] sm:$0xff] 0.0
        %847 = vst [vmem:[#allocation2 + $0x158] sm:$0xff] 0.0
        %848 = vst [vmem:[#allocation2 + $0x160] sm:$0x3] 0.0
        %849 = vst [vmem:[#allocation2 + $0x168] sm:$0xff] 0.0
        %850 = vst [vmem:[#allocation2 + $0x170] sm:$0xff] 0.0
        %851 = vst [vmem:[#allocation2 + $0x178] sm:$0x3] 0.0
        %852 = vst [vmem:[#allocation2 + $0x180] sm:$0xff] 0.0
        %853 = vst [vmem:[#allocation2 + $0x188] sm:$0xff] 0.0
        %854 = vst [vmem:[#allocation2 + $0x190] sm:$0x3] 0.0
        %855 = vst [vmem:[#allocation2 + $0x198] sm:$0xff] 0.0
        %856 = vst [vmem:[#allocation2 + $0x1a0] sm:$0xff] 0.0
        %857 = vst [vmem:[#allocation2 + $0x1a8] sm:$0x3] 0.0
        %s858 = scalar_lea.vmem [#allocation2], 24
        %859 = vst [vmem:[%s858 + $0x1] sm:$0xff] %v772
        %860 = vst [vmem:[%s858 + $0x9] sm:$0xff] %v773
        %861 = vst [vmem:[%s858 + $0x19] sm:$0xff] %v774
        %862 = vst [vmem:[%s858 + $0x21] sm:$0xff] %v775
        %863 = vst [vmem:[%s858 + $0x31] sm:$0xff] %v776
        %864 = vst [vmem:[%s858 + $0x39] sm:$0xff] %v777
        %865 = vst [vmem:[%s858 + $0x49] sm:$0xff] %v778
        %866 = vst [vmem:[%s858 + $0x51] sm:$0xff] %v779
        %867 = vst [vmem:[%s858 + $0x61] sm:$0xff] %v780
        %868 = vst [vmem:[%s858 + $0x69] sm:$0xff] %v781
        %869 = vst [vmem:[%s858 + $0x79] sm:$0xff] %v782
        %870 = vst [vmem:[%s858 + $0x81] sm:$0xff] %v783
        %871 = vst [vmem:[%s858 + $0x91] sm:$0xff] %v784
        %872 = vst [vmem:[%s858 + $0x99] sm:$0xff] %v785
        %873 = vst [vmem:[%s858 + $0xa9] sm:$0xff] %v786
        %874 = vst [vmem:[%s858 + $0xb1] sm:$0xff] %v787
        %875 = vst [vmem:[%s858 + $0xc1] sm:$0xff] %v788
        %876 = vst [vmem:[%s858 + $0xc9] sm:$0xff] %v789
        %877 = vst [vmem:[%s858 + $0xd9] sm:$0xff] %v790
        %878 = vst [vmem:[%s858 + $0xe1] sm:$0xff] %v791
        %879 = vst [vmem:[%s858 + $0xf1] sm:$0xff] %v792
        %880 = vst [vmem:[%s858 + $0xf9] sm:$0xff] %v793
        %881 = vst [vmem:[%s858 + $0x109] sm:$0xff] %v794
        %882 = vst [vmem:[%s858 + $0x111] sm:$0xff] %v795
        %883 = vst [vmem:[%s858 + $0x121] sm:$0xff] %v796
        %884 = vst [vmem:[%s858 + $0x129] sm:$0xff] %v797
        %885 = vst [vmem:[%s858 + $0x139] sm:$0xff] %v798
        %886 = vst [vmem:[%s858 + $0x141] sm:$0xff] %v799
        %887 = vst [vmem:[%s858 + $0x151] sm:$0xff] %v800
        %888 = vst [vmem:[%s858 + $0x159] sm:$0xff] %v801
        %889 = vst [vmem:[%s858 + $0x169] sm:$0xff] %v802
        %890 = vst [vmem:[%s858 + $0x171] sm:$0xff] %v803
        %v891 = vld [vmem:[#allocation2] sm:$0xff]
        %v892 = vld [vmem:[#allocation2 + $0x8] sm:$0xff]
        %v893 = vld [vmem:[#allocation2 + $0x18] sm:$0xff]
        %v894 = vld [vmem:[#allocation2 + $0x20] sm:$0xff]
        %v895 = vld [vmem:[#allocation2 + $0x30] sm:$0xff]
        %v896 = vld [vmem:[#allocation2 + $0x38] sm:$0xff]
        %v897 = vld [vmem:[#allocation2 + $0x48] sm:$0xff]
        %v898 = vld [vmem:[#allocation2 + $0x50] sm:$0xff]
        %v899 = vld [vmem:[#allocation2 + $0x60] sm:$0xff]
        %v900 = vld [vmem:[#allocation2 + $0x68] sm:$0xff]
        %v901 = vld [vmem:[#allocation2 + $0x78] sm:$0xff]
        %v902 = vld [vmem:[#allocation2 + $0x80] sm:$0xff]
        %v903 = vld [vmem:[#allocation2 + $0x90] sm:$0xff]
        %v904 = vld [vmem:[#allocation2 + $0x98] sm:$0xff]
        %v905 = vld [vmem:[#allocation2 + $0xa8] sm:$0xff]
        %v906 = vld [vmem:[#allocation2 + $0xb0] sm:$0xff]
        %v907 = vld [vmem:[#allocation2 + $0xc0] sm:$0xff]
        %v908 = vld [vmem:[#allocation2 + $0xc8] sm:$0xff]
        %v909 = vld [vmem:[#allocation2 + $0xd8] sm:$0xff]
        %v910 = vld [vmem:[#allocation2 + $0xe0] sm:$0xff]
        %v911 = vld [vmem:[#allocation2 + $0xf0] sm:$0xff]
        %v912 = vld [vmem:[#allocation2 + $0xf8] sm:$0xff]
        %v913 = vld [vmem:[#allocation2 + $0x108] sm:$0xff]
        %v914 = vld [vmem:[#allocation2 + $0x110] sm:$0xff]
        %v915 = vld [vmem:[#allocation2 + $0x120] sm:$0xff]
        %v916 = vld [vmem:[#allocation2 + $0x128] sm:$0xff]
        %v917 = vld [vmem:[#allocation2 + $0x138] sm:$0xff]
        %v918 = vld [vmem:[#allocation2 + $0x140] sm:$0xff]
        %v919 = vld [vmem:[#allocation2 + $0x150] sm:$0xff]
        %v920 = vld [vmem:[#allocation2 + $0x158] sm:$0xff]
        %v921 = vld [vmem:[#allocation2 + $0x168] sm:$0xff]
        %v922 = vld [vmem:[#allocation2 + $0x170] sm:$0xff]
        %v923 = vpack.c.bf16 %v892, %v891
        %v924 = vpack.c.bf16 %v894, %v893
        %v925 = vpack.c.bf16 %v896, %v895
        %v926 = vpack.c.bf16 %v898, %v897
        %v927 = vpack.c.bf16 %v900, %v899
        %v928 = vpack.c.bf16 %v902, %v901
        %v929 = vpack.c.bf16 %v904, %v903
        %v930 = vpack.c.bf16 %v906, %v905
        %v931 = vpack.c.bf16 %v908, %v907
        %v932 = vpack.c.bf16 %v910, %v909
        %v933 = vpack.c.bf16 %v912, %v911
        %v934 = vpack.c.bf16 %v914, %v913
        %v935 = vpack.c.bf16 %v916, %v915
        %v936 = vpack.c.bf16 %v918, %v917
        %v937 = vpack.c.bf16 %v920, %v919
        %v938 = vpack.c.bf16 %v922, %v921
        %v939 = vld [vmem:[#allocation8] sm:$0xf]
        %v940 = vld [vmem:[#allocation8 + $0x4] sm:$0xf]
        %v941 = vld [vmem:[#allocation8 + $0x8] sm:$0xf]
        %v942 = vld [vmem:[#allocation8 + $0xc] sm:$0xf]
        %v943 = vld [vmem:[#allocation8 + $0x10] sm:$0xf]
        %v944 = vld [vmem:[#allocation8 + $0x14] sm:$0xf]
        %v945 = vld [vmem:[#allocation8 + $0x18] sm:$0xf]
        %v946 = vld [vmem:[#allocation8 + $0x1c] sm:$0xf]
        %v947 = vld [vmem:[#allocation8 + $0x20] sm:$0xf]
        %v948 = vld [vmem:[#allocation8 + $0x24] sm:$0xf]
        %v949 = vld [vmem:[#allocation8 + $0x28] sm:$0xf]
        %v950 = vld [vmem:[#allocation8 + $0x2c] sm:$0xf]
        %v951 = vld [vmem:[#allocation8 + $0x30] sm:$0xf]
        %v952 = vld [vmem:[#allocation8 + $0x34] sm:$0xf]
        %v953 = vld [vmem:[#allocation8 + $0x38] sm:$0xf]
        %v954 = vld [vmem:[#allocation8 + $0x3c] sm:$0xf]
        %v955 = vld [vmem:[#allocation2 + $0x1] sm:$0xff]
        %v956 = vld [vmem:[#allocation2 + $0x9] sm:$0xff]
        %v957 = vld [vmem:[#allocation2 + $0x19] sm:$0xff]
        %v958 = vld [vmem:[#allocation2 + $0x21] sm:$0xff]
        %v959 = vld [vmem:[#allocation2 + $0x31] sm:$0xff]
        %v960 = vld [vmem:[#allocation2 + $0x39] sm:$0xff]
        %v961 = vld [vmem:[#allocation2 + $0x49] sm:$0xff]
        %v962 = vld [vmem:[#allocation2 + $0x51] sm:$0xff]
        %v963 = vld [vmem:[#allocation2 + $0x61] sm:$0xff]
        %v964 = vld [vmem:[#allocation2 + $0x69] sm:$0xff]
        %v965 = vld [vmem:[#allocation2 + $0x79] sm:$0xff]
        %v966 = vld [vmem:[#allocation2 + $0x81] sm:$0xff]
        %v967 = vld [vmem:[#allocation2 + $0x91] sm:$0xff]
        %v968 = vld [vmem:[#allocation2 + $0x99] sm:$0xff]
        %v969 = vld [vmem:[#allocation2 + $0xa9] sm:$0xff]
        %v970 = vld [vmem:[#allocation2 + $0xb1] sm:$0xff]
        %v971 = vld [vmem:[#allocation2 + $0xc1] sm:$0xff]
        %v972 = vld [vmem:[#allocation2 + $0xc9] sm:$0xff]
        %v973 = vld [vmem:[#allocation2 + $0xd9] sm:$0xff]
        %v974 = vld [vmem:[#allocation2 + $0xe1] sm:$0xff]
        %v975 = vld [vmem:[#allocation2 + $0xf1] sm:$0xff]
        %v976 = vld [vmem:[#allocation2 + $0xf9] sm:$0xff]
        %v977 = vld [vmem:[#allocation2 + $0x109] sm:$0xff]
        %v978 = vld [vmem:[#allocation2 + $0x111] sm:$0xff]
        %v979 = vld [vmem:[#allocation2 + $0x121] sm:$0xff]
        %v980 = vld [vmem:[#allocation2 + $0x129] sm:$0xff]
        %v981 = vld [vmem:[#allocation2 + $0x139] sm:$0xff]
        %v982 = vld [vmem:[#allocation2 + $0x141] sm:$0xff]
        %v983 = vld [vmem:[#allocation2 + $0x151] sm:$0xff]
        %v984 = vld [vmem:[#allocation2 + $0x159] sm:$0xff]
        %v985 = vld [vmem:[#allocation2 + $0x169] sm:$0xff]
        %v986 = vld [vmem:[#allocation2 + $0x171] sm:$0xff]
        %v987 = vpack.c.bf16 %v956, %v955
        %v988 = vpack.c.bf16 %v958, %v957
        %v989 = vpack.c.bf16 %v960, %v959
        %v990 = vpack.c.bf16 %v962, %v961
        %v991 = vpack.c.bf16 %v964, %v963
        %v992 = vpack.c.bf16 %v966, %v965
        %v993 = vpack.c.bf16 %v968, %v967
        %v994 = vpack.c.bf16 %v970, %v969
        %v995 = vpack.c.bf16 %v972, %v971
        %v996 = vpack.c.bf16 %v974, %v973
        %v997 = vpack.c.bf16 %v976, %v975
        %v998 = vpack.c.bf16 %v978, %v977
        %v999 = vpack.c.bf16 %v980, %v979
        %v1000 = vpack.c.bf16 %v982, %v981
        %v1001 = vpack.c.bf16 %v984, %v983
        %v1002 = vpack.c.bf16 %v986, %v985
        %s1003 = scalar_lea.vmem [#allocation8], 64
        %v1004 = vld [vmem:[%s1003] sm:$0xf]
        %v1005 = vld [vmem:[%s1003 + $0x4] sm:$0xf]
        %v1006 = vld [vmem:[%s1003 + $0x8] sm:$0xf]
        %v1007 = vld [vmem:[%s1003 + $0xc] sm:$0xf]
        %v1008 = vld [vmem:[%s1003 + $0x10] sm:$0xf]
        %v1009 = vld [vmem:[%s1003 + $0x14] sm:$0xf]
        %v1010 = vld [vmem:[%s1003 + $0x18] sm:$0xf]
        %v1011 = vld [vmem:[%s1003 + $0x1c] sm:$0xf]
        %v1012 = vld [vmem:[%s1003 + $0x20] sm:$0xf]
        %v1013 = vld [vmem:[%s1003 + $0x24] sm:$0xf]
        %v1014 = vld [vmem:[%s1003 + $0x28] sm:$0xf]
        %v1015 = vld [vmem:[%s1003 + $0x2c] sm:$0xf]
        %v1016 = vld [vmem:[%s1003 + $0x30] sm:$0xf]
        %v1017 = vld [vmem:[%s1003 + $0x34] sm:$0xf]
        %v1018 = vld [vmem:[%s1003 + $0x38] sm:$0xf]
        %v1019 = vld [vmem:[%s1003 + $0x3c] sm:$0xf]
        %v1036 = vunpack.c.l.b16 %v1004
        %v1037 = vunpack.c.l.b16 %v1005
        %v1038 = vunpack.c.l.b16 %v1006
        %v1039 = vunpack.c.l.b16 %v1007
        %v1040 = vunpack.c.l.b16 %v1008
        %v1041 = vunpack.c.l.b16 %v1009
        %v1042 = vunpack.c.l.b16 %v1010
        %v1043 = vunpack.c.l.b16 %v1011
        %v1044 = vunpack.c.l.b16 %v1012
        %v1045 = vunpack.c.l.b16 %v1013
        %v1046 = vunpack.c.l.b16 %v1014
        %v1047 = vunpack.c.l.b16 %v1015
        %v1048 = vunpack.c.l.b16 %v1016
        %v1049 = vunpack.c.l.b16 %v1017
        %v1050 = vunpack.c.l.b16 %v1018
        %v1051 = vunpack.c.l.b16 %v1019
        %v1052 = vpack.c.b16 %v1037, %v1036
        %v1053 = vpack.c.b16 %v1039, %v1038
        %v1054 = vpack.c.b16 %v1041, %v1040
        %v1055 = vpack.c.b16 %v1043, %v1042
        %v1056 = vpack.c.b16 %v1045, %v1044
        %v1057 = vpack.c.b16 %v1047, %v1046
        %v1058 = vpack.c.b16 %v1049, %v1048
        %v1059 = vpack.c.b16 %v1051, %v1050
        %1068 = vmatprep.subr.bf16.mxu0 0
        %1069 = vmatpush1.bf16.msra.mxu0 %v1052
        %1070 = vmatprep.subr.bf16.mxu0 0
        %1071 = vmatpush1.bf16.msra.mxu0 %v1053
        %1072 = vmatprep.subr.bf16.mxu0 0
        %1073 = vmatpush1.bf16.msra.mxu0 %v1054
        %1074 = vmatprep.subr.bf16.mxu0 0
        %1075 = vmatpush1.bf16.msra.mxu0 %v1055
        %1076 = vmatprep.subr.bf16.mxu0 0
        %1077 = vmatpush1.bf16.msra.mxu0 %v1056
        %1078 = vmatprep.subr.bf16.mxu0 0
        %1079 = vmatpush1.bf16.msra.mxu0 %v1057
        %1080 = vmatprep.subr.bf16.mxu0 0
        %1081 = vmatpush1.bf16.msra.mxu0 %v1058
        %1082 = vmatprep.subr.bf16.mxu0 0
        %1083 = vmatpush1.bf16.msra.mxu0 %v1059
        %1084 = vmatprep.subr.bf16.mxu0 0
        %1085 = vmatpush1.bf16.msra.mxu0 0
        %1086 = vmatprep.subr.bf16.mxu0 0
        %1087 = vmatpush1.bf16.msra.mxu0 0
        %1088 = vmatprep.subr.bf16.mxu0 0
        %1089 = vmatpush1.bf16.msra.mxu0 0
        %1090 = vmatprep.subr.bf16.mxu0 0
        %1091 = vmatpush1.bf16.msra.mxu0 0
        %1092 = vmatprep.subr.bf16.mxu0 0
        %1093 = vmatpush1.bf16.msra.mxu0 0
        %1094 = vmatprep.subr.bf16.mxu0 0
        %1095 = vmatpush1.bf16.msra.mxu0 0
        %1096 = vmatprep.subr.bf16.mxu0 0
        %1097 = vmatpush1.bf16.msra.mxu0 0
        %1098 = vmatprep.subr.bf16.mxu0 0
        %1099 = vmatpush1.bf16.msra.mxu0 0
        %1100 = vmatprep.mubr.bf16.mxu0 0
        %1101 = vmatmul.mubr.bf16.gmra.mrb[0].mxu0 %v987
        %v1102 = vpop.f32.mrb[0].mxu0
        %v1103 = vadd.f32 0.0, %v1102
        %v1104 = vpop.f32.mrb[0].mxu0
        %v1105 = vpop.f32.mrb[0].mxu0
        %v1106 = vadd.f32 0.0, %v1105
        %v1107 = vpop.f32.mrb[0].mxu0
        %1108 = vmatprep.mubr.bf16.mxu0 0
        %1109 = vmatmul.mubr.bf16.gmra.mrb[0].mxu0 %v988
        %v1110 = vpop.f32.mrb[0].mxu0
        %v1111 = vadd.f32 0.0, %v1110
        %v1112 = vpop.f32.mrb[0].mxu0
        %v1113 = vpop.f32.mrb[0].mxu0
        %v1114 = vadd.f32 0.0, %v1113
        %v1115 = vpop.f32.mrb[0].mxu0
        %1116 = vmatprep.mubr.bf16.mxu0 0
        %1117 = vmatmul.mubr.bf16.gmra.mrb[0].mxu0 %v989
        %v1118 = vpop.f32.mrb[0].mxu0
        %v1119 = vadd.f32 0.0, %v1118
        %v1120 = vpop.f32.mrb[0].mxu0
        %v1121 = vpop.f32.mrb[0].mxu0
        %v1122 = vadd.f32 0.0, %v1121
        %v1123 = vpop.f32.mrb[0].mxu0
        %1124 = vmatprep.mubr.bf16.mxu0 0
        %1125 = vmatmul.mubr.bf16.gmra.mrb[0].mxu0 %v990
        %v1126 = vpop.f32.mrb[0].mxu0
        %v1127 = vadd.f32 0.0, %v1126
        %v1128 = vpop.f32.mrb[0].mxu0
        %v1129 = vpop.f32.mrb[0].mxu0
        %v1130 = vadd.f32 0.0, %v1129
        %v1131 = vpop.f32.mrb[0].mxu0
        %1132 = vmatprep.mubr.bf16.mxu0 0
        %1133 = vmatmul.mubr.bf16.gmra.mrb[0].mxu0 %v991
        %v1134 = vpop.f32.mrb[0].mxu0
        %v1135 = vadd.f32 0.0, %v1134
        %v1136 = vpop.f32.mrb[0].mxu0
        %v1137 = vpop.f32.mrb[0].mxu0
        %v1138 = vadd.f32 0.0, %v1137
        %v1139 = vpop.f32.mrb[0].mxu0
        %1140 = vmatprep.mubr.bf16.mxu0 0
        %1141 = vmatmul.mubr.bf16.gmra.mrb[0].mxu0 %v992
        %v1142 = vpop.f32.mrb[0].mxu0
        %v1143 = vadd.f32 0.0, %v1142
        %v1144 = vpop.f32.mrb[0].mxu0
        %v1145 = vpop.f32.mrb[0].mxu0
        %v1146 = vadd.f32 0.0, %v1145
        %v1147 = vpop.f32.mrb[0].mxu0
        %1148 = vmatprep.mubr.bf16.mxu0 0
        %1149 = vmatmul.mubr.bf16.gmra.mrb[0].mxu0 %v993
        %v1150 = vpop.f32.mrb[0].mxu0
        %v1151 = vadd.f32 0.0, %v1150
        %v1152 = vpop.f32.mrb[0].mxu0
        %v1153 = vpop.f32.mrb[0].mxu0
        %v1154 = vadd.f32 0.0, %v1153
        %v1155 = vpop.f32.mrb[0].mxu0
        %1156 = vmatprep.mubr.bf16.mxu0 0
        %1157 = vmatmul.mubr.bf16.gmra.mrb[0].mxu0 %v994
        %v1158 = vpop.f32.mrb[0].mxu0
        %v1159 = vadd.f32 0.0, %v1158
        %v1160 = vpop.f32.mrb[0].mxu0
        %v1161 = vpop.f32.mrb[0].mxu0
        %v1162 = vadd.f32 0.0, %v1161
        %v1163 = vpop.f32.mrb[0].mxu0
        %1164 = vmatprep.mubr.bf16.mxu0 0
        %1165 = vmatmul.mubr.bf16.gmra.mrb[0].mxu0 %v995
        %v1166 = vpop.f32.mrb[0].mxu0
        %v1167 = vadd.f32 0.0, %v1166
        %v1168 = vpop.f32.mrb[0].mxu0
        %v1169 = vpop.f32.mrb[0].mxu0
        %v1170 = vadd.f32 0.0, %v1169
        %v1171 = vpop.f32.mrb[0].mxu0
        %1172 = vmatprep.mubr.bf16.mxu0 0
        %1173 = vmatmul.mubr.bf16.gmra.mrb[0].mxu0 %v996
        %v1174 = vpop.f32.mrb[0].mxu0
        %v1175 = vadd.f32 0.0, %v1174
        %v1176 = vpop.f32.mrb[0].mxu0
        %v1177 = vpop.f32.mrb[0].mxu0
        %v1178 = vadd.f32 0.0, %v1177
        %v1179 = vpop.f32.mrb[0].mxu0
        %1180 = vmatprep.mubr.bf16.mxu0 0
        %1181 = vmatmul.mubr.bf16.gmra.mrb[0].mxu0 %v997
        %v1182 = vpop.f32.mrb[0].mxu0
        %v1183 = vadd.f32 0.0, %v1182
        %v1184 = vpop.f32.mrb[0].mxu0
        %v1185 = vpop.f32.mrb[0].mxu0
        %v1186 = vadd.f32 0.0, %v1185
        %v1187 = vpop.f32.mrb[0].mxu0
        %1188 = vmatprep.mubr.bf16.mxu0 0
        %1189 = vmatmul.mubr.bf16.gmra.mrb[0].mxu0 %v998
        %v1190 = vpop.f32.mrb[0].mxu0
        %v1191 = vadd.f32 0.0, %v1190
        %v1192 = vpop.f32.mrb[0].mxu0
        %v1193 = vpop.f32.mrb[0].mxu0
        %v1194 = vadd.f32 0.0, %v1193
        %v1195 = vpop.f32.mrb[0].mxu0
        %1196 = vmatprep.mubr.bf16.mxu0 0
        %1197 = vmatmul.mubr.bf16.gmra.mrb[0].mxu0 %v999
        %v1198 = vpop.f32.mrb[0].mxu0
        %v1199 = vadd.f32 0.0, %v1198
        %v1200 = vpop.f32.mrb[0].mxu0
        %v1201 = vpop.f32.mrb[0].mxu0
        %v1202 = vadd.f32 0.0, %v1201
        %v1203 = vpop.f32.mrb[0].mxu0
        %1204 = vmatprep.mubr.bf16.mxu0 0
        %1205 = vmatmul.mubr.bf16.gmra.mrb[0].mxu0 %v1000
        %v1206 = vpop.f32.mrb[0].mxu0
        %v1207 = vadd.f32 0.0, %v1206
        %v1208 = vpop.f32.mrb[0].mxu0
        %v1209 = vpop.f32.mrb[0].mxu0
        %v1210 = vadd.f32 0.0, %v1209
        %v1211 = vpop.f32.mrb[0].mxu0
        %1212 = vmatprep.mubr.bf16.mxu0 0
        %1213 = vmatmul.mubr.bf16.gmra.mrb[0].mxu0 %v1001
        %v1214 = vpop.f32.mrb[0].mxu0
        %v1215 = vadd.f32 0.0, %v1214
        %v1216 = vpop.f32.mrb[0].mxu0
        %v1217 = vpop.f32.mrb[0].mxu0
        %v1218 = vadd.f32 0.0, %v1217
        %v1219 = vpop.f32.mrb[0].mxu0
        %1220 = vmatprep.mubr.bf16.mxu0 0
        %1221 = vmatmul.mubr.bf16.gmra.mrb[0].mxu0 %v1002
        %v1222 = vpop.f32.mrb[0].mxu0
        %v1223 = vadd.f32 0.0, %v1222
        %v1224 = vpop.f32.mrb[0].mxu0
        %v1225 = vpop.f32.mrb[0].mxu0
        %v1226 = vadd.f32 0.0, %v1225
        %v1227 = vpop.f32.mrb[0].mxu0
        %1228 = vdwg.mxu0
        %v1245 = vunpack.c.l.b16 %v939
        %v1246 = vunpack.c.l.b16 %v940
        %v1247 = vunpack.c.l.b16 %v941
        %v1248 = vunpack.c.l.b16 %v942
        %v1249 = vunpack.c.l.b16 %v943
        %v1250 = vunpack.c.l.b16 %v944
        %v1251 = vunpack.c.l.b16 %v945
        %v1252 = vunpack.c.l.b16 %v946
        %v1253 = vunpack.c.l.b16 %v947
        %v1254 = vunpack.c.l.b16 %v948
        %v1255 = vunpack.c.l.b16 %v949
        %v1256 = vunpack.c.l.b16 %v950
        %v1257 = vunpack.c.l.b16 %v951
        %v1258 = vunpack.c.l.b16 %v952
        %v1259 = vunpack.c.l.b16 %v953
        %v1260 = vunpack.c.l.b16 %v954
        %v1261 = vpack.c.b16 %v1246, %v1245
        %v1262 = vpack.c.b16 %v1248, %v1247
        %v1263 = vpack.c.b16 %v1250, %v1249
        %v1264 = vpack.c.b16 %v1252, %v1251
        %v1265 = vpack.c.b16 %v1254, %v1253
        %v1266 = vpack.c.b16 %v1256, %v1255
        %v1267 = vpack.c.b16 %v1258, %v1257
        %v1268 = vpack.c.b16 %v1260, %v1259
        %1277 = vmatprep.subr.bf16.mxu0 0
        %1278 = vmatpush1.bf16.msra.mxu0 %v1261
        %1279 = vmatprep.subr.bf16.mxu0 0
        %1280 = vmatpush1.bf16.msra.mxu0 %v1262
        %1281 = vmatprep.subr.bf16.mxu0 0
        %1282 = vmatpush1.bf16.msra.mxu0 %v1263
        %1283 = vmatprep.subr.bf16.mxu0 0
        %1284 = vmatpush1.bf16.msra.mxu0 %v1264
        %1285 = vmatprep.subr.bf16.mxu0 0
        %1286 = vmatpush1.bf16.msra.mxu0 %v1265
        %1287 = vmatprep.subr.bf16.mxu0 0
        %1288 = vmatpush1.bf16.msra.mxu0 %v1266
        %1289 = vmatprep.subr.bf16.mxu0 0
        %1290 = vmatpush1.bf16.msra.mxu0 %v1267
        %1291 = vmatprep.subr.bf16.mxu0 0
        %1292 = vmatpush1.bf16.msra.mxu0 %v1268
        %1293 = vmatprep.subr.bf16.mxu0 0
        %1294 = vmatpush1.bf16.msra.mxu0 0
        %1295 = vmatprep.subr.bf16.mxu0 0
        %1296 = vmatpush1.bf16.msra.mxu0 0
        %1297 = vmatprep.subr.bf16.mxu0 0
        %1298 = vmatpush1.bf16.msra.mxu0 0
        %1299 = vmatprep.subr.bf16.mxu0 0
        %1300 = vmatpush1.bf16.msra.mxu0 0
        %1301 = vmatprep.subr.bf16.mxu0 0
        %1302 = vmatpush1.bf16.msra.mxu0 0
        %1303 = vmatprep.subr.bf16.mxu0 0
        %1304 = vmatpush1.bf16.msra.mxu0 0
        %1305 = vmatprep.subr.bf16.mxu0 0
        %1306 = vmatpush1.bf16.msra.mxu0 0
        %1307 = vmatprep.subr.bf16.mxu0 0
        %1308 = vmatpush1.bf16.msra.mxu0 0
        %1309 = vmatprep.mubr.bf16.mxu0 0
        %1310 = vmatmul.mubr.bf16.gmra.mrb[0].mxu0 %v923
        %v1311 = vpop.f32.mrb[0].mxu0
        %v1312 = vadd.f32 %v1103, %v1311
        %v1313 = vpop.f32.mrb[0].mxu0
        %v1314 = vpop.f32.mrb[0].mxu0
        %v1315 = vadd.f32 %v1106, %v1314
        %v1316 = vpop.f32.mrb[0].mxu0
        %1317 = vmatprep.mubr.bf16.mxu0 0
        %1318 = vmatmul.mubr.bf16.gmra.mrb[0].mxu0 %v924
        %v1319 = vpop.f32.mrb[0].mxu0
        %v1320 = vadd.f32 %v1111, %v1319
        %v1321 = vpop.f32.mrb[0].mxu0
        %v1322 = vpop.f32.mrb[0].mxu0
        %v1323 = vadd.f32 %v1114, %v1322
        %v1324 = vpop.f32.mrb[0].mxu0
        %1325 = vmatprep.mubr.bf16.mxu0 0
        %1326 = vmatmul.mubr.bf16.gmra.mrb[0].mxu0 %v925
        %v1327 = vpop.f32.mrb[0].mxu0
        %v1328 = vadd.f32 %v1119, %v1327
        %v1329 = vpop.f32.mrb[0].mxu0
        %v1330 = vpop.f32.mrb[0].mxu0
        %v1331 = vadd.f32 %v1122, %v1330
        %v1332 = vpop.f32.mrb[0].mxu0
        %1333 = vmatprep.mubr.bf16.mxu0 0
        %1334 = vmatmul.mubr.bf16.gmra.mrb[0].mxu0 %v926
        %v1335 = vpop.f32.mrb[0].mxu0
        %v1336 = vadd.f32 %v1127, %v1335
        %v1337 = vpop.f32.mrb[0].mxu0
        %v1338 = vpop.f32.mrb[0].mxu0
        %v1339 = vadd.f32 %v1130, %v1338
        %v1340 = vpop.f32.mrb[0].mxu0
        %1341 = vmatprep.mubr.bf16.mxu0 0
        %1342 = vmatmul.mubr.bf16.gmra.mrb[0].mxu0 %v927
        %v1343 = vpop.f32.mrb[0].mxu0
        %v1344 = vadd.f32 %v1135, %v1343
        %v1345 = vpop.f32.mrb[0].mxu0
        %v1346 = vpop.f32.mrb[0].mxu0
        %v1347 = vadd.f32 %v1138, %v1346
        %v1348 = vpop.f32.mrb[0].mxu0
        %1349 = vmatprep.mubr.bf16.mxu0 0
        %1350 = vmatmul.mubr.bf16.gmra.mrb[0].mxu0 %v928
        %v1351 = vpop.f32.mrb[0].mxu0
        %v1352 = vadd.f32 %v1143, %v1351
        %v1353 = vpop.f32.mrb[0].mxu0
        %v1354 = vpop.f32.mrb[0].mxu0
        %v1355 = vadd.f32 %v1146, %v1354
        %v1356 = vpop.f32.mrb[0].mxu0
        %1357 = vmatprep.mubr.bf16.mxu0 0
        %1358 = vmatmul.mubr.bf16.gmra.mrb[0].mxu0 %v929
        %v1359 = vpop.f32.mrb[0].mxu0
        %v1360 = vadd.f32 %v1151, %v1359
        %v1361 = vpop.f32.mrb[0].mxu0
        %v1362 = vpop.f32.mrb[0].mxu0
        %v1363 = vadd.f32 %v1154, %v1362
        %v1364 = vpop.f32.mrb[0].mxu0
        %1365 = vmatprep.mubr.bf16.mxu0 0
        %1366 = vmatmul.mubr.bf16.gmra.mrb[0].mxu0 %v930
        %v1367 = vpop.f32.mrb[0].mxu0
        %v1368 = vadd.f32 %v1159, %v1367
        %v1369 = vpop.f32.mrb[0].mxu0
        %v1370 = vpop.f32.mrb[0].mxu0
        %v1371 = vadd.f32 %v1162, %v1370
        %v1372 = vpop.f32.mrb[0].mxu0
        %1373 = vmatprep.mubr.bf16.mxu0 0
        %1374 = vmatmul.mubr.bf16.gmra.mrb[0].mxu0 %v931
        %v1375 = vpop.f32.mrb[0].mxu0
        %v1376 = vadd.f32 %v1167, %v1375
        %v1377 = vpop.f32.mrb[0].mxu0
        %v1378 = vpop.f32.mrb[0].mxu0
        %v1379 = vadd.f32 %v1170, %v1378
        %v1380 = vpop.f32.mrb[0].mxu0
        %1381 = vmatprep.mubr.bf16.mxu0 0
        %1382 = vmatmul.mubr.bf16.gmra.mrb[0].mxu0 %v932
        %v1383 = vpop.f32.mrb[0].mxu0
        %v1384 = vadd.f32 %v1175, %v1383
        %v1385 = vpop.f32.mrb[0].mxu0
        %v1386 = vpop.f32.mrb[0].mxu0
        %v1387 = vadd.f32 %v1178, %v1386
        %v1388 = vpop.f32.mrb[0].mxu0
        %1389 = vmatprep.mubr.bf16.mxu0 0
        %1390 = vmatmul.mubr.bf16.gmra.mrb[0].mxu0 %v933
        %v1391 = vpop.f32.mrb[0].mxu0
        %v1392 = vadd.f32 %v1183, %v1391
        %v1393 = vpop.f32.mrb[0].mxu0
        %v1394 = vpop.f32.mrb[0].mxu0
        %v1395 = vadd.f32 %v1186, %v1394
        %v1396 = vpop.f32.mrb[0].mxu0
        %1397 = vmatprep.mubr.bf16.mxu0 0
        %1398 = vmatmul.mubr.bf16.gmra.mrb[0].mxu0 %v934
        %v1399 = vpop.f32.mrb[0].mxu0
        %v1400 = vadd.f32 %v1191, %v1399
        %v1401 = vpop.f32.mrb[0].mxu0
        %v1402 = vpop.f32.mrb[0].mxu0
        %v1403 = vadd.f32 %v1194, %v1402
        %v1404 = vpop.f32.mrb[0].mxu0
        %1405 = vmatprep.mubr.bf16.mxu0 0
        %1406 = vmatmul.mubr.bf16.gmra.mrb[0].mxu0 %v935
        %v1407 = vpop.f32.mrb[0].mxu0
        %v1408 = vadd.f32 %v1199, %v1407
        %v1409 = vpop.f32.mrb[0].mxu0
        %v1410 = vpop.f32.mrb[0].mxu0
        %v1411 = vadd.f32 %v1202, %v1410
        %v1412 = vpop.f32.mrb[0].mxu0
        %1413 = vmatprep.mubr.bf16.mxu0 0
        %1414 = vmatmul.mubr.bf16.gmra.mrb[0].mxu0 %v936
        %v1415 = vpop.f32.mrb[0].mxu0
        %v1416 = vadd.f32 %v1207, %v1415
        %v1417 = vpop.f32.mrb[0].mxu0
        %v1418 = vpop.f32.mrb[0].mxu0
        %v1419 = vadd.f32 %v1210, %v1418
        %v1420 = vpop.f32.mrb[0].mxu0
        %1421 = vmatprep.mubr.bf16.mxu0 0
        %1422 = vmatmul.mubr.bf16.gmra.mrb[0].mxu0 %v937
        %v1423 = vpop.f32.mrb[0].mxu0
        %v1424 = vadd.f32 %v1215, %v1423
        %v1425 = vpop.f32.mrb[0].mxu0
        %v1426 = vpop.f32.mrb[0].mxu0
        %v1427 = vadd.f32 %v1218, %v1426
        %v1428 = vpop.f32.mrb[0].mxu0
        %1429 = vmatprep.mubr.bf16.mxu0 0
        %1430 = vmatmul.mubr.bf16.gmra.mrb[0].mxu0 %v938
        %v1431 = vpop.f32.mrb[0].mxu0
        %v1432 = vadd.f32 %v1223, %v1431
        %v1433 = vpop.f32.mrb[0].mxu0
        %v1434 = vpop.f32.mrb[0].mxu0
        %v1435 = vadd.f32 %v1226, %v1434
        %v1436 = vpop.f32.mrb[0].mxu0
        %1437 = vdwg.mxu0
        %v1438 = vld [vmem:[#allocation2 + $0x2] sm:$0xff]
        %v1439 = vld [vmem:[#allocation2 + $0xa] sm:$0xff]
        %v1440 = vld [vmem:[#allocation2 + $0x1a] sm:$0xff]
        %v1441 = vld [vmem:[#allocation2 + $0x22] sm:$0xff]
        %v1442 = vld [vmem:[#allocation2 + $0x32] sm:$0xff]
        %v1443 = vld [vmem:[#allocation2 + $0x3a] sm:$0xff]
        %v1444 = vld [vmem:[#allocation2 + $0x4a] sm:$0xff]
        %v1445 = vld [vmem:[#allocation2 + $0x52] sm:$0xff]
        %v1446 = vld [vmem:[#allocation2 + $0x62] sm:$0xff]
        %v1447 = vld [vmem:[#allocation2 + $0x6a] sm:$0xff]
        %v1448 = vld [vmem:[#allocation2 + $0x7a] sm:$0xff]
        %v1449 = vld [vmem:[#allocation2 + $0x82] sm:$0xff]
        %v1450 = vld [vmem:[#allocation2 + $0x92] sm:$0xff]
        %v1451 = vld [vmem:[#allocation2 + $0x9a] sm:$0xff]
        %v1452 = vld [vmem:[#allocation2 + $0xaa] sm:$0xff]
        %v1453 = vld [vmem:[#allocation2 + $0xb2] sm:$0xff]
        %v1454 = vld [vmem:[#allocation2 + $0xc2] sm:$0xff]
        %v1455 = vld [vmem:[#allocation2 + $0xca] sm:$0xff]
        %v1456 = vld [vmem:[#allocation2 + $0xda] sm:$0xff]
        %v1457 = vld [vmem:[#allocation2 + $0xe2] sm:$0xff]
        %v1458 = vld [vmem:[#allocation2 + $0xf2] sm:$0xff]
        %v1459 = vld [vmem:[#allocation2 + $0xfa] sm:$0xff]
        %v1460 = vld [vmem:[#allocation2 + $0x10a] sm:$0xff]
        %v1461 = vld [vmem:[#allocation2 + $0x112] sm:$0xff]
        %v1462 = vld [vmem:[#allocation2 + $0x122] sm:$0xff]
        %v1463 = vld [vmem:[#allocation2 + $0x12a] sm:$0xff]
        %v1464 = vld [vmem:[#allocation2 + $0x13a] sm:$0xff]
        %v1465 = vld [vmem:[#allocation2 + $0x142] sm:$0xff]
        %v1466 = vld [vmem:[#allocation2 + $0x152] sm:$0xff]
        %v1467 = vld [vmem:[#allocation2 + $0x15a] sm:$0xff]
        %v1468 = vld [vmem:[#allocation2 + $0x16a] sm:$0xff]
        %v1469 = vld [vmem:[#allocation2 + $0x172] sm:$0xff]
        %v1470 = vpack.c.bf16 %v1439, %v1438
        %v1471 = vpack.c.bf16 %v1441, %v1440
        %v1472 = vpack.c.bf16 %v1443, %v1442
        %v1473 = vpack.c.bf16 %v1445, %v1444
        %v1474 = vpack.c.bf16 %v1447, %v1446
        %v1475 = vpack.c.bf16 %v1449, %v1448
        %v1476 = vpack.c.bf16 %v1451, %v1450
        %v1477 = vpack.c.bf16 %v1453, %v1452
        %v1478 = vpack.c.bf16 %v1455, %v1454
        %v1479 = vpack.c.bf16 %v1457, %v1456
        %v1480 = vpack.c.bf16 %v1459, %v1458
        %v1481 = vpack.c.bf16 %v1461, %v1460
        %v1482 = vpack.c.bf16 %v1463, %v1462
        %v1483 = vpack.c.bf16 %v1465, %v1464
        %v1484 = vpack.c.bf16 %v1467, %v1466
        %v1485 = vpack.c.bf16 %v1469, %v1468
        %s1486 = scalar_lea.vmem [#allocation8], 128
        %v1487 = vld [vmem:[%s1486] sm:$0xf]
        %v1488 = vld [vmem:[%s1486 + $0x4] sm:$0xf]
        %v1489 = vld [vmem:[%s1486 + $0x8] sm:$0xf]
        %v1490 = vld [vmem:[%s1486 + $0xc] sm:$0xf]
        %v1491 = vld [vmem:[%s1486 + $0x10] sm:$0xf]
        %v1492 = vld [vmem:[%s1486 + $0x14] sm:$0xf]
        %v1493 = vld [vmem:[%s1486 + $0x18] sm:$0xf]
        %v1494 = vld [vmem:[%s1486 + $0x1c] sm:$0xf]
        %v1495 = vld [vmem:[%s1486 + $0x20] sm:$0xf]
        %v1496 = vld [vmem:[%s1486 + $0x24] sm:$0xf]
        %v1497 = vld [vmem:[%s1486 + $0x28] sm:$0xf]
        %v1498 = vld [vmem:[%s1486 + $0x2c] sm:$0xf]
        %v1499 = vld [vmem:[%s1486 + $0x30] sm:$0xf]
        %v1500 = vld [vmem:[%s1486 + $0x34] sm:$0xf]
        %v1501 = vld [vmem:[%s1486 + $0x38] sm:$0xf]
        %v1502 = vld [vmem:[%s1486 + $0x3c] sm:$0xf]
        %v1519 = vunpack.c.l.b16 %v1487
        %v1520 = vunpack.c.l.b16 %v1488
        %v1521 = vunpack.c.l.b16 %v1489
        %v1522 = vunpack.c.l.b16 %v1490
        %v1523 = vunpack.c.l.b16 %v1491
        %v1524 = vunpack.c.l.b16 %v1492
        %v1525 = vunpack.c.l.b16 %v1493
        %v1526 = vunpack.c.l.b16 %v1494
        %v1527 = vunpack.c.l.b16 %v1495
        %v1528 = vunpack.c.l.b16 %v1496
        %v1529 = vunpack.c.l.b16 %v1497
        %v1530 = vunpack.c.l.b16 %v1498
        %v1531 = vunpack.c.l.b16 %v1499
        %v1532 = vunpack.c.l.b16 %v1500
        %v1533 = vunpack.c.l.b16 %v1501
        %v1534 = vunpack.c.l.b16 %v1502
        %v1535 = vpack.c.b16 %v1520, %v1519
        %v1536 = vpack.c.b16 %v1522, %v1521
        %v1537 = vpack.c.b16 %v1524, %v1523
        %v1538 = vpack.c.b16 %v1526, %v1525
        %v1539 = vpack.c.b16 %v1528, %v1527
        %v1540 = vpack.c.b16 %v1530, %v1529
        %v1541 = vpack.c.b16 %v1532, %v1531
        %v1542 = vpack.c.b16 %v1534, %v1533
        %1551 = vmatprep.subr.bf16.mxu0 0
        %1552 = vmatpush1.bf16.msra.mxu0 %v1535
        %1553 = vmatprep.subr.bf16.mxu0 0
        %1554 = vmatpush1.bf16.msra.mxu0 %v1536
        %1555 = vmatprep.subr.bf16.mxu0 0
        %1556 = vmatpush1.bf16.msra.mxu0 %v1537
        %1557 = vmatprep.subr.bf16.mxu0 0
        %1558 = vmatpush1.bf16.msra.mxu0 %v1538
        %1559 = vmatprep.subr.bf16.mxu0 0
        %1560 = vmatpush1.bf16.msra.mxu0 %v1539
        %1561 = vmatprep.subr.bf16.mxu0 0
        %1562 = vmatpush1.bf16.msra.mxu0 %v1540
        %1563 = vmatprep.subr.bf16.mxu0 0
        %1564 = vmatpush1.bf16.msra.mxu0 %v1541
        %1565 = vmatprep.subr.bf16.mxu0 0
        %1566 = vmatpush1.bf16.msra.mxu0 %v1542
        %1567 = vmatprep.subr.bf16.mxu0 0
        %1568 = vmatpush1.bf16.msra.mxu0 0
        %1569 = vmatprep.subr.bf16.mxu0 0
        %1570 = vmatpush1.bf16.msra.mxu0 0
        %1571 = vmatprep.subr.bf16.mxu0 0
        %1572 = vmatpush1.bf16.msra.mxu0 0
        %1573 = vmatprep.subr.bf16.mxu0 0
        %1574 = vmatpush1.bf16.msra.mxu0 0
        %1575 = vmatprep.subr.bf16.mxu0 0
        %1576 = vmatpush1.bf16.msra.mxu0 0
        %1577 = vmatprep.subr.bf16.mxu0 0
        %1578 = vmatpush1.bf16.msra.mxu0 0
        %1579 = vmatprep.subr.bf16.mxu0 0
        %1580 = vmatpush1.bf16.msra.mxu0 0
        %1581 = vmatprep.subr.bf16.mxu0 0
        %1582 = vmatpush1.bf16.msra.mxu0 0
        %1583 = vmatprep.mubr.bf16.mxu0 0
        %1584 = vmatmul.mubr.bf16.gmra.mrb[0].mxu0 %v1470
        %v1585 = vpop.f32.mrb[0].mxu0
        %v1586 = vadd.f32 0.0, %v1585
        %v1587 = vpop.f32.mrb[0].mxu0
        %v1588 = vpop.f32.mrb[0].mxu0
        %v1589 = vadd.f32 0.0, %v1588
        %v1590 = vpop.f32.mrb[0].mxu0
        %1591 = vmatprep.mubr.bf16.mxu0 0
        %1592 = vmatmul.mubr.bf16.gmra.mrb[0].mxu0 %v1471
        %v1593 = vpop.f32.mrb[0].mxu0
        %v1594 = vadd.f32 0.0, %v1593
        %v1595 = vpop.f32.mrb[0].mxu0
        %v1596 = vpop.f32.mrb[0].mxu0
        %v1597 = vadd.f32 0.0, %v1596
        %v1598 = vpop.f32.mrb[0].mxu0
        %1599 = vmatprep.mubr.bf16.mxu0 0
        %1600 = vmatmul.mubr.bf16.gmra.mrb[0].mxu0 %v1472
        %v1601 = vpop.f32.mrb[0].mxu0
        %v1602 = vadd.f32 0.0, %v1601
        %v1603 = vpop.f32.mrb[0].mxu0
        %v1604 = vpop.f32.mrb[0].mxu0
        %v1605 = vadd.f32 0.0, %v1604
        %v1606 = vpop.f32.mrb[0].mxu0
        %1607 = vmatprep.mubr.bf16.mxu0 0
        %1608 = vmatmul.mubr.bf16.gmra.mrb[0].mxu0 %v1473
        %v1609 = vpop.f32.mrb[0].mxu0
        %v1610 = vadd.f32 0.0, %v1609
        %v1611 = vpop.f32.mrb[0].mxu0
        %v1612 = vpop.f32.mrb[0].mxu0
        %v1613 = vadd.f32 0.0, %v1612
        %v1614 = vpop.f32.mrb[0].mxu0
        %1615 = vmatprep.mubr.bf16.mxu0 0
        %1616 = vmatmul.mubr.bf16.gmra.mrb[0].mxu0 %v1474
        %v1617 = vpop.f32.mrb[0].mxu0
        %v1618 = vadd.f32 0.0, %v1617
        %v1619 = vpop.f32.mrb[0].mxu0
        %v1620 = vpop.f32.mrb[0].mxu0
        %v1621 = vadd.f32 0.0, %v1620
        %v1622 = vpop.f32.mrb[0].mxu0
        %1623 = vmatprep.mubr.bf16.mxu0 0
        %1624 = vmatmul.mubr.bf16.gmra.mrb[0].mxu0 %v1475
        %v1625 = vpop.f32.mrb[0].mxu0
        %v1626 = vadd.f32 0.0, %v1625
        %v1627 = vpop.f32.mrb[0].mxu0
        %v1628 = vpop.f32.mrb[0].mxu0
        %v1629 = vadd.f32 0.0, %v1628
        %v1630 = vpop.f32.mrb[0].mxu0
        %1631 = vmatprep.mubr.bf16.mxu0 0
        %1632 = vmatmul.mubr.bf16.gmra.mrb[0].mxu0 %v1476
        %v1633 = vpop.f32.mrb[0].mxu0
        %v1634 = vadd.f32 0.0, %v1633
        %v1635 = vpop.f32.mrb[0].mxu0
        %v1636 = vpop.f32.mrb[0].mxu0
        %v1637 = vadd.f32 0.0, %v1636
        %v1638 = vpop.f32.mrb[0].mxu0
        %1639 = vmatprep.mubr.bf16.mxu0 0
        %1640 = vmatmul.mubr.bf16.gmra.mrb[0].mxu0 %v1477
        %v1641 = vpop.f32.mrb[0].mxu0
        %v1642 = vadd.f32 0.0, %v1641
        %v1643 = vpop.f32.mrb[0].mxu0
        %v1644 = vpop.f32.mrb[0].mxu0
        %v1645 = vadd.f32 0.0, %v1644
        %v1646 = vpop.f32.mrb[0].mxu0
        %1647 = vmatprep.mubr.bf16.mxu0 0
        %1648 = vmatmul.mubr.bf16.gmra.mrb[0].mxu0 %v1478
        %v1649 = vpop.f32.mrb[0].mxu0
        %v1650 = vadd.f32 0.0, %v1649
        %v1651 = vpop.f32.mrb[0].mxu0
        %v1652 = vpop.f32.mrb[0].mxu0
        %v1653 = vadd.f32 0.0, %v1652
        %v1654 = vpop.f32.mrb[0].mxu0
        %1655 = vmatprep.mubr.bf16.mxu0 0
        %1656 = vmatmul.mubr.bf16.gmra.mrb[0].mxu0 %v1479
        %v1657 = vpop.f32.mrb[0].mxu0
        %v1658 = vadd.f32 0.0, %v1657
        %v1659 = vpop.f32.mrb[0].mxu0
        %v1660 = vpop.f32.mrb[0].mxu0
        %v1661 = vadd.f32 0.0, %v1660
        %v1662 = vpop.f32.mrb[0].mxu0
        %1663 = vmatprep.mubr.bf16.mxu0 0
        %1664 = vmatmul.mubr.bf16.gmra.mrb[0].mxu0 %v1480
        %v1665 = vpop.f32.mrb[0].mxu0
        %v1666 = vadd.f32 0.0, %v1665
        %v1667 = vpop.f32.mrb[0].mxu0
        %v1668 = vpop.f32.mrb[0].mxu0
        %v1669 = vadd.f32 0.0, %v1668
        %v1670 = vpop.f32.mrb[0].mxu0
        %1671 = vmatprep.mubr.bf16.mxu0 0
        %1672 = vmatmul.mubr.bf16.gmra.mrb[0].mxu0 %v1481
        %v1673 = vpop.f32.mrb[0].mxu0
        %v1674 = vadd.f32 0.0, %v1673
        %v1675 = vpop.f32.mrb[0].mxu0
        %v1676 = vpop.f32.mrb[0].mxu0
        %v1677 = vadd.f32 0.0, %v1676
        %v1678 = vpop.f32.mrb[0].mxu0
        %1679 = vmatprep.mubr.bf16.mxu0 0
        %1680 = vmatmul.mubr.bf16.gmra.mrb[0].mxu0 %v1482
        %v1681 = vpop.f32.mrb[0].mxu0
        %v1682 = vadd.f32 0.0, %v1681
        %v1683 = vpop.f32.mrb[0].mxu0
        %v1684 = vpop.f32.mrb[0].mxu0
        %v1685 = vadd.f32 0.0, %v1684
        %v1686 = vpop.f32.mrb[0].mxu0
        %1687 = vmatprep.mubr.bf16.mxu0 0
        %1688 = vmatmul.mubr.bf16.gmra.mrb[0].mxu0 %v1483
        %v1689 = vpop.f32.mrb[0].mxu0
        %v1690 = vadd.f32 0.0, %v1689
        %v1691 = vpop.f32.mrb[0].mxu0
        %v1692 = vpop.f32.mrb[0].mxu0
        %v1693 = vadd.f32 0.0, %v1692
        %v1694 = vpop.f32.mrb[0].mxu0
        %1695 = vmatprep.mubr.bf16.mxu0 0
        %1696 = vmatmul.mubr.bf16.gmra.mrb[0].mxu0 %v1484
        %v1697 = vpop.f32.mrb[0].mxu0
        %v1698 = vadd.f32 0.0, %v1697
        %v1699 = vpop.f32.mrb[0].mxu0
        %v1700 = vpop.f32.mrb[0].mxu0
        %v1701 = vadd.f32 0.0, %v1700
        %v1702 = vpop.f32.mrb[0].mxu0
        %1703 = vmatprep.mubr.bf16.mxu0 0
        %1704 = vmatmul.mubr.bf16.gmra.mrb[0].mxu0 %v1485
        %v1705 = vpop.f32.mrb[0].mxu0
        %v1706 = vadd.f32 0.0, %v1705
        %v1707 = vpop.f32.mrb[0].mxu0
        %v1708 = vpop.f32.mrb[0].mxu0
        %v1709 = vadd.f32 0.0, %v1708
        %v1710 = vpop.f32.mrb[0].mxu0
        %1711 = vdwg.mxu0
        %v1712 = vadd.f32 %v1312, %v1586
        %v1713 = vadd.f32 %v1315, %v1589
        %v1714 = vadd.f32 %v1320, %v1594
        %v1715 = vadd.f32 %v1323, %v1597
        %v1716 = vadd.f32 %v1328, %v1602
        %v1717 = vadd.f32 %v1331, %v1605
        %v1718 = vadd.f32 %v1336, %v1610
        %v1719 = vadd.f32 %v1339, %v1613
        %v1720 = vadd.f32 %v1344, %v1618
        %v1721 = vadd.f32 %v1347, %v1621
        %v1722 = vadd.f32 %v1352, %v1626
        %v1723 = vadd.f32 %v1355, %v1629
        %v1724 = vadd.f32 %v1360, %v1634
        %v1725 = vadd.f32 %v1363, %v1637
        %v1726 = vadd.f32 %v1368, %v1642
        %v1727 = vadd.f32 %v1371, %v1645
        %v1728 = vadd.f32 %v1376, %v1650
        %v1729 = vadd.f32 %v1379, %v1653
        %v1730 = vadd.f32 %v1384, %v1658
        %v1731 = vadd.f32 %v1387, %v1661
        %v1732 = vadd.f32 %v1392, %v1666
        %v1733 = vadd.f32 %v1395, %v1669
        %v1734 = vadd.f32 %v1400, %v1674
        %v1735 = vadd.f32 %v1403, %v1677
        %v1736 = vadd.f32 %v1408, %v1682
        %v1737 = vadd.f32 %v1411, %v1685
        %v1738 = vadd.f32 %v1416, %v1690
        %v1739 = vadd.f32 %v1419, %v1693
        %v1740 = vadd.f32 %v1424, %v1698
        %v1741 = vadd.f32 %v1427, %v1701
        %v1742 = vadd.f32 %v1432, %v1706
        %v1743 = vadd.f32 %v1435, %v1709
        %v1744 = vld [vmem:[%s858] sm:$0xff]
        %v1745 = vld [vmem:[%s858 + $0x8] sm:$0xff]
        %v1746 = vld [vmem:[%s858 + $0x18] sm:$0xff]
        %v1747 = vld [vmem:[%s858 + $0x20] sm:$0xff]
        %v1748 = vld [vmem:[%s858 + $0x30] sm:$0xff]
        %v1749 = vld [vmem:[%s858 + $0x38] sm:$0xff]
        %v1750 = vld [vmem:[%s858 + $0x48] sm:$0xff]
        %v1751 = vld [vmem:[%s858 + $0x50] sm:$0xff]
        %v1752 = vld [vmem:[%s858 + $0x60] sm:$0xff]
        %v1753 = vld [vmem:[%s858 + $0x68] sm:$0xff]
        %v1754 = vld [vmem:[%s858 + $0x78] sm:$0xff]
        %v1755 = vld [vmem:[%s858 + $0x80] sm:$0xff]
        %v1756 = vld [vmem:[%s858 + $0x90] sm:$0xff]
        %v1757 = vld [vmem:[%s858 + $0x98] sm:$0xff]
        %v1758 = vld [vmem:[%s858 + $0xa8] sm:$0xff]
        %v1759 = vld [vmem:[%s858 + $0xb0] sm:$0xff]
        %v1760 = vld [vmem:[%s858 + $0xc0] sm:$0xff]
        %v1761 = vld [vmem:[%s858 + $0xc8] sm:$0xff]
        %v1762 = vld [vmem:[%s858 + $0xd8] sm:$0xff]
        %v1763 = vld [vmem:[%s858 + $0xe0] sm:$0xff]
        %v1764 = vld [vmem:[%s858 + $0xf0] sm:$0xff]
        %v1765 = vld [vmem:[%s858 + $0xf8] sm:$0xff]
        %v1766 = vld [vmem:[%s858 + $0x108] sm:$0xff]
        %v1767 = vld [vmem:[%s858 + $0x110] sm:$0xff]
        %v1768 = vld [vmem:[%s858 + $0x120] sm:$0xff]
        %v1769 = vld [vmem:[%s858 + $0x128] sm:$0xff]
        %v1770 = vld [vmem:[%s858 + $0x138] sm:$0xff]
        %v1771 = vld [vmem:[%s858 + $0x140] sm:$0xff]
        %v1772 = vld [vmem:[%s858 + $0x150] sm:$0xff]
        %v1773 = vld [vmem:[%s858 + $0x158] sm:$0xff]
        %v1774 = vld [vmem:[%s858 + $0x168] sm:$0xff]
        %v1775 = vld [vmem:[%s858 + $0x170] sm:$0xff]
        %v1776 = vpack.c.bf16 %v1745, %v1744
        %v1777 = vpack.c.bf16 %v1747, %v1746
        %v1778 = vpack.c.bf16 %v1749, %v1748
        %v1779 = vpack.c.bf16 %v1751, %v1750
        %v1780 = vpack.c.bf16 %v1753, %v1752
        %v1781 = vpack.c.bf16 %v1755, %v1754
        %v1782 = vpack.c.bf16 %v1757, %v1756
        %v1783 = vpack.c.bf16 %v1759, %v1758
        %v1784 = vpack.c.bf16 %v1761, %v1760
        %v1785 = vpack.c.bf16 %v1763, %v1762
        %v1786 = vpack.c.bf16 %v1765, %v1764
        %v1787 = vpack.c.bf16 %v1767, %v1766
        %v1788 = vpack.c.bf16 %v1769, %v1768
        %v1789 = vpack.c.bf16 %v1771, %v1770
        %v1790 = vpack.c.bf16 %v1773, %v1772
        %v1791 = vpack.c.bf16 %v1775, %v1774
        %s1792 = scalar_lea.vmem [#allocation8], 192
        %v1793 = vld [vmem:[%s1792] sm:$0xf]
        %v1794 = vld [vmem:[%s1792 + $0x4] sm:$0xf]
        %v1795 = vld [vmem:[%s1792 + $0x8] sm:$0xf]
        %v1796 = vld [vmem:[%s1792 + $0xc] sm:$0xf]
        %v1797 = vld [vmem:[%s1792 + $0x10] sm:$0xf]
        %v1798 = vld [vmem:[%s1792 + $0x14] sm:$0xf]
        %v1799 = vld [vmem:[%s1792 + $0x18] sm:$0xf]
        %v1800 = vld [vmem:[%s1792 + $0x1c] sm:$0xf]
        %v1801 = vld [vmem:[%s1792 + $0x20] sm:$0xf]
        %v1802 = vld [vmem:[%s1792 + $0x24] sm:$0xf]
        %v1803 = vld [vmem:[%s1792 + $0x28] sm:$0xf]
        %v1804 = vld [vmem:[%s1792 + $0x2c] sm:$0xf]
        %v1805 = vld [vmem:[%s1792 + $0x30] sm:$0xf]
        %v1806 = vld [vmem:[%s1792 + $0x34] sm:$0xf]
        %v1807 = vld [vmem:[%s1792 + $0x38] sm:$0xf]
        %v1808 = vld [vmem:[%s1792 + $0x3c] sm:$0xf]
        %v1825 = vunpack.c.l.b16 %v1793
        %v1826 = vunpack.c.l.b16 %v1794
        %v1827 = vunpack.c.l.b16 %v1795
        %v1828 = vunpack.c.l.b16 %v1796
        %v1829 = vunpack.c.l.b16 %v1797
        %v1830 = vunpack.c.l.b16 %v1798
        %v1831 = vunpack.c.l.b16 %v1799
        %v1832 = vunpack.c.l.b16 %v1800
        %v1833 = vunpack.c.l.b16 %v1801
        %v1834 = vunpack.c.l.b16 %v1802
        %v1835 = vunpack.c.l.b16 %v1803
        %v1836 = vunpack.c.l.b16 %v1804
        %v1837 = vunpack.c.l.b16 %v1805
        %v1838 = vunpack.c.l.b16 %v1806
        %v1839 = vunpack.c.l.b16 %v1807
        %v1840 = vunpack.c.l.b16 %v1808
        %v1841 = vpack.c.b16 %v1826, %v1825
        %v1842 = vpack.c.b16 %v1828, %v1827
        %v1843 = vpack.c.b16 %v1830, %v1829
        %v1844 = vpack.c.b16 %v1832, %v1831
        %v1845 = vpack.c.b16 %v1834, %v1833
        %v1846 = vpack.c.b16 %v1836, %v1835
        %v1847 = vpack.c.b16 %v1838, %v1837
        %v1848 = vpack.c.b16 %v1840, %v1839
        %1857 = vmatprep.subr.bf16.mxu0 0
        %1858 = vmatpush1.bf16.msra.mxu0 %v1841
        %1859 = vmatprep.subr.bf16.mxu0 0
        %1860 = vmatpush1.bf16.msra.mxu0 %v1842
        %1861 = vmatprep.subr.bf16.mxu0 0
        %1862 = vmatpush1.bf16.msra.mxu0 %v1843
        %1863 = vmatprep.subr.bf16.mxu0 0
        %1864 = vmatpush1.bf16.msra.mxu0 %v1844
        %1865 = vmatprep.subr.bf16.mxu0 0
        %1866 = vmatpush1.bf16.msra.mxu0 %v1845
        %1867 = vmatprep.subr.bf16.mxu0 0
        %1868 = vmatpush1.bf16.msra.mxu0 %v1846
        %1869 = vmatprep.subr.bf16.mxu0 0
        %1870 = vmatpush1.bf16.msra.mxu0 %v1847
        %1871 = vmatprep.subr.bf16.mxu0 0
        %1872 = vmatpush1.bf16.msra.mxu0 %v1848
        %1873 = vmatprep.subr.bf16.mxu0 0
        %1874 = vmatpush1.bf16.msra.mxu0 0
        %1875 = vmatprep.subr.bf16.mxu0 0
        %1876 = vmatpush1.bf16.msra.mxu0 0
        %1877 = vmatprep.subr.bf16.mxu0 0
        %1878 = vmatpush1.bf16.msra.mxu0 0
        %1879 = vmatprep.subr.bf16.mxu0 0
        %1880 = vmatpush1.bf16.msra.mxu0 0
        %1881 = vmatprep.subr.bf16.mxu0 0
        %1882 = vmatpush1.bf16.msra.mxu0 0
        %1883 = vmatprep.subr.bf16.mxu0 0
        %1884 = vmatpush1.bf16.msra.mxu0 0
        %1885 = vmatprep.subr.bf16.mxu0 0
        %1886 = vmatpush1.bf16.msra.mxu0 0
        %1887 = vmatprep.subr.bf16.mxu0 0
        %1888 = vmatpush1.bf16.msra.mxu0 0
        %1889 = vmatprep.mubr.bf16.mxu0 0
        %1890 = vmatmul.mubr.bf16.gmra.mrb[0].mxu0 %v1776
        %v1891 = vpop.f32.mrb[0].mxu0
        %v1892 = vadd.f32 0.0, %v1891
        %v1893 = vpop.f32.mrb[0].mxu0
        %v1894 = vpop.f32.mrb[0].mxu0
        %v1895 = vadd.f32 0.0, %v1894
        %v1896 = vpop.f32.mrb[0].mxu0
        %1897 = vmatprep.mubr.bf16.mxu0 0
        %1898 = vmatmul.mubr.bf16.gmra.mrb[0].mxu0 %v1777
        %v1899 = vpop.f32.mrb[0].mxu0
        %v1900 = vadd.f32 0.0, %v1899
        %v1901 = vpop.f32.mrb[0].mxu0
        %v1902 = vpop.f32.mrb[0].mxu0
        %v1903 = vadd.f32 0.0, %v1902
        %v1904 = vpop.f32.mrb[0].mxu0
        %1905 = vmatprep.mubr.bf16.mxu0 0
        %1906 = vmatmul.mubr.bf16.gmra.mrb[0].mxu0 %v1778
        %v1907 = vpop.f32.mrb[0].mxu0
        %v1908 = vadd.f32 0.0, %v1907
        %v1909 = vpop.f32.mrb[0].mxu0
        %v1910 = vpop.f32.mrb[0].mxu0
        %v1911 = vadd.f32 0.0, %v1910
        %v1912 = vpop.f32.mrb[0].mxu0
        %1913 = vmatprep.mubr.bf16.mxu0 0
        %1914 = vmatmul.mubr.bf16.gmra.mrb[0].mxu0 %v1779
        %v1915 = vpop.f32.mrb[0].mxu0
        %v1916 = vadd.f32 0.0, %v1915
        %v1917 = vpop.f32.mrb[0].mxu0
        %v1918 = vpop.f32.mrb[0].mxu0
        %v1919 = vadd.f32 0.0, %v1918
        %v1920 = vpop.f32.mrb[0].mxu0
        %1921 = vmatprep.mubr.bf16.mxu0 0
        %1922 = vmatmul.mubr.bf16.gmra.mrb[0].mxu0 %v1780
        %v1923 = vpop.f32.mrb[0].mxu0
        %v1924 = vadd.f32 0.0, %v1923
        %v1925 = vpop.f32.mrb[0].mxu0
        %v1926 = vpop.f32.mrb[0].mxu0
        %v1927 = vadd.f32 0.0, %v1926
        %v1928 = vpop.f32.mrb[0].mxu0
        %1929 = vmatprep.mubr.bf16.mxu0 0
        %1930 = vmatmul.mubr.bf16.gmra.mrb[0].mxu0 %v1781
        %v1931 = vpop.f32.mrb[0].mxu0
        %v1932 = vadd.f32 0.0, %v1931
        %v1933 = vpop.f32.mrb[0].mxu0
        %v1934 = vpop.f32.mrb[0].mxu0
        %v1935 = vadd.f32 0.0, %v1934
        %v1936 = vpop.f32.mrb[0].mxu0
        %1937 = vmatprep.mubr.bf16.mxu0 0
        %1938 = vmatmul.mubr.bf16.gmra.mrb[0].mxu0 %v1782
        %v1939 = vpop.f32.mrb[0].mxu0
        %v1940 = vadd.f32 0.0, %v1939
        %v1941 = vpop.f32.mrb[0].mxu0
        %v1942 = vpop.f32.mrb[0].mxu0
        %v1943 = vadd.f32 0.0, %v1942
        %v1944 = vpop.f32.mrb[0].mxu0
        %1945 = vmatprep.mubr.bf16.mxu0 0
        %1946 = vmatmul.mubr.bf16.gmra.mrb[0].mxu0 %v1783
        %v1947 = vpop.f32.mrb[0].mxu0
        %v1948 = vadd.f32 0.0, %v1947
        %v1949 = vpop.f32.mrb[0].mxu0
        %v1950 = vpop.f32.mrb[0].mxu0
        %v1951 = vadd.f32 0.0, %v1950
        %v1952 = vpop.f32.mrb[0].mxu0
        %1953 = vmatprep.mubr.bf16.mxu0 0
        %1954 = vmatmul.mubr.bf16.gmra.mrb[0].mxu0 %v1784
        %v1955 = vpop.f32.mrb[0].mxu0
        %v1956 = vadd.f32 0.0, %v1955
        %v1957 = vpop.f32.mrb[0].mxu0
        %v1958 = vpop.f32.mrb[0].mxu0
        %v1959 = vadd.f32 0.0, %v1958
        %v1960 = vpop.f32.mrb[0].mxu0
        %1961 = vmatprep.mubr.bf16.mxu0 0
        %1962 = vmatmul.mubr.bf16.gmra.mrb[0].mxu0 %v1785
        %v1963 = vpop.f32.mrb[0].mxu0
        %v1964 = vadd.f32 0.0, %v1963
        %v1965 = vpop.f32.mrb[0].mxu0
        %v1966 = vpop.f32.mrb[0].mxu0
        %v1967 = vadd.f32 0.0, %v1966
        %v1968 = vpop.f32.mrb[0].mxu0
        %1969 = vmatprep.mubr.bf16.mxu0 0
        %1970 = vmatmul.mubr.bf16.gmra.mrb[0].mxu0 %v1786
        %v1971 = vpop.f32.mrb[0].mxu0
        %v1972 = vadd.f32 0.0, %v1971
        %v1973 = vpop.f32.mrb[0].mxu0
        %v1974 = vpop.f32.mrb[0].mxu0
        %v1975 = vadd.f32 0.0, %v1974
        %v1976 = vpop.f32.mrb[0].mxu0
        %1977 = vmatprep.mubr.bf16.mxu0 0
        %1978 = vmatmul.mubr.bf16.gmra.mrb[0].mxu0 %v1787
        %v1979 = vpop.f32.mrb[0].mxu0
        %v1980 = vadd.f32 0.0, %v1979
        %v1981 = vpop.f32.mrb[0].mxu0
        %v1982 = vpop.f32.mrb[0].mxu0
        %v1983 = vadd.f32 0.0, %v1982
        %v1984 = vpop.f32.mrb[0].mxu0
        %1985 = vmatprep.mubr.bf16.mxu0 0
        %1986 = vmatmul.mubr.bf16.gmra.mrb[0].mxu0 %v1788
        %v1987 = vpop.f32.mrb[0].mxu0
        %v1988 = vadd.f32 0.0, %v1987
        %v1989 = vpop.f32.mrb[0].mxu0
        %v1990 = vpop.f32.mrb[0].mxu0
        %v1991 = vadd.f32 0.0, %v1990
        %v1992 = vpop.f32.mrb[0].mxu0
        %1993 = vmatprep.mubr.bf16.mxu0 0
        %1994 = vmatmul.mubr.bf16.gmra.mrb[0].mxu0 %v1789
        %v1995 = vpop.f32.mrb[0].mxu0
        %v1996 = vadd.f32 0.0, %v1995
        %v1997 = vpop.f32.mrb[0].mxu0
        %v1998 = vpop.f32.mrb[0].mxu0
        %v1999 = vadd.f32 0.0, %v1998
        %v2000 = vpop.f32.mrb[0].mxu0
        %2001 = vmatprep.mubr.bf16.mxu0 0
        %2002 = vmatmul.mubr.bf16.gmra.mrb[0].mxu0 %v1790
        %v2003 = vpop.f32.mrb[0].mxu0
        %v2004 = vadd.f32 0.0, %v2003
        %v2005 = vpop.f32.mrb[0].mxu0
        %v2006 = vpop.f32.mrb[0].mxu0
        %v2007 = vadd.f32 0.0, %v2006
        %v2008 = vpop.f32.mrb[0].mxu0
        %2009 = vmatprep.mubr.bf16.mxu0 0
        %2010 = vmatmul.mubr.bf16.gmra.mrb[0].mxu0 %v1791
        %v2011 = vpop.f32.mrb[0].mxu0
        %v2012 = vadd.f32 0.0, %v2011
        %v2013 = vpop.f32.mrb[0].mxu0
        %v2014 = vpop.f32.mrb[0].mxu0
        %v2015 = vadd.f32 0.0, %v2014
        %v2016 = vpop.f32.mrb[0].mxu0
        %2017 = vdwg.mxu0
        %v2018 = vadd.f32 %v1712, %v1892
        %v2019 = vadd.f32 %v1713, %v1895
        %v2020 = vadd.f32 %v1714, %v1900
        %v2021 = vadd.f32 %v1715, %v1903
        %v2022 = vadd.f32 %v1716, %v1908
        %v2023 = vadd.f32 %v1717, %v1911
        %v2024 = vadd.f32 %v1718, %v1916
        %v2025 = vadd.f32 %v1719, %v1919
        %v2026 = vadd.f32 %v1720, %v1924
        %v2027 = vadd.f32 %v1721, %v1927
        %v2028 = vadd.f32 %v1722, %v1932
        %v2029 = vadd.f32 %v1723, %v1935
        %v2030 = vadd.f32 %v1724, %v1940
        %v2031 = vadd.f32 %v1725, %v1943
        %v2032 = vadd.f32 %v1726, %v1948
        %v2033 = vadd.f32 %v1727, %v1951
        %v2034 = vadd.f32 %v1728, %v1956
        %v2035 = vadd.f32 %v1729, %v1959
        %v2036 = vadd.f32 %v1730, %v1964
        %v2037 = vadd.f32 %v1731, %v1967
        %v2038 = vadd.f32 %v1732, %v1972
        %v2039 = vadd.f32 %v1733, %v1975
        %v2040 = vadd.f32 %v1734, %v1980
        %v2041 = vadd.f32 %v1735, %v1983
        %v2042 = vadd.f32 %v1736, %v1988
        %v2043 = vadd.f32 %v1737, %v1991
        %v2044 = vadd.f32 %v1738, %v1996
        %v2045 = vadd.f32 %v1739, %v1999
        %v2046 = vadd.f32 %v1740, %v2004
        %v2047 = vadd.f32 %v1741, %v2007
        %v2048 = vadd.f32 %v1742, %v2012
        %v2049 = vadd.f32 %v1743, %v2015
        %v2050 = vld [vmem:[%s858 + $0x1] sm:$0xff]
        %v2051 = vld [vmem:[%s858 + $0x9] sm:$0xff]
        %v2052 = vld [vmem:[%s858 + $0x19] sm:$0xff]
        %v2053 = vld [vmem:[%s858 + $0x21] sm:$0xff]
        %v2054 = vld [vmem:[%s858 + $0x31] sm:$0xff]
        %v2055 = vld [vmem:[%s858 + $0x39] sm:$0xff]
        %v2056 = vld [vmem:[%s858 + $0x49] sm:$0xff]
        %v2057 = vld [vmem:[%s858 + $0x51] sm:$0xff]
        %v2058 = vld [vmem:[%s858 + $0x61] sm:$0xff]
        %v2059 = vld [vmem:[%s858 + $0x69] sm:$0xff]
        %v2060 = vld [vmem:[%s858 + $0x79] sm:$0xff]
        %v2061 = vld [vmem:[%s858 + $0x81] sm:$0xff]
        %v2062 = vld [vmem:[%s858 + $0x91] sm:$0xff]
        %v2063 = vld [vmem:[%s858 + $0x99] sm:$0xff]
        %v2064 = vld [vmem:[%s858 + $0xa9] sm:$0xff]
        %v2065 = vld [vmem:[%s858 + $0xb1] sm:$0xff]
        %v2066 = vld [vmem:[%s858 + $0xc1] sm:$0xff]
        %v2067 = vld [vmem:[%s858 + $0xc9] sm:$0xff]
        %v2068 = vld [vmem:[%s858 + $0xd9] sm:$0xff]
        %v2069 = vld [vmem:[%s858 + $0xe1] sm:$0xff]
        %v2070 = vld [vmem:[%s858 + $0xf1] sm:$0xff]
        %v2071 = vld [vmem:[%s858 + $0xf9] sm:$0xff]
        %v2072 = vld [vmem:[%s858 + $0x109] sm:$0xff]
        %v2073 = vld [vmem:[%s858 + $0x111] sm:$0xff]
        %v2074 = vld [vmem:[%s858 + $0x121] sm:$0xff]
        %v2075 = vld [vmem:[%s858 + $0x129] sm:$0xff]
        %v2076 = vld [vmem:[%s858 + $0x139] sm:$0xff]
        %v2077 = vld [vmem:[%s858 + $0x141] sm:$0xff]
        %v2078 = vld [vmem:[%s858 + $0x151] sm:$0xff]
        %v2079 = vld [vmem:[%s858 + $0x159] sm:$0xff]
        %v2080 = vld [vmem:[%s858 + $0x169] sm:$0xff]
        %v2081 = vld [vmem:[%s858 + $0x171] sm:$0xff]
        %v2082 = vpack.c.bf16 %v2051, %v2050
        %v2083 = vpack.c.bf16 %v2053, %v2052
        %v2084 = vpack.c.bf16 %v2055, %v2054
        %v2085 = vpack.c.bf16 %v2057, %v2056
        %v2086 = vpack.c.bf16 %v2059, %v2058
        %v2087 = vpack.c.bf16 %v2061, %v2060
        %v2088 = vpack.c.bf16 %v2063, %v2062
        %v2089 = vpack.c.bf16 %v2065, %v2064
        %v2090 = vpack.c.bf16 %v2067, %v2066
        %v2091 = vpack.c.bf16 %v2069, %v2068
        %v2092 = vpack.c.bf16 %v2071, %v2070
        %v2093 = vpack.c.bf16 %v2073, %v2072
        %v2094 = vpack.c.bf16 %v2075, %v2074
        %v2095 = vpack.c.bf16 %v2077, %v2076
        %v2096 = vpack.c.bf16 %v2079, %v2078
        %v2097 = vpack.c.bf16 %v2081, %v2080
        %s2098 = scalar_lea.vmem [#allocation8], 256
        %v2099 = vld [vmem:[%s2098] sm:$0xf]
        %v2100 = vld [vmem:[%s2098 + $0x4] sm:$0xf]
        %v2101 = vld [vmem:[%s2098 + $0x8] sm:$0xf]
        %v2102 = vld [vmem:[%s2098 + $0xc] sm:$0xf]
        %v2103 = vld [vmem:[%s2098 + $0x10] sm:$0xf]
        %v2104 = vld [vmem:[%s2098 + $0x14] sm:$0xf]
        %v2105 = vld [vmem:[%s2098 + $0x18] sm:$0xf]
        %v2106 = vld [vmem:[%s2098 + $0x1c] sm:$0xf]
        %v2107 = vld [vmem:[%s2098 + $0x20] sm:$0xf]
        %v2108 = vld [vmem:[%s2098 + $0x24] sm:$0xf]
        %v2109 = vld [vmem:[%s2098 + $0x28] sm:$0xf]
        %v2110 = vld [vmem:[%s2098 + $0x2c] sm:$0xf]
        %v2111 = vld [vmem:[%s2098 + $0x30] sm:$0xf]
        %v2112 = vld [vmem:[%s2098 + $0x34] sm:$0xf]
        %v2113 = vld [vmem:[%s2098 + $0x38] sm:$0xf]
        %v2114 = vld [vmem:[%s2098 + $0x3c] sm:$0xf]
        %v2131 = vunpack.c.l.b16 %v2099
        %v2132 = vunpack.c.l.b16 %v2100
        %v2133 = vunpack.c.l.b16 %v2101
        %v2134 = vunpack.c.l.b16 %v2102
        %v2135 = vunpack.c.l.b16 %v2103
        %v2136 = vunpack.c.l.b16 %v2104
        %v2137 = vunpack.c.l.b16 %v2105
        %v2138 = vunpack.c.l.b16 %v2106
        %v2139 = vunpack.c.l.b16 %v2107
        %v2140 = vunpack.c.l.b16 %v2108
        %v2141 = vunpack.c.l.b16 %v2109
        %v2142 = vunpack.c.l.b16 %v2110
        %v2143 = vunpack.c.l.b16 %v2111
        %v2144 = vunpack.c.l.b16 %v2112
        %v2145 = vunpack.c.l.b16 %v2113
        %v2146 = vunpack.c.l.b16 %v2114
        %v2147 = vpack.c.b16 %v2132, %v2131
        %v2148 = vpack.c.b16 %v2134, %v2133
        %v2149 = vpack.c.b16 %v2136, %v2135
        %v2150 = vpack.c.b16 %v2138, %v2137
        %v2151 = vpack.c.b16 %v2140, %v2139
        %v2152 = vpack.c.b16 %v2142, %v2141
        %v2153 = vpack.c.b16 %v2144, %v2143
        %v2154 = vpack.c.b16 %v2146, %v2145
        %2163 = vmatprep.subr.bf16.mxu0 0
        %2164 = vmatpush1.bf16.msra.mxu0 %v2147
        %2165 = vmatprep.subr.bf16.mxu0 0
        %2166 = vmatpush1.bf16.msra.mxu0 %v2148
        %2167 = vmatprep.subr.bf16.mxu0 0
        %2168 = vmatpush1.bf16.msra.mxu0 %v2149
        %2169 = vmatprep.subr.bf16.mxu0 0
        %2170 = vmatpush1.bf16.msra.mxu0 %v2150
        %2171 = vmatprep.subr.bf16.mxu0 0
        %2172 = vmatpush1.bf16.msra.mxu0 %v2151
        %2173 = vmatprep.subr.bf16.mxu0 0
        %2174 = vmatpush1.bf16.msra.mxu0 %v2152
        %2175 = vmatprep.subr.bf16.mxu0 0
        %2176 = vmatpush1.bf16.msra.mxu0 %v2153
        %2177 = vmatprep.subr.bf16.mxu0 0
        %2178 = vmatpush1.bf16.msra.mxu0 %v2154
        %2179 = vmatprep.subr.bf16.mxu0 0
        %2180 = vmatpush1.bf16.msra.mxu0 0
        %2181 = vmatprep.subr.bf16.mxu0 0
        %2182 = vmatpush1.bf16.msra.mxu0 0
        %2183 = vmatprep.subr.bf16.mxu0 0
        %2184 = vmatpush1.bf16.msra.mxu0 0
        %2185 = vmatprep.subr.bf16.mxu0 0
        %2186 = vmatpush1.bf16.msra.mxu0 0
        %2187 = vmatprep.subr.bf16.mxu0 0
        %2188 = vmatpush1.bf16.msra.mxu0 0
        %2189 = vmatprep.subr.bf16.mxu0 0
        %2190 = vmatpush1.bf16.msra.mxu0 0
        %2191 = vmatprep.subr.bf16.mxu0 0
        %2192 = vmatpush1.bf16.msra.mxu0 0
        %2193 = vmatprep.subr.bf16.mxu0 0
        %2194 = vmatpush1.bf16.msra.mxu0 0
        %2195 = vmatprep.mubr.bf16.mxu0 0
        %2196 = vmatmul.mubr.bf16.gmra.mrb[0].mxu0 %v2082
        %v2197 = vpop.f32.mrb[0].mxu0
        %v2198 = vadd.f32 0.0, %v2197
        %v2199 = vpop.f32.mrb[0].mxu0
        %v2200 = vpop.f32.mrb[0].mxu0
        %v2201 = vadd.f32 0.0, %v2200
        %v2202 = vpop.f32.mrb[0].mxu0
        %2203 = vmatprep.mubr.bf16.mxu0 0
        %2204 = vmatmul.mubr.bf16.gmra.mrb[0].mxu0 %v2083
        %v2205 = vpop.f32.mrb[0].mxu0
        %v2206 = vadd.f32 0.0, %v2205
        %v2207 = vpop.f32.mrb[0].mxu0
        %v2208 = vpop.f32.mrb[0].mxu0
        %v2209 = vadd.f32 0.0, %v2208
        %v2210 = vpop.f32.mrb[0].mxu0
        %2211 = vmatprep.mubr.bf16.mxu0 0
        %2212 = vmatmul.mubr.bf16.gmra.mrb[0].mxu0 %v2084
        %v2213 = vpop.f32.mrb[0].mxu0
        %v2214 = vadd.f32 0.0, %v2213
        %v2215 = vpop.f32.mrb[0].mxu0
        %v2216 = vpop.f32.mrb[0].mxu0
        %v2217 = vadd.f32 0.0, %v2216
        %v2218 = vpop.f32.mrb[0].mxu0
        %2219 = vmatprep.mubr.bf16.mxu0 0
        %2220 = vmatmul.mubr.bf16.gmra.mrb[0].mxu0 %v2085
        %v2221 = vpop.f32.mrb[0].mxu0
        %v2222 = vadd.f32 0.0, %v2221
        %v2223 = vpop.f32.mrb[0].mxu0
        %v2224 = vpop.f32.mrb[0].mxu0
        %v2225 = vadd.f32 0.0, %v2224
        %v2226 = vpop.f32.mrb[0].mxu0
        %2227 = vmatprep.mubr.bf16.mxu0 0
        %2228 = vmatmul.mubr.bf16.gmra.mrb[0].mxu0 %v2086
        %v2229 = vpop.f32.mrb[0].mxu0
        %v2230 = vadd.f32 0.0, %v2229
        %v2231 = vpop.f32.mrb[0].mxu0
        %v2232 = vpop.f32.mrb[0].mxu0
        %v2233 = vadd.f32 0.0, %v2232
        %v2234 = vpop.f32.mrb[0].mxu0
        %2235 = vmatprep.mubr.bf16.mxu0 0
        %2236 = vmatmul.mubr.bf16.gmra.mrb[0].mxu0 %v2087
        %v2237 = vpop.f32.mrb[0].mxu0
        %v2238 = vadd.f32 0.0, %v2237
        %v2239 = vpop.f32.mrb[0].mxu0
        %v2240 = vpop.f32.mrb[0].mxu0
        %v2241 = vadd.f32 0.0, %v2240
        %v2242 = vpop.f32.mrb[0].mxu0
        %2243 = vmatprep.mubr.bf16.mxu0 0
        %2244 = vmatmul.mubr.bf16.gmra.mrb[0].mxu0 %v2088
        %v2245 = vpop.f32.mrb[0].mxu0
        %v2246 = vadd.f32 0.0, %v2245
        %v2247 = vpop.f32.mrb[0].mxu0
        %v2248 = vpop.f32.mrb[0].mxu0
        %v2249 = vadd.f32 0.0, %v2248
        %v2250 = vpop.f32.mrb[0].mxu0
        %2251 = vmatprep.mubr.bf16.mxu0 0
        %2252 = vmatmul.mubr.bf16.gmra.mrb[0].mxu0 %v2089
        %v2253 = vpop.f32.mrb[0].mxu0
        %v2254 = vadd.f32 0.0, %v2253
        %v2255 = vpop.f32.mrb[0].mxu0
        %v2256 = vpop.f32.mrb[0].mxu0
        %v2257 = vadd.f32 0.0, %v2256
        %v2258 = vpop.f32.mrb[0].mxu0
        %2259 = vmatprep.mubr.bf16.mxu0 0
        %2260 = vmatmul.mubr.bf16.gmra.mrb[0].mxu0 %v2090
        %v2261 = vpop.f32.mrb[0].mxu0
        %v2262 = vadd.f32 0.0, %v2261
        %v2263 = vpop.f32.mrb[0].mxu0
        %v2264 = vpop.f32.mrb[0].mxu0
        %v2265 = vadd.f32 0.0, %v2264
        %v2266 = vpop.f32.mrb[0].mxu0
        %2267 = vmatprep.mubr.bf16.mxu0 0
        %2268 = vmatmul.mubr.bf16.gmra.mrb[0].mxu0 %v2091
        %v2269 = vpop.f32.mrb[0].mxu0
        %v2270 = vadd.f32 0.0, %v2269
        %v2271 = vpop.f32.mrb[0].mxu0
        %v2272 = vpop.f32.mrb[0].mxu0
        %v2273 = vadd.f32 0.0, %v2272
        %v2274 = vpop.f32.mrb[0].mxu0
        %2275 = vmatprep.mubr.bf16.mxu0 0
        %2276 = vmatmul.mubr.bf16.gmra.mrb[0].mxu0 %v2092
        %v2277 = vpop.f32.mrb[0].mxu0
        %v2278 = vadd.f32 0.0, %v2277
        %v2279 = vpop.f32.mrb[0].mxu0
        %v2280 = vpop.f32.mrb[0].mxu0
        %v2281 = vadd.f32 0.0, %v2280
        %v2282 = vpop.f32.mrb[0].mxu0
        %2283 = vmatprep.mubr.bf16.mxu0 0
        %2284 = vmatmul.mubr.bf16.gmra.mrb[0].mxu0 %v2093
        %v2285 = vpop.f32.mrb[0].mxu0
        %v2286 = vadd.f32 0.0, %v2285
        %v2287 = vpop.f32.mrb[0].mxu0
        %v2288 = vpop.f32.mrb[0].mxu0
        %v2289 = vadd.f32 0.0, %v2288
        %v2290 = vpop.f32.mrb[0].mxu0
        %2291 = vmatprep.mubr.bf16.mxu0 0
        %2292 = vmatmul.mubr.bf16.gmra.mrb[0].mxu0 %v2094
        %v2293 = vpop.f32.mrb[0].mxu0
        %v2294 = vadd.f32 0.0, %v2293
        %v2295 = vpop.f32.mrb[0].mxu0
        %v2296 = vpop.f32.mrb[0].mxu0
        %v2297 = vadd.f32 0.0, %v2296
        %v2298 = vpop.f32.mrb[0].mxu0
        %2299 = vmatprep.mubr.bf16.mxu0 0
        %2300 = vmatmul.mubr.bf16.gmra.mrb[0].mxu0 %v2095
        %v2301 = vpop.f32.mrb[0].mxu0
        %v2302 = vadd.f32 0.0, %v2301
        %v2303 = vpop.f32.mrb[0].mxu0
        %v2304 = vpop.f32.mrb[0].mxu0
        %v2305 = vadd.f32 0.0, %v2304
        %v2306 = vpop.f32.mrb[0].mxu0
        %2307 = vmatprep.mubr.bf16.mxu0 0
        %2308 = vmatmul.mubr.bf16.gmra.mrb[0].mxu0 %v2096
        %v2309 = vpop.f32.mrb[0].mxu0
        %v2310 = vadd.f32 0.0, %v2309
        %v2311 = vpop.f32.mrb[0].mxu0
        %v2312 = vpop.f32.mrb[0].mxu0
        %v2313 = vadd.f32 0.0, %v2312
        %v2314 = vpop.f32.mrb[0].mxu0
        %2315 = vmatprep.mubr.bf16.mxu0 0
        %2316 = vmatmul.mubr.bf16.gmra.mrb[0].mxu0 %v2097
        %v2317 = vpop.f32.mrb[0].mxu0
        %v2318 = vadd.f32 0.0, %v2317
        %v2319 = vpop.f32.mrb[0].mxu0
        %v2320 = vpop.f32.mrb[0].mxu0
        %v2321 = vadd.f32 0.0, %v2320
        %v2322 = vpop.f32.mrb[0].mxu0
        %2323 = vdwg.mxu0
        %v2324 = vadd.f32 %v2018, %v2198
        %v2325 = vadd.f32 %v2019, %v2201
        %v2326 = vadd.f32 %v2020, %v2206
        %v2327 = vadd.f32 %v2021, %v2209
        %v2328 = vadd.f32 %v2022, %v2214
        %v2329 = vadd.f32 %v2023, %v2217
        %v2330 = vadd.f32 %v2024, %v2222
        %v2331 = vadd.f32 %v2025, %v2225
        %v2332 = vadd.f32 %v2026, %v2230
        %v2333 = vadd.f32 %v2027, %v2233
        %v2334 = vadd.f32 %v2028, %v2238
        %v2335 = vadd.f32 %v2029, %v2241
        %v2336 = vadd.f32 %v2030, %v2246
        %v2337 = vadd.f32 %v2031, %v2249
        %v2338 = vadd.f32 %v2032, %v2254
        %v2339 = vadd.f32 %v2033, %v2257
        %v2340 = vadd.f32 %v2034, %v2262
        %v2341 = vadd.f32 %v2035, %v2265
        %v2342 = vadd.f32 %v2036, %v2270
        %v2343 = vadd.f32 %v2037, %v2273
        %v2344 = vadd.f32 %v2038, %v2278
        %v2345 = vadd.f32 %v2039, %v2281
        %v2346 = vadd.f32 %v2040, %v2286
        %v2347 = vadd.f32 %v2041, %v2289
        %v2348 = vadd.f32 %v2042, %v2294
        %v2349 = vadd.f32 %v2043, %v2297
        %v2350 = vadd.f32 %v2044, %v2302
        %v2351 = vadd.f32 %v2045, %v2305
        %v2352 = vadd.f32 %v2046, %v2310
        %v2353 = vadd.f32 %v2047, %v2313
        %v2354 = vadd.f32 %v2048, %v2318
        %v2355 = vadd.f32 %v2049, %v2321
        %v2356 = vld [vmem:[%s858 + $0x2] sm:$0xff]
        %v2357 = vld [vmem:[%s858 + $0xa] sm:$0xff]
        %v2358 = vld [vmem:[%s858 + $0x1a] sm:$0xff]
        %v2359 = vld [vmem:[%s858 + $0x22] sm:$0xff]
        %v2360 = vld [vmem:[%s858 + $0x32] sm:$0xff]
        %v2361 = vld [vmem:[%s858 + $0x3a] sm:$0xff]
        %v2362 = vld [vmem:[%s858 + $0x4a] sm:$0xff]
        %v2363 = vld [vmem:[%s858 + $0x52] sm:$0xff]
        %v2364 = vld [vmem:[%s858 + $0x62] sm:$0xff]
        %v2365 = vld [vmem:[%s858 + $0x6a] sm:$0xff]
        %v2366 = vld [vmem:[%s858 + $0x7a] sm:$0xff]
        %v2367 = vld [vmem:[%s858 + $0x82] sm:$0xff]
        %v2368 = vld [vmem:[%s858 + $0x92] sm:$0xff]
        %v2369 = vld [vmem:[%s858 + $0x9a] sm:$0xff]
        %v2370 = vld [vmem:[%s858 + $0xaa] sm:$0xff]
        %v2371 = vld [vmem:[%s858 + $0xb2] sm:$0xff]
        %v2372 = vld [vmem:[%s858 + $0xc2] sm:$0xff]
        %v2373 = vld [vmem:[%s858 + $0xca] sm:$0xff]
        %v2374 = vld [vmem:[%s858 + $0xda] sm:$0xff]
        %v2375 = vld [vmem:[%s858 + $0xe2] sm:$0xff]
        %v2376 = vld [vmem:[%s858 + $0xf2] sm:$0xff]
        %v2377 = vld [vmem:[%s858 + $0xfa] sm:$0xff]
        %v2378 = vld [vmem:[%s858 + $0x10a] sm:$0xff]
        %v2379 = vld [vmem:[%s858 + $0x112] sm:$0xff]
        %v2380 = vld [vmem:[%s858 + $0x122] sm:$0xff]
        %v2381 = vld [vmem:[%s858 + $0x12a] sm:$0xff]
        %v2382 = vld [vmem:[%s858 + $0x13a] sm:$0xff]
        %v2383 = vld [vmem:[%s858 + $0x142] sm:$0xff]
        %v2384 = vld [vmem:[%s858 + $0x152] sm:$0xff]
        %v2385 = vld [vmem:[%s858 + $0x15a] sm:$0xff]
        %v2386 = vld [vmem:[%s858 + $0x16a] sm:$0xff]
        %v2387 = vld [vmem:[%s858 + $0x172] sm:$0xff]
        %v2388 = vpack.c.bf16 %v2357, %v2356
        %v2389 = vpack.c.bf16 %v2359, %v2358
        %v2390 = vpack.c.bf16 %v2361, %v2360
        %v2391 = vpack.c.bf16 %v2363, %v2362
        %v2392 = vpack.c.bf16 %v2365, %v2364
        %v2393 = vpack.c.bf16 %v2367, %v2366
        %v2394 = vpack.c.bf16 %v2369, %v2368
        %v2395 = vpack.c.bf16 %v2371, %v2370
        %v2396 = vpack.c.bf16 %v2373, %v2372
        %v2397 = vpack.c.bf16 %v2375, %v2374
        %v2398 = vpack.c.bf16 %v2377, %v2376
        %v2399 = vpack.c.bf16 %v2379, %v2378
        %v2400 = vpack.c.bf16 %v2381, %v2380
        %v2401 = vpack.c.bf16 %v2383, %v2382
        %v2402 = vpack.c.bf16 %v2385, %v2384
        %v2403 = vpack.c.bf16 %v2387, %v2386
        %s2404 = scalar_lea.vmem [#allocation8], 320
        %v2405 = vld [vmem:[%s2404] sm:$0xf]
        %v2406 = vld [vmem:[%s2404 + $0x4] sm:$0xf]
        %v2407 = vld [vmem:[%s2404 + $0x8] sm:$0xf]
        %v2408 = vld [vmem:[%s2404 + $0xc] sm:$0xf]
        %v2409 = vld [vmem:[%s2404 + $0x10] sm:$0xf]
        %v2410 = vld [vmem:[%s2404 + $0x14] sm:$0xf]
        %v2411 = vld [vmem:[%s2404 + $0x18] sm:$0xf]
        %v2412 = vld [vmem:[%s2404 + $0x1c] sm:$0xf]
        %v2413 = vld [vmem:[%s2404 + $0x20] sm:$0xf]
        %v2414 = vld [vmem:[%s2404 + $0x24] sm:$0xf]
        %v2415 = vld [vmem:[%s2404 + $0x28] sm:$0xf]
        %v2416 = vld [vmem:[%s2404 + $0x2c] sm:$0xf]
        %v2417 = vld [vmem:[%s2404 + $0x30] sm:$0xf]
        %v2418 = vld [vmem:[%s2404 + $0x34] sm:$0xf]
        %v2419 = vld [vmem:[%s2404 + $0x38] sm:$0xf]
        %v2420 = vld [vmem:[%s2404 + $0x3c] sm:$0xf]
        %v2437 = vunpack.c.l.b16 %v2405
        %v2438 = vunpack.c.l.b16 %v2406
        %v2439 = vunpack.c.l.b16 %v2407
        %v2440 = vunpack.c.l.b16 %v2408
        %v2441 = vunpack.c.l.b16 %v2409
        %v2442 = vunpack.c.l.b16 %v2410
        %v2443 = vunpack.c.l.b16 %v2411
        %v2444 = vunpack.c.l.b16 %v2412
        %v2445 = vunpack.c.l.b16 %v2413
        %v2446 = vunpack.c.l.b16 %v2414
        %v2447 = vunpack.c.l.b16 %v2415
        %v2448 = vunpack.c.l.b16 %v2416
        %v2449 = vunpack.c.l.b16 %v2417
        %v2450 = vunpack.c.l.b16 %v2418
        %v2451 = vunpack.c.l.b16 %v2419
        %v2452 = vunpack.c.l.b16 %v2420
        %v2453 = vpack.c.b16 %v2438, %v2437
        %v2454 = vpack.c.b16 %v2440, %v2439
        %v2455 = vpack.c.b16 %v2442, %v2441
        %v2456 = vpack.c.b16 %v2444, %v2443
        %v2457 = vpack.c.b16 %v2446, %v2445
        %v2458 = vpack.c.b16 %v2448, %v2447
        %v2459 = vpack.c.b16 %v2450, %v2449
        %v2460 = vpack.c.b16 %v2452, %v2451
        %2469 = vmatprep.subr.bf16.mxu0 0
        %2470 = vmatpush1.bf16.msra.mxu0 %v2453
        %2471 = vmatprep.subr.bf16.mxu0 0
        %2472 = vmatpush1.bf16.msra.mxu0 %v2454
        %2473 = vmatprep.subr.bf16.mxu0 0
        %2474 = vmatpush1.bf16.msra.mxu0 %v2455
        %2475 = vmatprep.subr.bf16.mxu0 0
        %2476 = vmatpush1.bf16.msra.mxu0 %v2456
        %2477 = vmatprep.subr.bf16.mxu0 0
        %2478 = vmatpush1.bf16.msra.mxu0 %v2457
        %2479 = vmatprep.subr.bf16.mxu0 0
        %2480 = vmatpush1.bf16.msra.mxu0 %v2458
        %2481 = vmatprep.subr.bf16.mxu0 0
        %2482 = vmatpush1.bf16.msra.mxu0 %v2459
        %2483 = vmatprep.subr.bf16.mxu0 0
        %2484 = vmatpush1.bf16.msra.mxu0 %v2460
        %2485 = vmatprep.subr.bf16.mxu0 0
        %2486 = vmatpush1.bf16.msra.mxu0 0
        %2487 = vmatprep.subr.bf16.mxu0 0
        %2488 = vmatpush1.bf16.msra.mxu0 0
        %2489 = vmatprep.subr.bf16.mxu0 0
        %2490 = vmatpush1.bf16.msra.mxu0 0
        %2491 = vmatprep.subr.bf16.mxu0 0
        %2492 = vmatpush1.bf16.msra.mxu0 0
        %2493 = vmatprep.subr.bf16.mxu0 0
        %2494 = vmatpush1.bf16.msra.mxu0 0
        %2495 = vmatprep.subr.bf16.mxu0 0
        %2496 = vmatpush1.bf16.msra.mxu0 0
        %2497 = vmatprep.subr.bf16.mxu0 0
        %2498 = vmatpush1.bf16.msra.mxu0 0
        %2499 = vmatprep.subr.bf16.mxu0 0
        %2500 = vmatpush1.bf16.msra.mxu0 0
        %2501 = vmatprep.mubr.bf16.mxu0 0
        %2502 = vmatmul.mubr.bf16.gmra.mrb[0].mxu0 %v2388
        %v2503 = vpop.f32.mrb[0].mxu0
        %v2504 = vadd.f32 0.0, %v2503
        %v2505 = vpop.f32.mrb[0].mxu0
        %v2506 = vpop.f32.mrb[0].mxu0
        %v2507 = vadd.f32 0.0, %v2506
        %v2508 = vpop.f32.mrb[0].mxu0
        %2509 = vmatprep.mubr.bf16.mxu0 0
        %2510 = vmatmul.mubr.bf16.gmra.mrb[0].mxu0 %v2389
        %v2511 = vpop.f32.mrb[0].mxu0
        %v2512 = vadd.f32 0.0, %v2511
        %v2513 = vpop.f32.mrb[0].mxu0
        %v2514 = vpop.f32.mrb[0].mxu0
        %v2515 = vadd.f32 0.0, %v2514
        %v2516 = vpop.f32.mrb[0].mxu0
        %2517 = vmatprep.mubr.bf16.mxu0 0
        %2518 = vmatmul.mubr.bf16.gmra.mrb[0].mxu0 %v2390
        %v2519 = vpop.f32.mrb[0].mxu0
        %v2520 = vadd.f32 0.0, %v2519
        %v2521 = vpop.f32.mrb[0].mxu0
        %v2522 = vpop.f32.mrb[0].mxu0
        %v2523 = vadd.f32 0.0, %v2522
        %v2524 = vpop.f32.mrb[0].mxu0
        %2525 = vmatprep.mubr.bf16.mxu0 0
        %2526 = vmatmul.mubr.bf16.gmra.mrb[0].mxu0 %v2391
        %v2527 = vpop.f32.mrb[0].mxu0
        %v2528 = vadd.f32 0.0, %v2527
        %v2529 = vpop.f32.mrb[0].mxu0
        %v2530 = vpop.f32.mrb[0].mxu0
        %v2531 = vadd.f32 0.0, %v2530
        %v2532 = vpop.f32.mrb[0].mxu0
        %2533 = vmatprep.mubr.bf16.mxu0 0
        %2534 = vmatmul.mubr.bf16.gmra.mrb[0].mxu0 %v2392
        %v2535 = vpop.f32.mrb[0].mxu0
        %v2536 = vadd.f32 0.0, %v2535
        %v2537 = vpop.f32.mrb[0].mxu0
        %v2538 = vpop.f32.mrb[0].mxu0
        %v2539 = vadd.f32 0.0, %v2538
        %v2540 = vpop.f32.mrb[0].mxu0
        %2541 = vmatprep.mubr.bf16.mxu0 0
        %2542 = vmatmul.mubr.bf16.gmra.mrb[0].mxu0 %v2393
        %v2543 = vpop.f32.mrb[0].mxu0
        %v2544 = vadd.f32 0.0, %v2543
        %v2545 = vpop.f32.mrb[0].mxu0
        %v2546 = vpop.f32.mrb[0].mxu0
        %v2547 = vadd.f32 0.0, %v2546
        %v2548 = vpop.f32.mrb[0].mxu0
        %2549 = vmatprep.mubr.bf16.mxu0 0
        %2550 = vmatmul.mubr.bf16.gmra.mrb[0].mxu0 %v2394
        %v2551 = vpop.f32.mrb[0].mxu0
        %v2552 = vadd.f32 0.0, %v2551
        %v2553 = vpop.f32.mrb[0].mxu0
        %v2554 = vpop.f32.mrb[0].mxu0
        %v2555 = vadd.f32 0.0, %v2554
        %v2556 = vpop.f32.mrb[0].mxu0
        %2557 = vmatprep.mubr.bf16.mxu0 0
        %2558 = vmatmul.mubr.bf16.gmra.mrb[0].mxu0 %v2395
        %v2559 = vpop.f32.mrb[0].mxu0
        %v2560 = vadd.f32 0.0, %v2559
        %v2561 = vpop.f32.mrb[0].mxu0
        %v2562 = vpop.f32.mrb[0].mxu0
        %v2563 = vadd.f32 0.0, %v2562
        %v2564 = vpop.f32.mrb[0].mxu0
        %2565 = vmatprep.mubr.bf16.mxu0 0
        %2566 = vmatmul.mubr.bf16.gmra.mrb[0].mxu0 %v2396
        %v2567 = vpop.f32.mrb[0].mxu0
        %v2568 = vadd.f32 0.0, %v2567
        %v2569 = vpop.f32.mrb[0].mxu0
        %v2570 = vpop.f32.mrb[0].mxu0
        %v2571 = vadd.f32 0.0, %v2570
        %v2572 = vpop.f32.mrb[0].mxu0
        %2573 = vmatprep.mubr.bf16.mxu0 0
        %2574 = vmatmul.mubr.bf16.gmra.mrb[0].mxu0 %v2397
        %v2575 = vpop.f32.mrb[0].mxu0
        %v2576 = vadd.f32 0.0, %v2575
        %v2577 = vpop.f32.mrb[0].mxu0
        %v2578 = vpop.f32.mrb[0].mxu0
        %v2579 = vadd.f32 0.0, %v2578
        %v2580 = vpop.f32.mrb[0].mxu0
        %2581 = vmatprep.mubr.bf16.mxu0 0
        %2582 = vmatmul.mubr.bf16.gmra.mrb[0].mxu0 %v2398
        %v2583 = vpop.f32.mrb[0].mxu0
        %v2584 = vadd.f32 0.0, %v2583
        %v2585 = vpop.f32.mrb[0].mxu0
        %v2586 = vpop.f32.mrb[0].mxu0
        %v2587 = vadd.f32 0.0, %v2586
        %v2588 = vpop.f32.mrb[0].mxu0
        %2589 = vmatprep.mubr.bf16.mxu0 0
        %2590 = vmatmul.mubr.bf16.gmra.mrb[0].mxu0 %v2399
        %v2591 = vpop.f32.mrb[0].mxu0
        %v2592 = vadd.f32 0.0, %v2591
        %v2593 = vpop.f32.mrb[0].mxu0
        %v2594 = vpop.f32.mrb[0].mxu0
        %v2595 = vadd.f32 0.0, %v2594
        %v2596 = vpop.f32.mrb[0].mxu0
        %2597 = vmatprep.mubr.bf16.mxu0 0
        %2598 = vmatmul.mubr.bf16.gmra.mrb[0].mxu0 %v2400
        %v2599 = vpop.f32.mrb[0].mxu0
        %v2600 = vadd.f32 0.0, %v2599
        %v2601 = vpop.f32.mrb[0].mxu0
        %v2602 = vpop.f32.mrb[0].mxu0
        %v2603 = vadd.f32 0.0, %v2602
        %v2604 = vpop.f32.mrb[0].mxu0
        %2605 = vmatprep.mubr.bf16.mxu0 0
        %2606 = vmatmul.mubr.bf16.gmra.mrb[0].mxu0 %v2401
        %v2607 = vpop.f32.mrb[0].mxu0
        %v2608 = vadd.f32 0.0, %v2607
        %v2609 = vpop.f32.mrb[0].mxu0
        %v2610 = vpop.f32.mrb[0].mxu0
        %v2611 = vadd.f32 0.0, %v2610
        %v2612 = vpop.f32.mrb[0].mxu0
        %2613 = vmatprep.mubr.bf16.mxu0 0
        %2614 = vmatmul.mubr.bf16.gmra.mrb[0].mxu0 %v2402
        %v2615 = vpop.f32.mrb[0].mxu0
        %v2616 = vadd.f32 0.0, %v2615
        %v2617 = vpop.f32.mrb[0].mxu0
        %v2618 = vpop.f32.mrb[0].mxu0
        %v2619 = vadd.f32 0.0, %v2618
        %v2620 = vpop.f32.mrb[0].mxu0
        %2621 = vmatprep.mubr.bf16.mxu0 0
        %2622 = vmatmul.mubr.bf16.gmra.mrb[0].mxu0 %v2403
        %v2623 = vpop.f32.mrb[0].mxu0
        %v2624 = vadd.f32 0.0, %v2623
        %v2625 = vpop.f32.mrb[0].mxu0
        %v2626 = vpop.f32.mrb[0].mxu0
        %v2627 = vadd.f32 0.0, %v2626
        %v2628 = vpop.f32.mrb[0].mxu0
        %2629 = vdwg.mxu0
        %v2630 = vadd.f32 %v2324, %v2504
        %v2631 = vadd.f32 %v2325, %v2507
        %v2632 = vadd.f32 %v2326, %v2512
        %v2633 = vadd.f32 %v2327, %v2515
        %v2634 = vadd.f32 %v2328, %v2520
        %v2635 = vadd.f32 %v2329, %v2523
        %v2636 = vadd.f32 %v2330, %v2528
        %v2637 = vadd.f32 %v2331, %v2531
        %v2638 = vadd.f32 %v2332, %v2536
        %v2639 = vadd.f32 %v2333, %v2539
        %v2640 = vadd.f32 %v2334, %v2544
        %v2641 = vadd.f32 %v2335, %v2547
        %v2642 = vadd.f32 %v2336, %v2552
        %v2643 = vadd.f32 %v2337, %v2555
        %v2644 = vadd.f32 %v2338, %v2560
        %v2645 = vadd.f32 %v2339, %v2563
        %v2646 = vadd.f32 %v2340, %v2568
        %v2647 = vadd.f32 %v2341, %v2571
        %v2648 = vadd.f32 %v2342, %v2576
        %v2649 = vadd.f32 %v2343, %v2579
        %v2650 = vadd.f32 %v2344, %v2584
        %v2651 = vadd.f32 %v2345, %v2587
        %v2652 = vadd.f32 %v2346, %v2592
        %v2653 = vadd.f32 %v2347, %v2595
        %v2654 = vadd.f32 %v2348, %v2600
        %v2655 = vadd.f32 %v2349, %v2603
        %v2656 = vadd.f32 %v2350, %v2608
        %v2657 = vadd.f32 %v2351, %v2611
        %v2658 = vadd.f32 %v2352, %v2616
        %v2659 = vadd.f32 %v2353, %v2619
        %v2660 = vadd.f32 %v2354, %v2624
        %v2661 = vadd.f32 %v2355, %v2627
        %s2662 = scalar_lea.vmem [#allocation2], 48
        %v2663 = vld [vmem:[%s2662] sm:$0xff]
        %v2664 = vld [vmem:[%s2662 + $0x8] sm:$0xff]
        %v2665 = vld [vmem:[%s2662 + $0x18] sm:$0xff]
        %v2666 = vld [vmem:[%s2662 + $0x20] sm:$0xff]
        %v2667 = vld [vmem:[%s2662 + $0x30] sm:$0xff]
        %v2668 = vld [vmem:[%s2662 + $0x38] sm:$0xff]
        %v2669 = vld [vmem:[%s2662 + $0x48] sm:$0xff]
        %v2670 = vld [vmem:[%s2662 + $0x50] sm:$0xff]
        %v2671 = vld [vmem:[%s2662 + $0x60] sm:$0xff]
        %v2672 = vld [vmem:[%s2662 + $0x68] sm:$0xff]
        %v2673 = vld [vmem:[%s2662 + $0x78] sm:$0xff]
        %v2674 = vld [vmem:[%s2662 + $0x80] sm:$0xff]
        %v2675 = vld [vmem:[%s2662 + $0x90] sm:$0xff]
        %v2676 = vld [vmem:[%s2662 + $0x98] sm:$0xff]
        %v2677 = vld [vmem:[%s2662 + $0xa8] sm:$0xff]
        %v2678 = vld [vmem:[%s2662 + $0xb0] sm:$0xff]
        %v2679 = vld [vmem:[%s2662 + $0xc0] sm:$0xff]
        %v2680 = vld [vmem:[%s2662 + $0xc8] sm:$0xff]
        %v2681 = vld [vmem:[%s2662 + $0xd8] sm:$0xff]
        %v2682 = vld [vmem:[%s2662 + $0xe0] sm:$0xff]
        %v2683 = vld [vmem:[%s2662 + $0xf0] sm:$0xff]
        %v2684 = vld [vmem:[%s2662 + $0xf8] sm:$0xff]
        %v2685 = vld [vmem:[%s2662 + $0x108] sm:$0xff]
        %v2686 = vld [vmem:[%s2662 + $0x110] sm:$0xff]
        %v2687 = vld [vmem:[%s2662 + $0x120] sm:$0xff]
        %v2688 = vld [vmem:[%s2662 + $0x128] sm:$0xff]
        %v2689 = vld [vmem:[%s2662 + $0x138] sm:$0xff]
        %v2690 = vld [vmem:[%s2662 + $0x140] sm:$0xff]
        %v2691 = vld [vmem:[%s2662 + $0x150] sm:$0xff]
        %v2692 = vld [vmem:[%s2662 + $0x158] sm:$0xff]
        %v2693 = vld [vmem:[%s2662 + $0x168] sm:$0xff]
        %v2694 = vld [vmem:[%s2662 + $0x170] sm:$0xff]
        %v2695 = vpack.c.bf16 %v2664, %v2663
        %v2696 = vpack.c.bf16 %v2666, %v2665
        %v2697 = vpack.c.bf16 %v2668, %v2667
        %v2698 = vpack.c.bf16 %v2670, %v2669
        %v2699 = vpack.c.bf16 %v2672, %v2671
        %v2700 = vpack.c.bf16 %v2674, %v2673
        %v2701 = vpack.c.bf16 %v2676, %v2675
        %v2702 = vpack.c.bf16 %v2678, %v2677
        %v2703 = vpack.c.bf16 %v2680, %v2679
        %v2704 = vpack.c.bf16 %v2682, %v2681
        %v2705 = vpack.c.bf16 %v2684, %v2683
        %v2706 = vpack.c.bf16 %v2686, %v2685
        %v2707 = vpack.c.bf16 %v2688, %v2687
        %v2708 = vpack.c.bf16 %v2690, %v2689
        %v2709 = vpack.c.bf16 %v2692, %v2691
        %v2710 = vpack.c.bf16 %v2694, %v2693
        %s2711 = scalar_lea.vmem [#allocation8], 384
        %v2712 = vld [vmem:[%s2711] sm:$0xf]
        %v2713 = vld [vmem:[%s2711 + $0x4] sm:$0xf]
        %v2714 = vld [vmem:[%s2711 + $0x8] sm:$0xf]
        %v2715 = vld [vmem:[%s2711 + $0xc] sm:$0xf]
        %v2716 = vld [vmem:[%s2711 + $0x10] sm:$0xf]
        %v2717 = vld [vmem:[%s2711 + $0x14] sm:$0xf]
        %v2718 = vld [vmem:[%s2711 + $0x18] sm:$0xf]
        %v2719 = vld [vmem:[%s2711 + $0x1c] sm:$0xf]
        %v2720 = vld [vmem:[%s2711 + $0x20] sm:$0xf]
        %v2721 = vld [vmem:[%s2711 + $0x24] sm:$0xf]
        %v2722 = vld [vmem:[%s2711 + $0x28] sm:$0xf]
        %v2723 = vld [vmem:[%s2711 + $0x2c] sm:$0xf]
        %v2724 = vld [vmem:[%s2711 + $0x30] sm:$0xf]
        %v2725 = vld [vmem:[%s2711 + $0x34] sm:$0xf]
        %v2726 = vld [vmem:[%s2711 + $0x38] sm:$0xf]
        %v2727 = vld [vmem:[%s2711 + $0x3c] sm:$0xf]
        %v2744 = vunpack.c.l.b16 %v2712
        %v2745 = vunpack.c.l.b16 %v2713
        %v2746 = vunpack.c.l.b16 %v2714
        %v2747 = vunpack.c.l.b16 %v2715
        %v2748 = vunpack.c.l.b16 %v2716
        %v2749 = vunpack.c.l.b16 %v2717
        %v2750 = vunpack.c.l.b16 %v2718
        %v2751 = vunpack.c.l.b16 %v2719
        %v2752 = vunpack.c.l.b16 %v2720
        %v2753 = vunpack.c.l.b16 %v2721
        %v2754 = vunpack.c.l.b16 %v2722
        %v2755 = vunpack.c.l.b16 %v2723
        %v2756 = vunpack.c.l.b16 %v2724
        %v2757 = vunpack.c.l.b16 %v2725
        %v2758 = vunpack.c.l.b16 %v2726
        %v2759 = vunpack.c.l.b16 %v2727
        %v2760 = vpack.c.b16 %v2745, %v2744
        %v2761 = vpack.c.b16 %v2747, %v2746
        %v2762 = vpack.c.b16 %v2749, %v2748
        %v2763 = vpack.c.b16 %v2751, %v2750
        %v2764 = vpack.c.b16 %v2753, %v2752
        %v2765 = vpack.c.b16 %v2755, %v2754
        %v2766 = vpack.c.b16 %v2757, %v2756
        %v2767 = vpack.c.b16 %v2759, %v2758
        %2776 = vmatprep.subr.bf16.mxu0 0
        %2777 = vmatpush1.bf16.msra.mxu0 %v2760
        %2778 = vmatprep.subr.bf16.mxu0 0
        %2779 = vmatpush1.bf16.msra.mxu0 %v2761
        %2780 = vmatprep.subr.bf16.mxu0 0
        %2781 = vmatpush1.bf16.msra.mxu0 %v2762
        %2782 = vmatprep.subr.bf16.mxu0 0
        %2783 = vmatpush1.bf16.msra.mxu0 %v2763
        %2784 = vmatprep.subr.bf16.mxu0 0
        %2785 = vmatpush1.bf16.msra.mxu0 %v2764
        %2786 = vmatprep.subr.bf16.mxu0 0
        %2787 = vmatpush1.bf16.msra.mxu0 %v2765
        %2788 = vmatprep.subr.bf16.mxu0 0
        %2789 = vmatpush1.bf16.msra.mxu0 %v2766
        %2790 = vmatprep.subr.bf16.mxu0 0
        %2791 = vmatpush1.bf16.msra.mxu0 %v2767
        %2792 = vmatprep.subr.bf16.mxu0 0
        %2793 = vmatpush1.bf16.msra.mxu0 0
        %2794 = vmatprep.subr.bf16.mxu0 0
        %2795 = vmatpush1.bf16.msra.mxu0 0
        %2796 = vmatprep.subr.bf16.mxu0 0
        %2797 = vmatpush1.bf16.msra.mxu0 0
        %2798 = vmatprep.subr.bf16.mxu0 0
        %2799 = vmatpush1.bf16.msra.mxu0 0
        %2800 = vmatprep.subr.bf16.mxu0 0
        %2801 = vmatpush1.bf16.msra.mxu0 0
        %2802 = vmatprep.subr.bf16.mxu0 0
        %2803 = vmatpush1.bf16.msra.mxu0 0
        %2804 = vmatprep.subr.bf16.mxu0 0
        %2805 = vmatpush1.bf16.msra.mxu0 0
        %2806 = vmatprep.subr.bf16.mxu0 0
        %2807 = vmatpush1.bf16.msra.mxu0 0
        %2808 = vmatprep.mubr.bf16.mxu0 0
        %2809 = vmatmul.mubr.bf16.gmra.mrb[0].mxu0 %v2695
        %v2810 = vpop.f32.mrb[0].mxu0
        %v2811 = vadd.f32 0.0, %v2810
        %v2812 = vpop.f32.mrb[0].mxu0
        %v2813 = vpop.f32.mrb[0].mxu0
        %v2814 = vadd.f32 0.0, %v2813
        %v2815 = vpop.f32.mrb[0].mxu0
        %2816 = vmatprep.mubr.bf16.mxu0 0
        %2817 = vmatmul.mubr.bf16.gmra.mrb[0].mxu0 %v2696
        %v2818 = vpop.f32.mrb[0].mxu0
        %v2819 = vadd.f32 0.0, %v2818
        %v2820 = vpop.f32.mrb[0].mxu0
        %v2821 = vpop.f32.mrb[0].mxu0
        %v2822 = vadd.f32 0.0, %v2821
        %v2823 = vpop.f32.mrb[0].mxu0
        %2824 = vmatprep.mubr.bf16.mxu0 0
        %2825 = vmatmul.mubr.bf16.gmra.mrb[0].mxu0 %v2697
        %v2826 = vpop.f32.mrb[0].mxu0
        %v2827 = vadd.f32 0.0, %v2826
        %v2828 = vpop.f32.mrb[0].mxu0
        %v2829 = vpop.f32.mrb[0].mxu0
        %v2830 = vadd.f32 0.0, %v2829
        %v2831 = vpop.f32.mrb[0].mxu0
        %2832 = vmatprep.mubr.bf16.mxu0 0
        %2833 = vmatmul.mubr.bf16.gmra.mrb[0].mxu0 %v2698
        %v2834 = vpop.f32.mrb[0].mxu0
        %v2835 = vadd.f32 0.0, %v2834
        %v2836 = vpop.f32.mrb[0].mxu0
        %v2837 = vpop.f32.mrb[0].mxu0
        %v2838 = vadd.f32 0.0, %v2837
        %v2839 = vpop.f32.mrb[0].mxu0
        %2840 = vmatprep.mubr.bf16.mxu0 0
        %2841 = vmatmul.mubr.bf16.gmra.mrb[0].mxu0 %v2699
        %v2842 = vpop.f32.mrb[0].mxu0
        %v2843 = vadd.f32 0.0, %v2842
        %v2844 = vpop.f32.mrb[0].mxu0
        %v2845 = vpop.f32.mrb[0].mxu0
        %v2846 = vadd.f32 0.0, %v2845
        %v2847 = vpop.f32.mrb[0].mxu0
        %2848 = vmatprep.mubr.bf16.mxu0 0
        %2849 = vmatmul.mubr.bf16.gmra.mrb[0].mxu0 %v2700
        %v2850 = vpop.f32.mrb[0].mxu0
        %v2851 = vadd.f32 0.0, %v2850
        %v2852 = vpop.f32.mrb[0].mxu0
        %v2853 = vpop.f32.mrb[0].mxu0
        %v2854 = vadd.f32 0.0, %v2853
        %v2855 = vpop.f32.mrb[0].mxu0
        %2856 = vmatprep.mubr.bf16.mxu0 0
        %2857 = vmatmul.mubr.bf16.gmra.mrb[0].mxu0 %v2701
        %v2858 = vpop.f32.mrb[0].mxu0
        %v2859 = vadd.f32 0.0, %v2858
        %v2860 = vpop.f32.mrb[0].mxu0
        %v2861 = vpop.f32.mrb[0].mxu0
        %v2862 = vadd.f32 0.0, %v2861
        %v2863 = vpop.f32.mrb[0].mxu0
        %2864 = vmatprep.mubr.bf16.mxu0 0
        %2865 = vmatmul.mubr.bf16.gmra.mrb[0].mxu0 %v2702
        %v2866 = vpop.f32.mrb[0].mxu0
        %v2867 = vadd.f32 0.0, %v2866
        %v2868 = vpop.f32.mrb[0].mxu0
        %v2869 = vpop.f32.mrb[0].mxu0
        %v2870 = vadd.f32 0.0, %v2869
        %v2871 = vpop.f32.mrb[0].mxu0
        %2872 = vmatprep.mubr.bf16.mxu0 0
        %2873 = vmatmul.mubr.bf16.gmra.mrb[0].mxu0 %v2703
        %v2874 = vpop.f32.mrb[0].mxu0
        %v2875 = vadd.f32 0.0, %v2874
        %v2876 = vpop.f32.mrb[0].mxu0
        %v2877 = vpop.f32.mrb[0].mxu0
        %v2878 = vadd.f32 0.0, %v2877
        %v2879 = vpop.f32.mrb[0].mxu0
        %2880 = vmatprep.mubr.bf16.mxu0 0
        %2881 = vmatmul.mubr.bf16.gmra.mrb[0].mxu0 %v2704
        %v2882 = vpop.f32.mrb[0].mxu0
        %v2883 = vadd.f32 0.0, %v2882
        %v2884 = vpop.f32.mrb[0].mxu0
        %v2885 = vpop.f32.mrb[0].mxu0
        %v2886 = vadd.f32 0.0, %v2885
        %v2887 = vpop.f32.mrb[0].mxu0
        %2888 = vmatprep.mubr.bf16.mxu0 0
        %2889 = vmatmul.mubr.bf16.gmra.mrb[0].mxu0 %v2705
        %v2890 = vpop.f32.mrb[0].mxu0
        %v2891 = vadd.f32 0.0, %v2890
        %v2892 = vpop.f32.mrb[0].mxu0
        %v2893 = vpop.f32.mrb[0].mxu0
        %v2894 = vadd.f32 0.0, %v2893
        %v2895 = vpop.f32.mrb[0].mxu0
        %2896 = vmatprep.mubr.bf16.mxu0 0
        %2897 = vmatmul.mubr.bf16.gmra.mrb[0].mxu0 %v2706
        %v2898 = vpop.f32.mrb[0].mxu0
        %v2899 = vadd.f32 0.0, %v2898
        %v2900 = vpop.f32.mrb[0].mxu0
        %v2901 = vpop.f32.mrb[0].mxu0
        %v2902 = vadd.f32 0.0, %v2901
        %v2903 = vpop.f32.mrb[0].mxu0
        %2904 = vmatprep.mubr.bf16.mxu0 0
        %2905 = vmatmul.mubr.bf16.gmra.mrb[0].mxu0 %v2707
        %v2906 = vpop.f32.mrb[0].mxu0
        %v2907 = vadd.f32 0.0, %v2906
        %v2908 = vpop.f32.mrb[0].mxu0
        %v2909 = vpop.f32.mrb[0].mxu0
        %v2910 = vadd.f32 0.0, %v2909
        %v2911 = vpop.f32.mrb[0].mxu0
        %2912 = vmatprep.mubr.bf16.mxu0 0
        %2913 = vmatmul.mubr.bf16.gmra.mrb[0].mxu0 %v2708
        %v2914 = vpop.f32.mrb[0].mxu0
        %v2915 = vadd.f32 0.0, %v2914
        %v2916 = vpop.f32.mrb[0].mxu0
        %v2917 = vpop.f32.mrb[0].mxu0
        %v2918 = vadd.f32 0.0, %v2917
        %v2919 = vpop.f32.mrb[0].mxu0
        %2920 = vmatprep.mubr.bf16.mxu0 0
        %2921 = vmatmul.mubr.bf16.gmra.mrb[0].mxu0 %v2709
        %v2922 = vpop.f32.mrb[0].mxu0
        %v2923 = vadd.f32 0.0, %v2922
        %v2924 = vpop.f32.mrb[0].mxu0
        %v2925 = vpop.f32.mrb[0].mxu0
        %v2926 = vadd.f32 0.0, %v2925
        %v2927 = vpop.f32.mrb[0].mxu0
        %2928 = vmatprep.mubr.bf16.mxu0 0
        %2929 = vmatmul.mubr.bf16.gmra.mrb[0].mxu0 %v2710
        %v2930 = vpop.f32.mrb[0].mxu0
        %v2931 = vadd.f32 0.0, %v2930
        %v2932 = vpop.f32.mrb[0].mxu0
        %v2933 = vpop.f32.mrb[0].mxu0
        %v2934 = vadd.f32 0.0, %v2933
        %v2935 = vpop.f32.mrb[0].mxu0
        %2936 = vdwg.mxu0
        %v2937 = vadd.f32 %v2630, %v2811
        %v2938 = vadd.f32 %v2631, %v2814
        %v2939 = vadd.f32 %v2632, %v2819
        %v2940 = vadd.f32 %v2633, %v2822
        %v2941 = vadd.f32 %v2634, %v2827
        %v2942 = vadd.f32 %v2635, %v2830
        %v2943 = vadd.f32 %v2636, %v2835
        %v2944 = vadd.f32 %v2637, %v2838
        %v2945 = vadd.f32 %v2638, %v2843
        %v2946 = vadd.f32 %v2639, %v2846
        %v2947 = vadd.f32 %v2640, %v2851
        %v2948 = vadd.f32 %v2641, %v2854
        %v2949 = vadd.f32 %v2642, %v2859
        %v2950 = vadd.f32 %v2643, %v2862
        %v2951 = vadd.f32 %v2644, %v2867
        %v2952 = vadd.f32 %v2645, %v2870
        %v2953 = vadd.f32 %v2646, %v2875
        %v2954 = vadd.f32 %v2647, %v2878
        %v2955 = vadd.f32 %v2648, %v2883
        %v2956 = vadd.f32 %v2649, %v2886
        %v2957 = vadd.f32 %v2650, %v2891
        %v2958 = vadd.f32 %v2651, %v2894
        %v2959 = vadd.f32 %v2652, %v2899
        %v2960 = vadd.f32 %v2653, %v2902
        %v2961 = vadd.f32 %v2654, %v2907
        %v2962 = vadd.f32 %v2655, %v2910
        %v2963 = vadd.f32 %v2656, %v2915
        %v2964 = vadd.f32 %v2657, %v2918
        %v2965 = vadd.f32 %v2658, %v2923
        %v2966 = vadd.f32 %v2659, %v2926
        %v2967 = vadd.f32 %v2660, %v2931
        %v2968 = vadd.f32 %v2661, %v2934
        %v2969 = vld [vmem:[%s2662 + $0x1] sm:$0xff]
        %v2970 = vld [vmem:[%s2662 + $0x9] sm:$0xff]
        %v2971 = vld [vmem:[%s2662 + $0x19] sm:$0xff]
        %v2972 = vld [vmem:[%s2662 + $0x21] sm:$0xff]
        %v2973 = vld [vmem:[%s2662 + $0x31] sm:$0xff]
        %v2974 = vld [vmem:[%s2662 + $0x39] sm:$0xff]
        %v2975 = vld [vmem:[%s2662 + $0x49] sm:$0xff]
        %v2976 = vld [vmem:[%s2662 + $0x51] sm:$0xff]
        %v2977 = vld [vmem:[%s2662 + $0x61] sm:$0xff]
        %v2978 = vld [vmem:[%s2662 + $0x69] sm:$0xff]
        %v2979 = vld [vmem:[%s2662 + $0x79] sm:$0xff]
        %v2980 = vld [vmem:[%s2662 + $0x81] sm:$0xff]
        %v2981 = vld [vmem:[%s2662 + $0x91] sm:$0xff]
        %v2982 = vld [vmem:[%s2662 + $0x99] sm:$0xff]
        %v2983 = vld [vmem:[%s2662 + $0xa9] sm:$0xff]
        %v2984 = vld [vmem:[%s2662 + $0xb1] sm:$0xff]
        %v2985 = vld [vmem:[%s2662 + $0xc1] sm:$0xff]
        %v2986 = vld [vmem:[%s2662 + $0xc9] sm:$0xff]
        %v2987 = vld [vmem:[%s2662 + $0xd9] sm:$0xff]
        %v2988 = vld [vmem:[%s2662 + $0xe1] sm:$0xff]
        %v2989 = vld [vmem:[%s2662 + $0xf1] sm:$0xff]
        %v2990 = vld [vmem:[%s2662 + $0xf9] sm:$0xff]
        %v2991 = vld [vmem:[%s2662 + $0x109] sm:$0xff]
        %v2992 = vld [vmem:[%s2662 + $0x111] sm:$0xff]
        %v2993 = vld [vmem:[%s2662 + $0x121] sm:$0xff]
        %v2994 = vld [vmem:[%s2662 + $0x129] sm:$0xff]
        %v2995 = vld [vmem:[%s2662 + $0x139] sm:$0xff]
        %v2996 = vld [vmem:[%s2662 + $0x141] sm:$0xff]
        %v2997 = vld [vmem:[%s2662 + $0x151] sm:$0xff]
        %v2998 = vld [vmem:[%s2662 + $0x159] sm:$0xff]
        %v2999 = vld [vmem:[%s2662 + $0x169] sm:$0xff]
        %v3000 = vld [vmem:[%s2662 + $0x171] sm:$0xff]
        %v3001 = vpack.c.bf16 %v2970, %v2969
        %v3002 = vpack.c.bf16 %v2972, %v2971
        %v3003 = vpack.c.bf16 %v2974, %v2973
        %v3004 = vpack.c.bf16 %v2976, %v2975
        %v3005 = vpack.c.bf16 %v2978, %v2977
        %v3006 = vpack.c.bf16 %v2980, %v2979
        %v3007 = vpack.c.bf16 %v2982, %v2981
        %v3008 = vpack.c.bf16 %v2984, %v2983
        %v3009 = vpack.c.bf16 %v2986, %v2985
        %v3010 = vpack.c.bf16 %v2988, %v2987
        %v3011 = vpack.c.bf16 %v2990, %v2989
        %v3012 = vpack.c.bf16 %v2992, %v2991
        %v3013 = vpack.c.bf16 %v2994, %v2993
        %v3014 = vpack.c.bf16 %v2996, %v2995
        %v3015 = vpack.c.bf16 %v2998, %v2997
        %v3016 = vpack.c.bf16 %v3000, %v2999
        %s3017 = scalar_lea.vmem [#allocation8], 448
        %v3018 = vld [vmem:[%s3017] sm:$0xf]
        %v3019 = vld [vmem:[%s3017 + $0x4] sm:$0xf]
        %v3020 = vld [vmem:[%s3017 + $0x8] sm:$0xf]
        %v3021 = vld [vmem:[%s3017 + $0xc] sm:$0xf]
        %v3022 = vld [vmem:[%s3017 + $0x10] sm:$0xf]
        %v3023 = vld [vmem:[%s3017 + $0x14] sm:$0xf]
        %v3024 = vld [vmem:[%s3017 + $0x18] sm:$0xf]
        %v3025 = vld [vmem:[%s3017 + $0x1c] sm:$0xf]
        %v3026 = vld [vmem:[%s3017 + $0x20] sm:$0xf]
        %v3027 = vld [vmem:[%s3017 + $0x24] sm:$0xf]
        %v3028 = vld [vmem:[%s3017 + $0x28] sm:$0xf]
        %v3029 = vld [vmem:[%s3017 + $0x2c] sm:$0xf]
        %v3030 = vld [vmem:[%s3017 + $0x30] sm:$0xf]
        %v3031 = vld [vmem:[%s3017 + $0x34] sm:$0xf]
        %v3032 = vld [vmem:[%s3017 + $0x38] sm:$0xf]
        %v3033 = vld [vmem:[%s3017 + $0x3c] sm:$0xf]
        %v3050 = vunpack.c.l.b16 %v3018
        %v3051 = vunpack.c.l.b16 %v3019
        %v3052 = vunpack.c.l.b16 %v3020
        %v3053 = vunpack.c.l.b16 %v3021
        %v3054 = vunpack.c.l.b16 %v3022
        %v3055 = vunpack.c.l.b16 %v3023
        %v3056 = vunpack.c.l.b16 %v3024
        %v3057 = vunpack.c.l.b16 %v3025
        %v3058 = vunpack.c.l.b16 %v3026
        %v3059 = vunpack.c.l.b16 %v3027
        %v3060 = vunpack.c.l.b16 %v3028
        %v3061 = vunpack.c.l.b16 %v3029
        %v3062 = vunpack.c.l.b16 %v3030
        %v3063 = vunpack.c.l.b16 %v3031
        %v3064 = vunpack.c.l.b16 %v3032
        %v3065 = vunpack.c.l.b16 %v3033
        %v3066 = vpack.c.b16 %v3051, %v3050
        %v3067 = vpack.c.b16 %v3053, %v3052
        %v3068 = vpack.c.b16 %v3055, %v3054
        %v3069 = vpack.c.b16 %v3057, %v3056
        %v3070 = vpack.c.b16 %v3059, %v3058
        %v3071 = vpack.c.b16 %v3061, %v3060
        %v3072 = vpack.c.b16 %v3063, %v3062
        %v3073 = vpack.c.b16 %v3065, %v3064
        %3082 = vmatprep.subr.bf16.mxu0 0
        %3083 = vmatpush1.bf16.msra.mxu0 %v3066
        %3084 = vmatprep.subr.bf16.mxu0 0
        %3085 = vmatpush1.bf16.msra.mxu0 %v3067
        %3086 = vmatprep.subr.bf16.mxu0 0
        %3087 = vmatpush1.bf16.msra.mxu0 %v3068
        %3088 = vmatprep.subr.bf16.mxu0 0
        %3089 = vmatpush1.bf16.msra.mxu0 %v3069
        %3090 = vmatprep.subr.bf16.mxu0 0
        %3091 = vmatpush1.bf16.msra.mxu0 %v3070
        %3092 = vmatprep.subr.bf16.mxu0 0
        %3093 = vmatpush1.bf16.msra.mxu0 %v3071
        %3094 = vmatprep.subr.bf16.mxu0 0
        %3095 = vmatpush1.bf16.msra.mxu0 %v3072
        %3096 = vmatprep.subr.bf16.mxu0 0
        %3097 = vmatpush1.bf16.msra.mxu0 %v3073
        %3098 = vmatprep.subr.bf16.mxu0 0
        %3099 = vmatpush1.bf16.msra.mxu0 0
        %3100 = vmatprep.subr.bf16.mxu0 0
        %3101 = vmatpush1.bf16.msra.mxu0 0
        %3102 = vmatprep.subr.bf16.mxu0 0
        %3103 = vmatpush1.bf16.msra.mxu0 0
        %3104 = vmatprep.subr.bf16.mxu0 0
        %3105 = vmatpush1.bf16.msra.mxu0 0
        %3106 = vmatprep.subr.bf16.mxu0 0
        %3107 = vmatpush1.bf16.msra.mxu0 0
        %3108 = vmatprep.subr.bf16.mxu0 0
        %3109 = vmatpush1.bf16.msra.mxu0 0
        %3110 = vmatprep.subr.bf16.mxu0 0
        %3111 = vmatpush1.bf16.msra.mxu0 0
        %3112 = vmatprep.subr.bf16.mxu0 0
        %3113 = vmatpush1.bf16.msra.mxu0 0
        %3114 = vmatprep.mubr.bf16.mxu0 0
        %3115 = vmatmul.mubr.bf16.gmra.mrb[0].mxu0 %v3001
        %v3116 = vpop.f32.mrb[0].mxu0
        %v3117 = vadd.f32 0.0, %v3116
        %v3118 = vpop.f32.mrb[0].mxu0
        %v3119 = vpop.f32.mrb[0].mxu0
        %v3120 = vadd.f32 0.0, %v3119
        %v3121 = vpop.f32.mrb[0].mxu0
        %3122 = vmatprep.mubr.bf16.mxu0 0
        %3123 = vmatmul.mubr.bf16.gmra.mrb[0].mxu0 %v3002
        %v3124 = vpop.f32.mrb[0].mxu0
        %v3125 = vadd.f32 0.0, %v3124
        %v3126 = vpop.f32.mrb[0].mxu0
        %v3127 = vpop.f32.mrb[0].mxu0
        %v3128 = vadd.f32 0.0, %v3127
        %v3129 = vpop.f32.mrb[0].mxu0
        %3130 = vmatprep.mubr.bf16.mxu0 0
        %3131 = vmatmul.mubr.bf16.gmra.mrb[0].mxu0 %v3003
        %v3132 = vpop.f32.mrb[0].mxu0
        %v3133 = vadd.f32 0.0, %v3132
        %v3134 = vpop.f32.mrb[0].mxu0
        %v3135 = vpop.f32.mrb[0].mxu0
        %v3136 = vadd.f32 0.0, %v3135
        %v3137 = vpop.f32.mrb[0].mxu0
        %3138 = vmatprep.mubr.bf16.mxu0 0
        %3139 = vmatmul.mubr.bf16.gmra.mrb[0].mxu0 %v3004
        %v3140 = vpop.f32.mrb[0].mxu0
        %v3141 = vadd.f32 0.0, %v3140
        %v3142 = vpop.f32.mrb[0].mxu0
        %v3143 = vpop.f32.mrb[0].mxu0
        %v3144 = vadd.f32 0.0, %v3143
        %v3145 = vpop.f32.mrb[0].mxu0
        %3146 = vmatprep.mubr.bf16.mxu0 0
        %3147 = vmatmul.mubr.bf16.gmra.mrb[0].mxu0 %v3005
        %v3148 = vpop.f32.mrb[0].mxu0
        %v3149 = vadd.f32 0.0, %v3148
        %v3150 = vpop.f32.mrb[0].mxu0
        %v3151 = vpop.f32.mrb[0].mxu0
        %v3152 = vadd.f32 0.0, %v3151
        %v3153 = vpop.f32.mrb[0].mxu0
        %3154 = vmatprep.mubr.bf16.mxu0 0
        %3155 = vmatmul.mubr.bf16.gmra.mrb[0].mxu0 %v3006
        %v3156 = vpop.f32.mrb[0].mxu0
        %v3157 = vadd.f32 0.0, %v3156
        %v3158 = vpop.f32.mrb[0].mxu0
        %v3159 = vpop.f32.mrb[0].mxu0
        %v3160 = vadd.f32 0.0, %v3159
        %v3161 = vpop.f32.mrb[0].mxu0
        %3162 = vmatprep.mubr.bf16.mxu0 0
        %3163 = vmatmul.mubr.bf16.gmra.mrb[0].mxu0 %v3007
        %v3164 = vpop.f32.mrb[0].mxu0
        %v3165 = vadd.f32 0.0, %v3164
        %v3166 = vpop.f32.mrb[0].mxu0
        %v3167 = vpop.f32.mrb[0].mxu0
        %v3168 = vadd.f32 0.0, %v3167
        %v3169 = vpop.f32.mrb[0].mxu0
        %3170 = vmatprep.mubr.bf16.mxu0 0
        %3171 = vmatmul.mubr.bf16.gmra.mrb[0].mxu0 %v3008
        %v3172 = vpop.f32.mrb[0].mxu0
        %v3173 = vadd.f32 0.0, %v3172
        %v3174 = vpop.f32.mrb[0].mxu0
        %v3175 = vpop.f32.mrb[0].mxu0
        %v3176 = vadd.f32 0.0, %v3175
        %v3177 = vpop.f32.mrb[0].mxu0
        %3178 = vmatprep.mubr.bf16.mxu0 0
        %3179 = vmatmul.mubr.bf16.gmra.mrb[0].mxu0 %v3009
        %v3180 = vpop.f32.mrb[0].mxu0
        %v3181 = vadd.f32 0.0, %v3180
        %v3182 = vpop.f32.mrb[0].mxu0
        %v3183 = vpop.f32.mrb[0].mxu0
        %v3184 = vadd.f32 0.0, %v3183
        %v3185 = vpop.f32.mrb[0].mxu0
        %3186 = vmatprep.mubr.bf16.mxu0 0
        %3187 = vmatmul.mubr.bf16.gmra.mrb[0].mxu0 %v3010
        %v3188 = vpop.f32.mrb[0].mxu0
        %v3189 = vadd.f32 0.0, %v3188
        %v3190 = vpop.f32.mrb[0].mxu0
        %v3191 = vpop.f32.mrb[0].mxu0
        %v3192 = vadd.f32 0.0, %v3191
        %v3193 = vpop.f32.mrb[0].mxu0
        %3194 = vmatprep.mubr.bf16.mxu0 0
        %3195 = vmatmul.mubr.bf16.gmra.mrb[0].mxu0 %v3011
        %v3196 = vpop.f32.mrb[0].mxu0
        %v3197 = vadd.f32 0.0, %v3196
        %v3198 = vpop.f32.mrb[0].mxu0
        %v3199 = vpop.f32.mrb[0].mxu0
        %v3200 = vadd.f32 0.0, %v3199
        %v3201 = vpop.f32.mrb[0].mxu0
        %3202 = vmatprep.mubr.bf16.mxu0 0
        %3203 = vmatmul.mubr.bf16.gmra.mrb[0].mxu0 %v3012
        %v3204 = vpop.f32.mrb[0].mxu0
        %v3205 = vadd.f32 0.0, %v3204
        %v3206 = vpop.f32.mrb[0].mxu0
        %v3207 = vpop.f32.mrb[0].mxu0
        %v3208 = vadd.f32 0.0, %v3207
        %v3209 = vpop.f32.mrb[0].mxu0
        %3210 = vmatprep.mubr.bf16.mxu0 0
        %3211 = vmatmul.mubr.bf16.gmra.mrb[0].mxu0 %v3013
        %v3212 = vpop.f32.mrb[0].mxu0
        %v3213 = vadd.f32 0.0, %v3212
        %v3214 = vpop.f32.mrb[0].mxu0
        %v3215 = vpop.f32.mrb[0].mxu0
        %v3216 = vadd.f32 0.0, %v3215
        %v3217 = vpop.f32.mrb[0].mxu0
        %3218 = vmatprep.mubr.bf16.mxu0 0
        %3219 = vmatmul.mubr.bf16.gmra.mrb[0].mxu0 %v3014
        %v3220 = vpop.f32.mrb[0].mxu0
        %v3221 = vadd.f32 0.0, %v3220
        %v3222 = vpop.f32.mrb[0].mxu0
        %v3223 = vpop.f32.mrb[0].mxu0
        %v3224 = vadd.f32 0.0, %v3223
        %v3225 = vpop.f32.mrb[0].mxu0
        %3226 = vmatprep.mubr.bf16.mxu0 0
        %3227 = vmatmul.mubr.bf16.gmra.mrb[0].mxu0 %v3015
        %v3228 = vpop.f32.mrb[0].mxu0
        %v3229 = vadd.f32 0.0, %v3228
        %v3230 = vpop.f32.mrb[0].mxu0
        %v3231 = vpop.f32.mrb[0].mxu0
        %v3232 = vadd.f32 0.0, %v3231
        %v3233 = vpop.f32.mrb[0].mxu0
        %3234 = vmatprep.mubr.bf16.mxu0 0
        %3235 = vmatmul.mubr.bf16.gmra.mrb[0].mxu0 %v3016
        %v3236 = vpop.f32.mrb[0].mxu0
        %v3237 = vadd.f32 0.0, %v3236
        %v3238 = vpop.f32.mrb[0].mxu0
        %v3239 = vpop.f32.mrb[0].mxu0
        %v3240 = vadd.f32 0.0, %v3239
        %v3241 = vpop.f32.mrb[0].mxu0
        %3242 = vdwg.mxu0
        %v3243 = vadd.f32 %v2937, %v3117
        %v3244 = vadd.f32 %v2938, %v3120
        %v3245 = vadd.f32 %v2939, %v3125
        %v3246 = vadd.f32 %v2940, %v3128
        %v3247 = vadd.f32 %v2941, %v3133
        %v3248 = vadd.f32 %v2942, %v3136
        %v3249 = vadd.f32 %v2943, %v3141
        %v3250 = vadd.f32 %v2944, %v3144
        %v3251 = vadd.f32 %v2945, %v3149
        %v3252 = vadd.f32 %v2946, %v3152
        %v3253 = vadd.f32 %v2947, %v3157
        %v3254 = vadd.f32 %v2948, %v3160
        %v3255 = vadd.f32 %v2949, %v3165
        %v3256 = vadd.f32 %v2950, %v3168
        %v3257 = vadd.f32 %v2951, %v3173
        %v3258 = vadd.f32 %v2952, %v3176
        %v3259 = vadd.f32 %v2953, %v3181
        %v3260 = vadd.f32 %v2954, %v3184
        %v3261 = vadd.f32 %v2955, %v3189
        %v3262 = vadd.f32 %v2956, %v3192
        %v3263 = vadd.f32 %v2957, %v3197
        %v3264 = vadd.f32 %v2958, %v3200
        %v3265 = vadd.f32 %v2959, %v3205
        %v3266 = vadd.f32 %v2960, %v3208
        %v3267 = vadd.f32 %v2961, %v3213
        %v3268 = vadd.f32 %v2962, %v3216
        %v3269 = vadd.f32 %v2963, %v3221
        %v3270 = vadd.f32 %v2964, %v3224
        %v3271 = vadd.f32 %v2965, %v3229
        %v3272 = vadd.f32 %v2966, %v3232
        %v3273 = vadd.f32 %v2967, %v3237
        %v3274 = vadd.f32 %v2968, %v3240
        %v3275 = vld [vmem:[%s2662 + $0x2] sm:$0xff]
        %v3276 = vld [vmem:[%s2662 + $0xa] sm:$0xff]
        %v3277 = vld [vmem:[%s2662 + $0x1a] sm:$0xff]
        %v3278 = vld [vmem:[%s2662 + $0x22] sm:$0xff]
        %v3279 = vld [vmem:[%s2662 + $0x32] sm:$0xff]
        %v3280 = vld [vmem:[%s2662 + $0x3a] sm:$0xff]
        %v3281 = vld [vmem:[%s2662 + $0x4a] sm:$0xff]
        %v3282 = vld [vmem:[%s2662 + $0x52] sm:$0xff]
        %v3283 = vld [vmem:[%s2662 + $0x62] sm:$0xff]
        %v3284 = vld [vmem:[%s2662 + $0x6a] sm:$0xff]
        %v3285 = vld [vmem:[%s2662 + $0x7a] sm:$0xff]
        %v3286 = vld [vmem:[%s2662 + $0x82] sm:$0xff]
        %v3287 = vld [vmem:[%s2662 + $0x92] sm:$0xff]
        %v3288 = vld [vmem:[%s2662 + $0x9a] sm:$0xff]
        %v3289 = vld [vmem:[%s2662 + $0xaa] sm:$0xff]
        %v3290 = vld [vmem:[%s2662 + $0xb2] sm:$0xff]
        %v3291 = vld [vmem:[%s2662 + $0xc2] sm:$0xff]
        %v3292 = vld [vmem:[%s2662 + $0xca] sm:$0xff]
        %v3293 = vld [vmem:[%s2662 + $0xda] sm:$0xff]
        %v3294 = vld [vmem:[%s2662 + $0xe2] sm:$0xff]
        %v3295 = vld [vmem:[%s2662 + $0xf2] sm:$0xff]
        %v3296 = vld [vmem:[%s2662 + $0xfa] sm:$0xff]
        %v3297 = vld [vmem:[%s2662 + $0x10a] sm:$0xff]
        %v3298 = vld [vmem:[%s2662 + $0x112] sm:$0xff]
        %v3299 = vld [vmem:[%s2662 + $0x122] sm:$0xff]
        %v3300 = vld [vmem:[%s2662 + $0x12a] sm:$0xff]
        %v3301 = vld [vmem:[%s2662 + $0x13a] sm:$0xff]
        %v3302 = vld [vmem:[%s2662 + $0x142] sm:$0xff]
        %v3303 = vld [vmem:[%s2662 + $0x152] sm:$0xff]
        %v3304 = vld [vmem:[%s2662 + $0x15a] sm:$0xff]
        %v3305 = vld [vmem:[%s2662 + $0x16a] sm:$0xff]
        %v3306 = vld [vmem:[%s2662 + $0x172] sm:$0xff]
        %v3307 = vpack.c.bf16 %v3276, %v3275
        %v3308 = vpack.c.bf16 %v3278, %v3277
        %v3309 = vpack.c.bf16 %v3280, %v3279
        %v3310 = vpack.c.bf16 %v3282, %v3281
        %v3311 = vpack.c.bf16 %v3284, %v3283
        %v3312 = vpack.c.bf16 %v3286, %v3285
        %v3313 = vpack.c.bf16 %v3288, %v3287
        %v3314 = vpack.c.bf16 %v3290, %v3289
        %v3315 = vpack.c.bf16 %v3292, %v3291
        %v3316 = vpack.c.bf16 %v3294, %v3293
        %v3317 = vpack.c.bf16 %v3296, %v3295
        %v3318 = vpack.c.bf16 %v3298, %v3297
        %v3319 = vpack.c.bf16 %v3300, %v3299
        %v3320 = vpack.c.bf16 %v3302, %v3301
        %v3321 = vpack.c.bf16 %v3304, %v3303
        %v3322 = vpack.c.bf16 %v3306, %v3305
        %s3323 = scalar_lea.vmem [#allocation8], 512
        %v3324 = vld [vmem:[%s3323] sm:$0xf]
        %v3325 = vld [vmem:[%s3323 + $0x4] sm:$0xf]
        %v3326 = vld [vmem:[%s3323 + $0x8] sm:$0xf]
        %v3327 = vld [vmem:[%s3323 + $0xc] sm:$0xf]
        %v3328 = vld [vmem:[%s3323 + $0x10] sm:$0xf]
        %v3329 = vld [vmem:[%s3323 + $0x14] sm:$0xf]
        %v3330 = vld [vmem:[%s3323 + $0x18] sm:$0xf]
        %v3331 = vld [vmem:[%s3323 + $0x1c] sm:$0xf]
        %v3332 = vld [vmem:[%s3323 + $0x20] sm:$0xf]
        %v3333 = vld [vmem:[%s3323 + $0x24] sm:$0xf]
        %v3334 = vld [vmem:[%s3323 + $0x28] sm:$0xf]
        %v3335 = vld [vmem:[%s3323 + $0x2c] sm:$0xf]
        %v3336 = vld [vmem:[%s3323 + $0x30] sm:$0xf]
        %v3337 = vld [vmem:[%s3323 + $0x34] sm:$0xf]
        %v3338 = vld [vmem:[%s3323 + $0x38] sm:$0xf]
        %v3339 = vld [vmem:[%s3323 + $0x3c] sm:$0xf]
        %v3356 = vunpack.c.l.b16 %v3324
        %v3357 = vunpack.c.l.b16 %v3325
        %v3358 = vunpack.c.l.b16 %v3326
        %v3359 = vunpack.c.l.b16 %v3327
        %v3360 = vunpack.c.l.b16 %v3328
        %v3361 = vunpack.c.l.b16 %v3329
        %v3362 = vunpack.c.l.b16 %v3330
        %v3363 = vunpack.c.l.b16 %v3331
        %v3364 = vunpack.c.l.b16 %v3332
        %v3365 = vunpack.c.l.b16 %v3333
        %v3366 = vunpack.c.l.b16 %v3334
        %v3367 = vunpack.c.l.b16 %v3335
        %v3368 = vunpack.c.l.b16 %v3336
        %v3369 = vunpack.c.l.b16 %v3337
        %v3370 = vunpack.c.l.b16 %v3338
        %v3371 = vunpack.c.l.b16 %v3339
        %v3372 = vpack.c.b16 %v3357, %v3356
        %v3373 = vpack.c.b16 %v3359, %v3358
        %v3374 = vpack.c.b16 %v3361, %v3360
        %v3375 = vpack.c.b16 %v3363, %v3362
        %v3376 = vpack.c.b16 %v3365, %v3364
        %v3377 = vpack.c.b16 %v3367, %v3366
        %v3378 = vpack.c.b16 %v3369, %v3368
        %v3379 = vpack.c.b16 %v3371, %v3370
        %3388 = vmatprep.subr.bf16.mxu0 0
        %3389 = vmatpush1.bf16.msra.mxu0 %v3372
        %3390 = vmatprep.subr.bf16.mxu0 0
        %3391 = vmatpush1.bf16.msra.mxu0 %v3373
        %3392 = vmatprep.subr.bf16.mxu0 0
        %3393 = vmatpush1.bf16.msra.mxu0 %v3374
        %3394 = vmatprep.subr.bf16.mxu0 0
        %3395 = vmatpush1.bf16.msra.mxu0 %v3375
        %3396 = vmatprep.subr.bf16.mxu0 0
        %3397 = vmatpush1.bf16.msra.mxu0 %v3376
        %3398 = vmatprep.subr.bf16.mxu0 0
        %3399 = vmatpush1.bf16.msra.mxu0 %v3377
        %3400 = vmatprep.subr.bf16.mxu0 0
        %3401 = vmatpush1.bf16.msra.mxu0 %v3378
        %3402 = vmatprep.subr.bf16.mxu0 0
        %3403 = vmatpush1.bf16.msra.mxu0 %v3379
        %3404 = vmatprep.subr.bf16.mxu0 0
        %3405 = vmatpush1.bf16.msra.mxu0 0
        %3406 = vmatprep.subr.bf16.mxu0 0
        %3407 = vmatpush1.bf16.msra.mxu0 0
        %3408 = vmatprep.subr.bf16.mxu0 0
        %3409 = vmatpush1.bf16.msra.mxu0 0
        %3410 = vmatprep.subr.bf16.mxu0 0
        %3411 = vmatpush1.bf16.msra.mxu0 0
        %3412 = vmatprep.subr.bf16.mxu0 0
        %3413 = vmatpush1.bf16.msra.mxu0 0
        %3414 = vmatprep.subr.bf16.mxu0 0
        %3415 = vmatpush1.bf16.msra.mxu0 0
        %3416 = vmatprep.subr.bf16.mxu0 0
        %3417 = vmatpush1.bf16.msra.mxu0 0
        %3418 = vmatprep.subr.bf16.mxu0 0
        %3419 = vmatpush1.bf16.msra.mxu0 0
        %3420 = vmatprep.mubr.bf16.mxu0 0
        %3421 = vmatmul.mubr.bf16.gmra.mrb[0].mxu0 %v3307
        %v3422 = vpop.f32.mrb[0].mxu0
        %v3423 = vadd.f32 0.0, %v3422
        %v3424 = vpop.f32.mrb[0].mxu0
        %v3425 = vpop.f32.mrb[0].mxu0
        %v3426 = vadd.f32 0.0, %v3425
        %v3427 = vpop.f32.mrb[0].mxu0
        %3428 = vmatprep.mubr.bf16.mxu0 0
        %3429 = vmatmul.mubr.bf16.gmra.mrb[0].mxu0 %v3308
        %v3430 = vpop.f32.mrb[0].mxu0
        %v3431 = vadd.f32 0.0, %v3430
        %v3432 = vpop.f32.mrb[0].mxu0
        %v3433 = vpop.f32.mrb[0].mxu0
        %v3434 = vadd.f32 0.0, %v3433
        %v3435 = vpop.f32.mrb[0].mxu0
        %3436 = vmatprep.mubr.bf16.mxu0 0
        %3437 = vmatmul.mubr.bf16.gmra.mrb[0].mxu0 %v3309
        %v3438 = vpop.f32.mrb[0].mxu0
        %v3439 = vadd.f32 0.0, %v3438
        %v3440 = vpop.f32.mrb[0].mxu0
        %v3441 = vpop.f32.mrb[0].mxu0
        %v3442 = vadd.f32 0.0, %v3441
        %v3443 = vpop.f32.mrb[0].mxu0
        %3444 = vmatprep.mubr.bf16.mxu0 0
        %3445 = vmatmul.mubr.bf16.gmra.mrb[0].mxu0 %v3310
        %v3446 = vpop.f32.mrb[0].mxu0
        %v3447 = vadd.f32 0.0, %v3446
        %v3448 = vpop.f32.mrb[0].mxu0
        %v3449 = vpop.f32.mrb[0].mxu0
        %v3450 = vadd.f32 0.0, %v3449
        %v3451 = vpop.f32.mrb[0].mxu0
        %3452 = vmatprep.mubr.bf16.mxu0 0
        %3453 = vmatmul.mubr.bf16.gmra.mrb[0].mxu0 %v3311
        %v3454 = vpop.f32.mrb[0].mxu0
        %v3455 = vadd.f32 0.0, %v3454
        %v3456 = vpop.f32.mrb[0].mxu0
        %v3457 = vpop.f32.mrb[0].mxu0
        %v3458 = vadd.f32 0.0, %v3457
        %v3459 = vpop.f32.mrb[0].mxu0
        %3460 = vmatprep.mubr.bf16.mxu0 0
        %3461 = vmatmul.mubr.bf16.gmra.mrb[0].mxu0 %v3312
        %v3462 = vpop.f32.mrb[0].mxu0
        %v3463 = vadd.f32 0.0, %v3462
        %v3464 = vpop.f32.mrb[0].mxu0
        %v3465 = vpop.f32.mrb[0].mxu0
        %v3466 = vadd.f32 0.0, %v3465
        %v3467 = vpop.f32.mrb[0].mxu0
        %3468 = vmatprep.mubr.bf16.mxu0 0
        %3469 = vmatmul.mubr.bf16.gmra.mrb[0].mxu0 %v3313
        %v3470 = vpop.f32.mrb[0].mxu0
        %v3471 = vadd.f32 0.0, %v3470
        %v3472 = vpop.f32.mrb[0].mxu0
        %v3473 = vpop.f32.mrb[0].mxu0
        %v3474 = vadd.f32 0.0, %v3473
        %v3475 = vpop.f32.mrb[0].mxu0
        %3476 = vmatprep.mubr.bf16.mxu0 0
        %3477 = vmatmul.mubr.bf16.gmra.mrb[0].mxu0 %v3314
        %v3478 = vpop.f32.mrb[0].mxu0
        %v3479 = vadd.f32 0.0, %v3478
        %v3480 = vpop.f32.mrb[0].mxu0
        %v3481 = vpop.f32.mrb[0].mxu0
        %v3482 = vadd.f32 0.0, %v3481
        %v3483 = vpop.f32.mrb[0].mxu0
        %3484 = vmatprep.mubr.bf16.mxu0 0
        %3485 = vmatmul.mubr.bf16.gmra.mrb[0].mxu0 %v3315
        %v3486 = vpop.f32.mrb[0].mxu0
        %v3487 = vadd.f32 0.0, %v3486
        %v3488 = vpop.f32.mrb[0].mxu0
        %v3489 = vpop.f32.mrb[0].mxu0
        %v3490 = vadd.f32 0.0, %v3489
        %v3491 = vpop.f32.mrb[0].mxu0
        %3492 = vmatprep.mubr.bf16.mxu0 0
        %3493 = vmatmul.mubr.bf16.gmra.mrb[0].mxu0 %v3316
        %v3494 = vpop.f32.mrb[0].mxu0
        %v3495 = vadd.f32 0.0, %v3494
        %v3496 = vpop.f32.mrb[0].mxu0
        %v3497 = vpop.f32.mrb[0].mxu0
        %v3498 = vadd.f32 0.0, %v3497
        %v3499 = vpop.f32.mrb[0].mxu0
        %3500 = vmatprep.mubr.bf16.mxu0 0
        %3501 = vmatmul.mubr.bf16.gmra.mrb[0].mxu0 %v3317
        %v3502 = vpop.f32.mrb[0].mxu0
        %v3503 = vadd.f32 0.0, %v3502
        %v3504 = vpop.f32.mrb[0].mxu0
        %v3505 = vpop.f32.mrb[0].mxu0
        %v3506 = vadd.f32 0.0, %v3505
        %v3507 = vpop.f32.mrb[0].mxu0
        %3508 = vmatprep.mubr.bf16.mxu0 0
        %3509 = vmatmul.mubr.bf16.gmra.mrb[0].mxu0 %v3318
        %v3510 = vpop.f32.mrb[0].mxu0
        %v3511 = vadd.f32 0.0, %v3510
        %v3512 = vpop.f32.mrb[0].mxu0
        %v3513 = vpop.f32.mrb[0].mxu0
        %v3514 = vadd.f32 0.0, %v3513
        %v3515 = vpop.f32.mrb[0].mxu0
        %3516 = vmatprep.mubr.bf16.mxu0 0
        %3517 = vmatmul.mubr.bf16.gmra.mrb[0].mxu0 %v3319
        %v3518 = vpop.f32.mrb[0].mxu0
        %v3519 = vadd.f32 0.0, %v3518
        %v3520 = vpop.f32.mrb[0].mxu0
        %v3521 = vpop.f32.mrb[0].mxu0
        %v3522 = vadd.f32 0.0, %v3521
        %v3523 = vpop.f32.mrb[0].mxu0
        %3524 = vmatprep.mubr.bf16.mxu0 0
        %3525 = vmatmul.mubr.bf16.gmra.mrb[0].mxu0 %v3320
        %v3526 = vpop.f32.mrb[0].mxu0
        %v3527 = vadd.f32 0.0, %v3526
        %v3528 = vpop.f32.mrb[0].mxu0
        %v3529 = vpop.f32.mrb[0].mxu0
        %v3530 = vadd.f32 0.0, %v3529
        %v3531 = vpop.f32.mrb[0].mxu0
        %3532 = vmatprep.mubr.bf16.mxu0 0
        %3533 = vmatmul.mubr.bf16.gmra.mrb[0].mxu0 %v3321
        %v3534 = vpop.f32.mrb[0].mxu0
        %v3535 = vadd.f32 0.0, %v3534
        %v3536 = vpop.f32.mrb[0].mxu0
        %v3537 = vpop.f32.mrb[0].mxu0
        %v3538 = vadd.f32 0.0, %v3537
        %v3539 = vpop.f32.mrb[0].mxu0
        %3540 = vmatprep.mubr.bf16.mxu0 0
        %3541 = vmatmul.mubr.bf16.gmra.mrb[0].mxu0 %v3322
        %v3542 = vpop.f32.mrb[0].mxu0
        %v3543 = vadd.f32 0.0, %v3542
        %v3544 = vpop.f32.mrb[0].mxu0
        %v3545 = vpop.f32.mrb[0].mxu0
        %v3546 = vadd.f32 0.0, %v3545
        %v3547 = vpop.f32.mrb[0].mxu0
        %3548 = vdwg.mxu0
        %v3549 = vadd.f32 %v3243, %v3423
        %v3550 = vadd.f32 %v3244, %v3426
        %v3551 = vadd.f32 %v3245, %v3431
        %v3552 = vadd.f32 %v3246, %v3434
        %v3553 = vadd.f32 %v3247, %v3439
        %v3554 = vadd.f32 %v3248, %v3442
        %v3555 = vadd.f32 %v3249, %v3447
        %v3556 = vadd.f32 %v3250, %v3450
        %v3557 = vadd.f32 %v3251, %v3455
        %v3558 = vadd.f32 %v3252, %v3458
        %v3559 = vadd.f32 %v3253, %v3463
        %v3560 = vadd.f32 %v3254, %v3466
        %v3561 = vadd.f32 %v3255, %v3471
        %v3562 = vadd.f32 %v3256, %v3474
        %v3563 = vadd.f32 %v3257, %v3479
        %v3564 = vadd.f32 %v3258, %v3482
        %v3565 = vadd.f32 %v3259, %v3487
        %v3566 = vadd.f32 %v3260, %v3490
        %v3567 = vadd.f32 %v3261, %v3495
        %v3568 = vadd.f32 %v3262, %v3498
        %v3569 = vadd.f32 %v3263, %v3503
        %v3570 = vadd.f32 %v3264, %v3506
        %v3571 = vadd.f32 %v3265, %v3511
        %v3572 = vadd.f32 %v3266, %v3514
        %v3573 = vadd.f32 %v3267, %v3519
        %v3574 = vadd.f32 %v3268, %v3522
        %v3575 = vadd.f32 %v3269, %v3527
        %v3576 = vadd.f32 %v3270, %v3530
        %v3577 = vadd.f32 %v3271, %v3535
        %v3578 = vadd.f32 %v3272, %v3538
        %v3579 = vadd.f32 %v3273, %v3543
        %v3580 = vadd.f32 %v3274, %v3546
        %v3581 = vld [vmem:[%s4] sm:$0x1]
        %v3583 = vlaneseq
        %v3584 = vshrl.u32 %v3583, 7
        %v3585 = vsub.s32 0, %v3584
        %v3586 = vrot.slane %v3581, %v3585
        %v3588 = vadd.f32 %v3549, %v3586
        %v3589 = vadd.f32 %v3550, %v3586
        %v3590 = vadd.f32 %v3551, %v3586
        %v3591 = vadd.f32 %v3552, %v3586
        %v3592 = vadd.f32 %v3553, %v3586
        %v3593 = vadd.f32 %v3554, %v3586
        %v3594 = vadd.f32 %v3555, %v3586
        %v3595 = vadd.f32 %v3556, %v3586
        %v3596 = vadd.f32 %v3557, %v3586
        %v3597 = vadd.f32 %v3558, %v3586
        %v3598 = vadd.f32 %v3559, %v3586
        %v3599 = vadd.f32 %v3560, %v3586
        %v3600 = vadd.f32 %v3561, %v3586
        %v3601 = vadd.f32 %v3562, %v3586
        %v3602 = vadd.f32 %v3563, %v3586
        %v3603 = vadd.f32 %v3564, %v3586
        %v3604 = vadd.f32 %v3565, %v3586
        %v3605 = vadd.f32 %v3566, %v3586
        %v3606 = vadd.f32 %v3567, %v3586
        %v3607 = vadd.f32 %v3568, %v3586
        %v3608 = vadd.f32 %v3569, %v3586
        %v3609 = vadd.f32 %v3570, %v3586
        %v3610 = vadd.f32 %v3571, %v3586
        %v3611 = vadd.f32 %v3572, %v3586
        %v3612 = vadd.f32 %v3573, %v3586
        %v3613 = vadd.f32 %v3574, %v3586
        %v3614 = vadd.f32 %v3575, %v3586
        %v3615 = vadd.f32 %v3576, %v3586
        %v3616 = vadd.f32 %v3577, %v3586
        %v3617 = vadd.f32 %v3578, %v3586
        %v3618 = vadd.f32 %v3579, %v3586
        %v3619 = vadd.f32 %v3580, %v3586
        %v3620 = vmax.f32 %v3588, 0.0
        %v3621 = vmax.f32 %v3589, 0.0
        %v3622 = vmax.f32 %v3590, 0.0
        %v3623 = vmax.f32 %v3591, 0.0
        %v3624 = vmax.f32 %v3592, 0.0
        %v3625 = vmax.f32 %v3593, 0.0
        %v3626 = vmax.f32 %v3594, 0.0
        %v3627 = vmax.f32 %v3595, 0.0
        %v3628 = vmax.f32 %v3596, 0.0
        %v3629 = vmax.f32 %v3597, 0.0
        %v3630 = vmax.f32 %v3598, 0.0
        %v3631 = vmax.f32 %v3599, 0.0
        %v3632 = vmax.f32 %v3600, 0.0
        %v3633 = vmax.f32 %v3601, 0.0
        %v3634 = vmax.f32 %v3602, 0.0
        %v3635 = vmax.f32 %v3603, 0.0
        %v3636 = vmax.f32 %v3604, 0.0
        %v3637 = vmax.f32 %v3605, 0.0
        %v3638 = vmax.f32 %v3606, 0.0
        %v3639 = vmax.f32 %v3607, 0.0
        %v3640 = vmax.f32 %v3608, 0.0
        %v3641 = vmax.f32 %v3609, 0.0
        %v3642 = vmax.f32 %v3610, 0.0
        %v3643 = vmax.f32 %v3611, 0.0
        %v3644 = vmax.f32 %v3612, 0.0
        %v3645 = vmax.f32 %v3613, 0.0
        %v3646 = vmax.f32 %v3614, 0.0
        %v3647 = vmax.f32 %v3615, 0.0
        %v3648 = vmax.f32 %v3616, 0.0
        %v3649 = vmax.f32 %v3617, 0.0
        %v3650 = vmax.f32 %v3618, 0.0
        %v3651 = vmax.f32 %v3619, 0.0
        %v3652 = vpack.c.bf16 %v3621, %v3620
        %v3653 = vpack.c.bf16 %v3623, %v3622
        %v3654 = vpack.c.bf16 %v3625, %v3624
        %v3655 = vpack.c.bf16 %v3627, %v3626
        %v3656 = vpack.c.bf16 %v3629, %v3628
        %v3657 = vpack.c.bf16 %v3631, %v3630
        %v3658 = vpack.c.bf16 %v3633, %v3632
        %v3659 = vpack.c.bf16 %v3635, %v3634
        %v3660 = vpack.c.bf16 %v3637, %v3636
        %v3661 = vpack.c.bf16 %v3639, %v3638
        %v3662 = vpack.c.bf16 %v3641, %v3640
        %v3663 = vpack.c.bf16 %v3643, %v3642
        %v3664 = vpack.c.bf16 %v3645, %v3644
        %v3665 = vpack.c.bf16 %v3647, %v3646
        %v3666 = vpack.c.bf16 %v3649, %v3648
        %v3667 = vpack.c.bf16 %v3651, %v3650
        %v3668 = vld [vmem:[#allocation9] sm:$0xff]
        %v3669 = vld [vmem:[#allocation9 + $0x8] sm:$0xff]
        %v3670 = vld [vmem:[#allocation9 + $0x10] sm:$0xff]
        %v3671 = vld [vmem:[#allocation9 + $0x18] sm:$0xff]
        %v3672 = vld [vmem:[#allocation9 + $0x20] sm:$0xff]
        %v3673 = vld [vmem:[#allocation9 + $0x28] sm:$0xff]
        %v3674 = vld [vmem:[#allocation9 + $0x30] sm:$0xff]
        %v3675 = vld [vmem:[#allocation9 + $0x38] sm:$0xff]
        %v3676 = vld [vmem:[#allocation9 + $0x40] sm:$0xff]
        %v3677 = vld [vmem:[#allocation9 + $0x48] sm:$0xff]
        %v3678 = vld [vmem:[#allocation9 + $0x50] sm:$0xff]
        %v3679 = vld [vmem:[#allocation9 + $0x58] sm:$0xff]
        %v3680 = vld [vmem:[#allocation9 + $0x60] sm:$0xff]
        %v3681 = vld [vmem:[#allocation9 + $0x68] sm:$0xff]
        %v3682 = vld [vmem:[#allocation9 + $0x70] sm:$0xff]
        %v3683 = vld [vmem:[#allocation9 + $0x78] sm:$0xff]
        %v3684 = vld [vmem:[%s6] sm:$0x3]
        %v3686 = vlaneseq
        %v3687 = vshrl.u32 %v3686, 7
        %v3688 = vsub.s32 0, %v3687
        %v3689 = vrot.slane %v3684, %v3688
        %v3690 = vlaneseq
        %v3691 = vshrl.u32 %v3690, 7
        %v3692 = vsub.s32 1, %v3691
        %v3693 = vrot.slane %v3684, %v3692
        %v3712 = vunpack.c.l.b16 %v3668
        %v3713 = vunpack.c.h.b16 %v3668
        %v3714 = vunpack.c.l.b16 %v3669
        %v3715 = vunpack.c.h.b16 %v3669
        %v3716 = vunpack.c.l.b16 %v3670
        %v3717 = vunpack.c.h.b16 %v3670
        %v3718 = vunpack.c.l.b16 %v3671
        %v3719 = vunpack.c.h.b16 %v3671
        %v3720 = vunpack.c.l.b16 %v3672
        %v3721 = vunpack.c.h.b16 %v3672
        %v3722 = vunpack.c.l.b16 %v3673
        %v3723 = vunpack.c.h.b16 %v3673
        %v3724 = vunpack.c.l.b16 %v3674
        %v3725 = vunpack.c.h.b16 %v3674
        %v3726 = vunpack.c.l.b16 %v3675
        %v3727 = vunpack.c.h.b16 %v3675
        %v3728 = vunpack.c.l.b16 %v3676
        %v3729 = vunpack.c.h.b16 %v3676
        %v3730 = vunpack.c.l.b16 %v3677
        %v3731 = vunpack.c.h.b16 %v3677
        %v3732 = vunpack.c.l.b16 %v3678
        %v3733 = vunpack.c.h.b16 %v3678
        %v3734 = vunpack.c.l.b16 %v3679
        %v3735 = vunpack.c.h.b16 %v3679
        %v3736 = vunpack.c.l.b16 %v3680
        %v3737 = vunpack.c.h.b16 %v3680
        %v3738 = vunpack.c.l.b16 %v3681
        %v3739 = vunpack.c.h.b16 %v3681
        %v3740 = vunpack.c.l.b16 %v3682
        %v3741 = vunpack.c.h.b16 %v3682
        %v3742 = vunpack.c.l.b16 %v3683
        %v3743 = vunpack.c.h.b16 %v3683
        %v3744 = vpack.c.b16 %v3714, %v3712
        %v3745 = vpack.c.b16 %v3715, %v3713
        %v3746 = vpack.c.b16 %v3718, %v3716
        %v3747 = vpack.c.b16 %v3719, %v3717
        %v3748 = vpack.c.b16 %v3722, %v3720
        %v3749 = vpack.c.b16 %v3723, %v3721
        %v3750 = vpack.c.b16 %v3726, %v3724
        %v3751 = vpack.c.b16 %v3727, %v3725
        %v3752 = vpack.c.b16 %v3730, %v3728
        %v3753 = vpack.c.b16 %v3731, %v3729
        %v3754 = vpack.c.b16 %v3734, %v3732
        %v3755 = vpack.c.b16 %v3735, %v3733
        %v3756 = vpack.c.b16 %v3738, %v3736
        %v3757 = vpack.c.b16 %v3739, %v3737
        %v3758 = vpack.c.b16 %v3742, %v3740
        %v3759 = vpack.c.b16 %v3743, %v3741
        %3776 = vmatprep.subr.bf16.mxu0 %v3745
        %3777 = vmatpush1.bf16.msra.mxu0 %v3744
        %3778 = vmatprep.subr.bf16.mxu0 %v3747
        %3779 = vmatpush1.bf16.msra.mxu0 %v3746
        %3780 = vmatprep.subr.bf16.mxu0 %v3749
        %3781 = vmatpush1.bf16.msra.mxu0 %v3748
        %3782 = vmatprep.subr.bf16.mxu0 %v3751
        %3783 = vmatpush1.bf16.msra.mxu0 %v3750
        %3784 = vmatprep.subr.bf16.mxu0 %v3753
        %3785 = vmatpush1.bf16.msra.mxu0 %v3752
        %3786 = vmatprep.subr.bf16.mxu0 %v3755
        %3787 = vmatpush1.bf16.msra.mxu0 %v3754
        %3788 = vmatprep.subr.bf16.mxu0 %v3757
        %3789 = vmatpush1.bf16.msra.mxu0 %v3756
        %3790 = vmatprep.subr.bf16.mxu0 %v3759
        %3791 = vmatpush1.bf16.msra.mxu0 %v3758
        %3792 = vmatprep.subr.bf16.mxu0 0
        %3793 = vmatpush1.bf16.msra.mxu0 0
        %3794 = vmatprep.subr.bf16.mxu0 0
        %3795 = vmatpush1.bf16.msra.mxu0 0
        %3796 = vmatprep.subr.bf16.mxu0 0
        %3797 = vmatpush1.bf16.msra.mxu0 0
        %3798 = vmatprep.subr.bf16.mxu0 0
        %3799 = vmatpush1.bf16.msra.mxu0 0
        %3800 = vmatprep.subr.bf16.mxu0 0
        %3801 = vmatpush1.bf16.msra.mxu0 0
        %3802 = vmatprep.subr.bf16.mxu0 0
        %3803 = vmatpush1.bf16.msra.mxu0 0
        %3804 = vmatprep.subr.bf16.mxu0 0
        %3805 = vmatpush1.bf16.msra.mxu0 0
        %3806 = vmatprep.subr.bf16.mxu0 0
        %3807 = vmatpush1.bf16.msra.mxu0 0
        %3808 = vmatprep.mubr.bf16.mxu0 0
        %3809 = vmatmul.mubr.bf16.gmra.mrb[0].mxu0 %v3652
        %v3810 = vpop.f32.mrb[0].mxu0
        %v3811 = vadd.f32 %v3689, %v3810
        %v3812 = vpop.f32.mrb[0].mxu0
        %v3813 = vadd.f32 %v3693, %v3812
        %v3814 = vpop.f32.mrb[0].mxu0
        %v3815 = vadd.f32 %v3689, %v3814
        %v3816 = vpop.f32.mrb[0].mxu0
        %v3817 = vadd.f32 %v3693, %v3816
        %3818 = vmatprep.mubr.bf16.mxu0 0
        %3819 = vmatmul.mubr.bf16.gmra.mrb[0].mxu0 %v3653
        %v3820 = vpop.f32.mrb[0].mxu0
        %v3821 = vadd.f32 %v3689, %v3820
        %v3822 = vpop.f32.mrb[0].mxu0
        %v3823 = vadd.f32 %v3693, %v3822
        %v3824 = vpop.f32.mrb[0].mxu0
        %v3825 = vadd.f32 %v3689, %v3824
        %v3826 = vpop.f32.mrb[0].mxu0
        %v3827 = vadd.f32 %v3693, %v3826
        %3828 = vmatprep.mubr.bf16.mxu0 0
        %3829 = vmatmul.mubr.bf16.gmra.mrb[0].mxu0 %v3654
        %v3830 = vpop.f32.mrb[0].mxu0
        %v3831 = vadd.f32 %v3689, %v3830
        %v3832 = vpop.f32.mrb[0].mxu0
        %v3833 = vadd.f32 %v3693, %v3832
        %v3834 = vpop.f32.mrb[0].mxu0
        %v3835 = vadd.f32 %v3689, %v3834
        %v3836 = vpop.f32.mrb[0].mxu0
        %v3837 = vadd.f32 %v3693, %v3836
        %3838 = vmatprep.mubr.bf16.mxu0 0
        %3839 = vmatmul.mubr.bf16.gmra.mrb[0].mxu0 %v3655
        %v3840 = vpop.f32.mrb[0].mxu0
        %v3841 = vadd.f32 %v3689, %v3840
        %v3842 = vpop.f32.mrb[0].mxu0
        %v3843 = vadd.f32 %v3693, %v3842
        %v3844 = vpop.f32.mrb[0].mxu0
        %v3845 = vadd.f32 %v3689, %v3844
        %v3846 = vpop.f32.mrb[0].mxu0
        %v3847 = vadd.f32 %v3693, %v3846
        %3848 = vmatprep.mubr.bf16.mxu0 0
        %3849 = vmatmul.mubr.bf16.gmra.mrb[0].mxu0 %v3656
        %v3850 = vpop.f32.mrb[0].mxu0
        %v3851 = vadd.f32 %v3689, %v3850
        %v3852 = vpop.f32.mrb[0].mxu0
        %v3853 = vadd.f32 %v3693, %v3852
        %v3854 = vpop.f32.mrb[0].mxu0
        %v3855 = vadd.f32 %v3689, %v3854
        %v3856 = vpop.f32.mrb[0].mxu0
        %v3857 = vadd.f32 %v3693, %v3856
        %3858 = vmatprep.mubr.bf16.mxu0 0
        %3859 = vmatmul.mubr.bf16.gmra.mrb[0].mxu0 %v3657
        %v3860 = vpop.f32.mrb[0].mxu0
        %v3861 = vadd.f32 %v3689, %v3860
        %v3862 = vpop.f32.mrb[0].mxu0
        %v3863 = vadd.f32 %v3693, %v3862
        %v3864 = vpop.f32.mrb[0].mxu0
        %v3865 = vadd.f32 %v3689, %v3864
        %v3866 = vpop.f32.mrb[0].mxu0
        %v3867 = vadd.f32 %v3693, %v3866
        %3868 = vmatprep.mubr.bf16.mxu0 0
        %3869 = vmatmul.mubr.bf16.gmra.mrb[0].mxu0 %v3658
        %v3870 = vpop.f32.mrb[0].mxu0
        %v3871 = vadd.f32 %v3689, %v3870
        %v3872 = vpop.f32.mrb[0].mxu0
        %v3873 = vadd.f32 %v3693, %v3872
        %v3874 = vpop.f32.mrb[0].mxu0
        %v3875 = vadd.f32 %v3689, %v3874
        %v3876 = vpop.f32.mrb[0].mxu0
        %v3877 = vadd.f32 %v3693, %v3876
        %3878 = vmatprep.mubr.bf16.mxu0 0
        %3879 = vmatmul.mubr.bf16.gmra.mrb[0].mxu0 %v3659
        %v3880 = vpop.f32.mrb[0].mxu0
        %v3881 = vadd.f32 %v3689, %v3880
        %v3882 = vpop.f32.mrb[0].mxu0
        %v3883 = vadd.f32 %v3693, %v3882
        %v3884 = vpop.f32.mrb[0].mxu0
        %v3885 = vadd.f32 %v3689, %v3884
        %v3886 = vpop.f32.mrb[0].mxu0
        %v3887 = vadd.f32 %v3693, %v3886
        %3888 = vmatprep.mubr.bf16.mxu0 0
        %3889 = vmatmul.mubr.bf16.gmra.mrb[0].mxu0 %v3660
        %v3890 = vpop.f32.mrb[0].mxu0
        %v3891 = vadd.f32 %v3689, %v3890
        %v3892 = vpop.f32.mrb[0].mxu0
        %v3893 = vadd.f32 %v3693, %v3892
        %v3894 = vpop.f32.mrb[0].mxu0
        %v3895 = vadd.f32 %v3689, %v3894
        %v3896 = vpop.f32.mrb[0].mxu0
        %v3897 = vadd.f32 %v3693, %v3896
        %3898 = vmatprep.mubr.bf16.mxu0 0
        %3899 = vmatmul.mubr.bf16.gmra.mrb[0].mxu0 %v3661
        %v3900 = vpop.f32.mrb[0].mxu0
        %v3901 = vadd.f32 %v3689, %v3900
        %v3902 = vpop.f32.mrb[0].mxu0
        %v3903 = vadd.f32 %v3693, %v3902
        %v3904 = vpop.f32.mrb[0].mxu0
        %v3905 = vadd.f32 %v3689, %v3904
        %v3906 = vpop.f32.mrb[0].mxu0
        %v3907 = vadd.f32 %v3693, %v3906
        %3908 = vmatprep.mubr.bf16.mxu0 0
        %3909 = vmatmul.mubr.bf16.gmra.mrb[0].mxu0 %v3662
        %v3910 = vpop.f32.mrb[0].mxu0
        %v3911 = vadd.f32 %v3689, %v3910
        %v3912 = vpop.f32.mrb[0].mxu0
        %v3913 = vadd.f32 %v3693, %v3912
        %v3914 = vpop.f32.mrb[0].mxu0
        %v3915 = vadd.f32 %v3689, %v3914
        %v3916 = vpop.f32.mrb[0].mxu0
        %v3917 = vadd.f32 %v3693, %v3916
        %3918 = vmatprep.mubr.bf16.mxu0 0
        %3919 = vmatmul.mubr.bf16.gmra.mrb[0].mxu0 %v3663
        %v3920 = vpop.f32.mrb[0].mxu0
        %v3921 = vadd.f32 %v3689, %v3920
        %v3922 = vpop.f32.mrb[0].mxu0
        %v3923 = vadd.f32 %v3693, %v3922
        %v3924 = vpop.f32.mrb[0].mxu0
        %v3925 = vadd.f32 %v3689, %v3924
        %v3926 = vpop.f32.mrb[0].mxu0
        %v3927 = vadd.f32 %v3693, %v3926
        %3928 = vmatprep.mubr.bf16.mxu0 0
        %3929 = vmatmul.mubr.bf16.gmra.mrb[0].mxu0 %v3664
        %v3930 = vpop.f32.mrb[0].mxu0
        %v3931 = vadd.f32 %v3689, %v3930
        %v3932 = vpop.f32.mrb[0].mxu0
        %v3933 = vadd.f32 %v3693, %v3932
        %v3934 = vpop.f32.mrb[0].mxu0
        %v3935 = vadd.f32 %v3689, %v3934
        %v3936 = vpop.f32.mrb[0].mxu0
        %v3937 = vadd.f32 %v3693, %v3936
        %3938 = vmatprep.mubr.bf16.mxu0 0
        %3939 = vmatmul.mubr.bf16.gmra.mrb[0].mxu0 %v3665
        %v3940 = vpop.f32.mrb[0].mxu0
        %v3941 = vadd.f32 %v3689, %v3940
        %v3942 = vpop.f32.mrb[0].mxu0
        %v3943 = vadd.f32 %v3693, %v3942
        %v3944 = vpop.f32.mrb[0].mxu0
        %v3945 = vadd.f32 %v3689, %v3944
        %v3946 = vpop.f32.mrb[0].mxu0
        %v3947 = vadd.f32 %v3693, %v3946
        %3948 = vmatprep.mubr.bf16.mxu0 0
        %3949 = vmatmul.mubr.bf16.gmra.mrb[0].mxu0 %v3666
        %v3950 = vpop.f32.mrb[0].mxu0
        %v3951 = vadd.f32 %v3689, %v3950
        %v3952 = vpop.f32.mrb[0].mxu0
        %v3953 = vadd.f32 %v3693, %v3952
        %v3954 = vpop.f32.mrb[0].mxu0
        %v3955 = vadd.f32 %v3689, %v3954
        %v3956 = vpop.f32.mrb[0].mxu0
        %v3957 = vadd.f32 %v3693, %v3956
        %3958 = vmatprep.mubr.bf16.mxu0 0
        %3959 = vmatmul.mubr.bf16.gmra.mrb[0].mxu0 %v3667
        %v3960 = vpop.f32.mrb[0].mxu0
        %v3961 = vadd.f32 %v3689, %v3960
        %v3962 = vpop.f32.mrb[0].mxu0
        %v3963 = vadd.f32 %v3693, %v3962
        %v3964 = vpop.f32.mrb[0].mxu0
        %v3965 = vadd.f32 %v3689, %v3964
        %v3966 = vpop.f32.mrb[0].mxu0
        %v3967 = vadd.f32 %v3693, %v3966
        %3968 = vdwg.mxu0
        %v3969 = vadd.f32 %v3811, %v380
        %v3970 = vadd.f32 %v3813, %v381
        %v3971 = vadd.f32 %v3815, %v382
        %v3972 = vadd.f32 %v3817, %v383
        %v3973 = vadd.f32 %v3821, %v384
        %v3974 = vadd.f32 %v3823, %v385
        %v3975 = vadd.f32 %v3825, %v386
        %v3976 = vadd.f32 %v3827, %v387
        %v3977 = vadd.f32 %v3831, %v388
        %v3978 = vadd.f32 %v3833, %v389
        %v3979 = vadd.f32 %v3835, %v390
        %v3980 = vadd.f32 %v3837, %v391
        %v3981 = vadd.f32 %v3841, %v392
        %v3982 = vadd.f32 %v3843, %v393
        %v3983 = vadd.f32 %v3845, %v394
        %v3984 = vadd.f32 %v3847, %v395
        %v3985 = vadd.f32 %v3851, %v396
        %v3986 = vadd.f32 %v3853, %v397
        %v3987 = vadd.f32 %v3855, %v398
        %v3988 = vadd.f32 %v3857, %v399
        %v3989 = vadd.f32 %v3861, %v400
        %v3990 = vadd.f32 %v3863, %v401
        %v3991 = vadd.f32 %v3865, %v402
        %v3992 = vadd.f32 %v3867, %v403
        %v3993 = vadd.f32 %v3871, %v404
        %v3994 = vadd.f32 %v3873, %v405
        %v3995 = vadd.f32 %v3875, %v406
        %v3996 = vadd.f32 %v3877, %v407
        %v3997 = vadd.f32 %v3881, %v408
        %v3998 = vadd.f32 %v3883, %v409
        %v3999 = vadd.f32 %v3885, %v410
        %v4000 = vadd.f32 %v3887, %v411
        %v4001 = vadd.f32 %v3891, %v412
        %v4002 = vadd.f32 %v3893, %v413
        %v4003 = vadd.f32 %v3895, %v414
        %v4004 = vadd.f32 %v3897, %v415
        %v4005 = vadd.f32 %v3901, %v416
        %v4006 = vadd.f32 %v3903, %v417
        %v4007 = vadd.f32 %v3905, %v418
        %v4008 = vadd.f32 %v3907, %v419
        %v4009 = vadd.f32 %v3911, %v420
        %v4010 = vadd.f32 %v3913, %v421
        %v4011 = vadd.f32 %v3915, %v422
        %v4012 = vadd.f32 %v3917, %v423
        %v4013 = vadd.f32 %v3921, %v424
        %v4014 = vadd.f32 %v3923, %v425
        %v4015 = vadd.f32 %v3925, %v426
        %v4016 = vadd.f32 %v3927, %v427
        %v4017 = vadd.f32 %v3931, %v428
        %v4018 = vadd.f32 %v3933, %v429
        %v4019 = vadd.f32 %v3935, %v430
        %v4020 = vadd.f32 %v3937, %v431
        %v4021 = vadd.f32 %v3941, %v432
        %v4022 = vadd.f32 %v3943, %v433
        %v4023 = vadd.f32 %v3945, %v434
        %v4024 = vadd.f32 %v3947, %v435
        %v4025 = vadd.f32 %v3951, %v436
        %v4026 = vadd.f32 %v3953, %v437
        %v4027 = vadd.f32 %v3955, %v438
        %v4028 = vadd.f32 %v3957, %v439
        %v4029 = vadd.f32 %v3961, %v440
        %v4030 = vadd.f32 %v3963, %v441
        %v4031 = vadd.f32 %v3965, %v442
        %v4032 = vadd.f32 %v3967, %v443
        %v4033 = vmax.f32 %v3969, 0.0
        %v4034 = vmax.f32 %v3970, 0.0
        %v4035 = vmax.f32 %v3971, 0.0
        %v4036 = vmax.f32 %v3972, 0.0
        %v4037 = vmax.f32 %v3973, 0.0
        %v4038 = vmax.f32 %v3974, 0.0
        %v4039 = vmax.f32 %v3975, 0.0
        %v4040 = vmax.f32 %v3976, 0.0
        %v4041 = vmax.f32 %v3977, 0.0
        %v4042 = vmax.f32 %v3978, 0.0
        %v4043 = vmax.f32 %v3979, 0.0
        %v4044 = vmax.f32 %v3980, 0.0
        %v4045 = vmax.f32 %v3981, 0.0
        %v4046 = vmax.f32 %v3982, 0.0
        %v4047 = vmax.f32 %v3983, 0.0
        %v4048 = vmax.f32 %v3984, 0.0
        %v4049 = vmax.f32 %v3985, 0.0
        %v4050 = vmax.f32 %v3986, 0.0
        %v4051 = vmax.f32 %v3987, 0.0
        %v4052 = vmax.f32 %v3988, 0.0
        %v4053 = vmax.f32 %v3989, 0.0
        %v4054 = vmax.f32 %v3990, 0.0
        %v4055 = vmax.f32 %v3991, 0.0
        %v4056 = vmax.f32 %v3992, 0.0
        %v4057 = vmax.f32 %v3993, 0.0
        %v4058 = vmax.f32 %v3994, 0.0
        %v4059 = vmax.f32 %v3995, 0.0
        %v4060 = vmax.f32 %v3996, 0.0
        %v4061 = vmax.f32 %v3997, 0.0
        %v4062 = vmax.f32 %v3998, 0.0
        %v4063 = vmax.f32 %v3999, 0.0
        %v4064 = vmax.f32 %v4000, 0.0
        %v4065 = vmax.f32 %v4001, 0.0
        %v4066 = vmax.f32 %v4002, 0.0
        %v4067 = vmax.f32 %v4003, 0.0
        %v4068 = vmax.f32 %v4004, 0.0
        %v4069 = vmax.f32 %v4005, 0.0
        %v4070 = vmax.f32 %v4006, 0.0
        %v4071 = vmax.f32 %v4007, 0.0
        %v4072 = vmax.f32 %v4008, 0.0
        %v4073 = vmax.f32 %v4009, 0.0
        %v4074 = vmax.f32 %v4010, 0.0
        %v4075 = vmax.f32 %v4011, 0.0
        %v4076 = vmax.f32 %v4012, 0.0
        %v4077 = vmax.f32 %v4013, 0.0
        %v4078 = vmax.f32 %v4014, 0.0
        %v4079 = vmax.f32 %v4015, 0.0
        %v4080 = vmax.f32 %v4016, 0.0
        %v4081 = vmax.f32 %v4017, 0.0
        %v4082 = vmax.f32 %v4018, 0.0
        %v4083 = vmax.f32 %v4019, 0.0
        %v4084 = vmax.f32 %v4020, 0.0
        %v4085 = vmax.f32 %v4021, 0.0
        %v4086 = vmax.f32 %v4022, 0.0
        %v4087 = vmax.f32 %v4023, 0.0
        %v4088 = vmax.f32 %v4024, 0.0
        %v4089 = vmax.f32 %v4025, 0.0
        %v4090 = vmax.f32 %v4026, 0.0
        %v4091 = vmax.f32 %v4027, 0.0
        %v4092 = vmax.f32 %v4028, 0.0
        %v4093 = vmax.f32 %v4029, 0.0
        %v4094 = vmax.f32 %v4030, 0.0
        %v4095 = vmax.f32 %v4031, 0.0
        %v4096 = vmax.f32 %v4032, 0.0
        %4097 = vst [vmem:[%s371] sm:$0xff] %v4033
        %4098 = vst [vmem:[%s371 + $0x8] sm:$0xff] %v4034
        %4099 = vst [vmem:[%s371 + $0x10] sm:$0xff] %v4035
        %4100 = vst [vmem:[%s371 + $0x18] sm:$0xff] %v4036
        %4101 = vst [vmem:[%s371 + $0x20] sm:$0xff] %v4037
        %4102 = vst [vmem:[%s371 + $0x28] sm:$0xff] %v4038
        %4103 = vst [vmem:[%s371 + $0x30] sm:$0xff] %v4039
        %4104 = vst [vmem:[%s371 + $0x38] sm:$0xff] %v4040
        %4105 = vst [vmem:[%s371 + $0x40] sm:$0xff] %v4041
        %4106 = vst [vmem:[%s371 + $0x48] sm:$0xff] %v4042
        %4107 = vst [vmem:[%s371 + $0x50] sm:$0xff] %v4043
        %4108 = vst [vmem:[%s371 + $0x58] sm:$0xff] %v4044
        %4109 = vst [vmem:[%s371 + $0x60] sm:$0xff] %v4045
        %4110 = vst [vmem:[%s371 + $0x68] sm:$0xff] %v4046
        %4111 = vst [vmem:[%s371 + $0x70] sm:$0xff] %v4047
        %4112 = vst [vmem:[%s371 + $0x78] sm:$0xff] %v4048
        %4113 = vst [vmem:[%s371 + $0x80] sm:$0xff] %v4049
        %4114 = vst [vmem:[%s371 + $0x88] sm:$0xff] %v4050
        %4115 = vst [vmem:[%s371 + $0x90] sm:$0xff] %v4051
        %4116 = vst [vmem:[%s371 + $0x98] sm:$0xff] %v4052
        %4117 = vst [vmem:[%s371 + $0xa0] sm:$0xff] %v4053
        %4118 = vst [vmem:[%s371 + $0xa8] sm:$0xff] %v4054
        %4119 = vst [vmem:[%s371 + $0xb0] sm:$0xff] %v4055
        %4120 = vst [vmem:[%s371 + $0xb8] sm:$0xff] %v4056
        %4121 = vst [vmem:[%s371 + $0xc0] sm:$0xff] %v4057
        %4122 = vst [vmem:[%s371 + $0xc8] sm:$0xff] %v4058
        %4123 = vst [vmem:[%s371 + $0xd0] sm:$0xff] %v4059
        %4124 = vst [vmem:[%s371 + $0xd8] sm:$0xff] %v4060
        %4125 = vst [vmem:[%s371 + $0xe0] sm:$0xff] %v4061
        %4126 = vst [vmem:[%s371 + $0xe8] sm:$0xff] %v4062
        %4127 = vst [vmem:[%s371 + $0xf0] sm:$0xff] %v4063
        %4128 = vst [vmem:[%s371 + $0xf8] sm:$0xff] %v4064
        %4129 = vst [vmem:[%s371 + $0x100] sm:$0xff] %v4065
        %4130 = vst [vmem:[%s371 + $0x108] sm:$0xff] %v4066
        %4131 = vst [vmem:[%s371 + $0x110] sm:$0xff] %v4067
        %4132 = vst [vmem:[%s371 + $0x118] sm:$0xff] %v4068
        %4133 = vst [vmem:[%s371 + $0x120] sm:$0xff] %v4069
        %4134 = vst [vmem:[%s371 + $0x128] sm:$0xff] %v4070
        %4135 = vst [vmem:[%s371 + $0x130] sm:$0xff] %v4071
        %4136 = vst [vmem:[%s371 + $0x138] sm:$0xff] %v4072
        %4137 = vst [vmem:[%s371 + $0x140] sm:$0xff] %v4073
        %4138 = vst [vmem:[%s371 + $0x148] sm:$0xff] %v4074
        %4139 = vst [vmem:[%s371 + $0x150] sm:$0xff] %v4075
        %4140 = vst [vmem:[%s371 + $0x158] sm:$0xff] %v4076
        %4141 = vst [vmem:[%s371 + $0x160] sm:$0xff] %v4077
        %4142 = vst [vmem:[%s371 + $0x168] sm:$0xff] %v4078
        %4143 = vst [vmem:[%s371 + $0x170] sm:$0xff] %v4079
        %4144 = vst [vmem:[%s371 + $0x178] sm:$0xff] %v4080
        %4145 = vst [vmem:[%s371 + $0x180] sm:$0xff] %v4081
        %4146 = vst [vmem:[%s371 + $0x188] sm:$0xff] %v4082
        %4147 = vst [vmem:[%s371 + $0x190] sm:$0xff] %v4083
        %4148 = vst [vmem:[%s371 + $0x198] sm:$0xff] %v4084
        %4149 = vst [vmem:[%s371 + $0x1a0] sm:$0xff] %v4085
        %4150 = vst [vmem:[%s371 + $0x1a8] sm:$0xff] %v4086
        %4151 = vst [vmem:[%s371 + $0x1b0] sm:$0xff] %v4087
        %4152 = vst [vmem:[%s371 + $0x1b8] sm:$0xff] %v4088
        %4153 = vst [vmem:[%s371 + $0x1c0] sm:$0xff] %v4089
        %4154 = vst [vmem:[%s371 + $0x1c8] sm:$0xff] %v4090
        %4155 = vst [vmem:[%s371 + $0x1d0] sm:$0xff] %v4091
        %4156 = vst [vmem:[%s371 + $0x1d8] sm:$0xff] %v4092
        %4157 = vst [vmem:[%s371 + $0x1e0] sm:$0xff] %v4093
        %4158 = vst [vmem:[%s371 + $0x1e8] sm:$0xff] %v4094
        %4159 = vst [vmem:[%s371 + $0x1f0] sm:$0xff] %v4095
        %4160 = vst [vmem:[%s371 + $0x1f8] sm:$0xff] %v4096
        %v4161 = vadd.f32 %v4033, %v4035
        %v4162 = vadd.f32 %v4161, %v4037
        %v4163 = vadd.f32 %v4162, %v4039
        %v4164 = vadd.f32 %v4163, %v4041
        %v4165 = vadd.f32 %v4164, %v4043
        %v4166 = vadd.f32 %v4165, %v4045
        %v4167 = vadd.f32 %v4166, %v4047
        %v4168 = vadd.f32 %v4167, %v4049
        %v4169 = vadd.f32 %v4168, %v4051
        %v4170 = vadd.f32 %v4169, %v4053
        %v4171 = vadd.f32 %v4170, %v4055
        %v4172 = vadd.f32 %v4171, %v4057
        %v4173 = vadd.f32 %v4172, %v4059
        %v4174 = vadd.f32 %v4173, %v4061
        %v4175 = vadd.f32 %v4174, %v4063
        %v4176 = vadd.f32 %v4175, %v4065
        %v4177 = vadd.f32 %v4176, %v4067
        %v4178 = vadd.f32 %v4177, %v4069
        %v4179 = vadd.f32 %v4178, %v4071
        %v4180 = vadd.f32 %v4179, %v4073
        %v4181 = vadd.f32 %v4180, %v4075
        %v4182 = vadd.f32 %v4181, %v4077
        %v4183 = vadd.f32 %v4182, %v4079
        %v4184 = vadd.f32 %v4183, %v4081
        %v4185 = vadd.f32 %v4184, %v4083
        %v4186 = vadd.f32 %v4185, %v4085
        %v4187 = vadd.f32 %v4186, %v4087
        %v4188 = vadd.f32 %v4187, %v4089
        %v4189 = vadd.f32 %v4188, %v4091
        %v4190 = vadd.f32 %v4189, %v4093
        %v4191 = vadd.f32 %v4190, %v4095
        %v4192 = vrot.slane %v4191, 4
        %v4193 = vadd.f32 %v4191, %v4192
        %v4194 = vrot.slane %v4193, 2
        %v4195 = vadd.f32 %v4193, %v4194
        %v4196 = vrot.slane %v4195, 1
        %v4197 = vadd.f32 %v4195, %v4196
        %v4198 = vadd.f32 %v4034, %v4036
        %v4199 = vadd.f32 %v4198, %v4038
        %v4200 = vadd.f32 %v4199, %v4040
        %v4201 = vadd.f32 %v4200, %v4042
        %v4202 = vadd.f32 %v4201, %v4044
        %v4203 = vadd.f32 %v4202, %v4046
        %v4204 = vadd.f32 %v4203, %v4048
        %v4205 = vadd.f32 %v4204, %v4050
        %v4206 = vadd.f32 %v4205, %v4052
        %v4207 = vadd.f32 %v4206, %v4054
        %v4208 = vadd.f32 %v4207, %v4056
        %v4209 = vadd.f32 %v4208, %v4058
        %v4210 = vadd.f32 %v4209, %v4060
        %v4211 = vadd.f32 %v4210, %v4062
        %v4212 = vadd.f32 %v4211, %v4064
        %v4213 = vadd.f32 %v4212, %v4066
        %v4214 = vadd.f32 %v4213, %v4068
        %v4215 = vadd.f32 %v4214, %v4070
        %v4216 = vadd.f32 %v4215, %v4072
        %v4217 = vadd.f32 %v4216, %v4074
        %v4218 = vadd.f32 %v4217, %v4076
        %v4219 = vadd.f32 %v4218, %v4078
        %v4220 = vadd.f32 %v4219, %v4080
        %v4221 = vadd.f32 %v4220, %v4082
        %v4222 = vadd.f32 %v4221, %v4084
        %v4223 = vadd.f32 %v4222, %v4086
        %v4224 = vadd.f32 %v4223, %v4088
        %v4225 = vadd.f32 %v4224, %v4090
        %v4226 = vadd.f32 %v4225, %v4092
        %v4227 = vadd.f32 %v4226, %v4094
        %v4228 = vadd.f32 %v4227, %v4096
        %v4229 = vrot.slane %v4228, 4
        %v4230 = vadd.f32 %v4228, %v4229
        %v4231 = vrot.slane %v4230, 2
        %v4232 = vadd.f32 %v4230, %v4231
        %v4233 = vrot.slane %v4232, 1
        %v4234 = vadd.f32 %v4232, %v4233
        %v4235 = vrcp.pop 256.0
        %v4236 = vmul.f32 %v4197, %v4235
        %v4237 = vmul.f32 %v4234, %v4235
        %v4240 = vcombine.low %v4236, %v4237
        %v4242 = vunpack.c.l.s4 1966171168
        %v4243 = vunpack.c.0.s8 %v4242
        %v4244 = vlaneseq
        %v4245 = vshrl.u32 %v4244, 7
        %v4246 = vsub.s32 %v4243, %v4245
        %v4247 = vrot.slane %v4240, %v4246
        %v4249 = vunpack.c.l.s4 1966171168
        %v4250 = vunpack.c.0.s8 %v4249
        %v4251 = vlaneseq
        %v4252 = vshrl.u32 %v4251, 7
        %v4253 = vsub.s32 %v4250, %v4252
        %v4254 = vrot.slane %v4247, %v4253
        %v4256 = vlaneseq
        %vm4257 = vcmp.ge.s32.totalorder %v4256, 0
        %vm4258 = vcmp.lt.s32.totalorder %v4256, 256
        %vm4259 = vmand %vm4257, %vm4258
        %4260 = vst.msk [vmem:[%s378] sm:$0x3] %vm4259, %v4254
        %s4261 = sand.u32 %s191, 1
        %s4262 = scalar_lea.sflag [#allocation5], %s4261
        %s4263 = sand.u32 %s191, 1
        %s4264 = smul.addr %s4263, 512
        %s4265 = scalar_lea.vmem [#allocation11], %s4264
        %s4266 = sand.u32 %s217, 1
        %s4267 = scalar_lea.sflag [#allocation13], %s4266
        %s4268 = sand.u32 %s217, 1
        %s4269 = smul.addr %s4268, 2
        %s4270 = scalar_lea.vmem [#allocation12], %s4269
        // Predicated region
        $region65: #{tpu_custom_call.1} parent=47 // pred_check
          %p4271 = pneg %p201
        $region66: #{tpu_custom_call.1} parent=47 // pred_check_branch
          %4273 = sbr.rel (%p4271) target = $region68
        $region67: #{tpu_custom_call.1} parent=47 // pred_region
          %s4275 = ssub.s32 8192, 8192
          %4276 = vsyncadd %s4262, %s4275
          %s4277 = smul.addr %s31, 64
          %s4278 = smul.addr %s4277, 128
          %s4279 = scalar_lea.hbm %s7, %s4278
          %s4280 = sshll.u32 %s4265, 4
          %s4281 = int_to_ptr.vmem [resolvable:$true] %s4280
          %4286 = dma.vmem_to_hbm [thread:$0]  %s4281, 8192, %s4279, %s4262, 256, 256, 16
        $region68: #{tpu_custom_call.1} parent=47 // pred_fallthru
          _
        // Predicated region
        $region69: #{tpu_custom_call.1} parent=47 // pred_check
          %p4287 = pneg %p227
        $region70: #{tpu_custom_call.1} parent=47 // pred_check_branch
          %4289 = sbr.rel (%p4287) target = $region72
        $region71: #{tpu_custom_call.1} parent=47 // pred_region
          %s4291 = ssub.s32 32, 32
          %4292 = vsyncadd %s4267, %s4291
          %s4293 = smul.addr %s31, 2
          %s4294 = smul.addr %s4293, 16
          %s4295 = scalar_lea.hbm %s8, %s4294
          %s4297 = sshll.u32 %s4270, 4
          %s4298 = int_to_ptr.vmem [resolvable:$true] %s4297
          %4300 = dma.vmem_to_hbm [thread:$0]  %s4298, 32, %s4295, %s4267
        $region72: #{tpu_custom_call.1} parent=47 // pred_fallthru
          _
      $region48: #{tpu_custom_call.1} parent=5 // pred_fallthru
        _
      %p4301 = scmp.le.s32.totalorder 2, %s26
      // Predicated region
      $region73: #{tpu_custom_call.1} parent=5 // pred_check
        %p4302 = pneg %p4301
      $region74: #{tpu_custom_call.1} parent=5 // pred_check_branch
        %4304 = sbr.rel (%p4302) target = $region76
      $region75: #{tpu_custom_call.1} parent=5 // pred_region
        %s4305 = ssub.s32 %s26, 2
        // Predicated region
        $region77: #{tpu_custom_call.1} parent=75 // pred_check
          %p4306 = pneg %p207
        $region78: #{tpu_custom_call.1} parent=75 // pred_check_branch
          %4308 = sbr.rel (%p4306) target = $region80
        $region79: #{tpu_custom_call.1} parent=75 // pred_region
          %s4309 = sand.u32 %s192, 1
          %s4310 = scalar_lea.sflag [#allocation5], %s4309
          %s4311 = sand.u32 %s192, 1
          %s4312 = smul.addr %s4311, 512
          %s4313 = scalar_lea.vmem [#allocation11], %s4312
          %4314 = dma.done %s4310, 8192
        $region80: #{tpu_custom_call.1} parent=75 // pred_fallthru
          _
        // Predicated region
        $region81: #{tpu_custom_call.1} parent=75 // pred_check
          %p4315 = pneg %p233
        $region82: #{tpu_custom_call.1} parent=75 // pred_check_branch
          %4317 = sbr.rel (%p4315) target = $region84
        $region83: #{tpu_custom_call.1} parent=75 // pred_region
          %s4318 = sand.u32 %s218, 1
          %s4319 = scalar_lea.sflag [#allocation13], %s4318
          %s4320 = sand.u32 %s218, 1
          %s4321 = smul.addr %s4320, 2
          %s4322 = scalar_lea.vmem [#allocation12], %s4321
          %4323 = dma.done %s4319, 32
        $region84: #{tpu_custom_call.1} parent=75 // pred_fallthru
          _
      $region76: #{tpu_custom_call.1} parent=5 // pred_fallthru
        _
    $region6: #{tpu_custom_call.1} parent=1 // loop_footer
      %s30 = sadd.s32 1, %s26
    $region7: #{tpu_custom_call.1} parent=1 // loop_footer_branch
      %25 = sbr.rel target = $region3
    $region8: #{tpu_custom_call.1} parent=1 // loop_exit
      _
    %4324 = vsyncpa [#allocation4], 1
    %s4325 = scalar_lea.sflag [#allocation4], 1
    %4326 = vsyncpa %s4325, 1
    %4327 = vsyncpa [#allocation7], 1
    %4328 = vsyncpa [#allocation10], 1
    %4329 = vsyncpa [#allocation5], 1
    %s4330 = scalar_lea.sflag [#allocation5], 1
    %4331 = vsyncpa %s4330, 1
    %4332 = vsyncpa [#allocation13], 1
    %s4333 = scalar_lea.sflag [#allocation13], 1
    %4334 = vsyncpa %s4333, 1

</llo_original>
